<compile_context>
chip_gen: v5e
topology: v5e:2x2
jax: 0.10.0
libtpu: 0.0.40
codegen_flags: <defaults>
</compile_context>

<pallas_src>
import math

import numpy as np
import jax
import jax.numpy as jnp
from jax.experimental import pallas as pl
from jax.experimental.pallas import tpu as pltpu

PAD = 16  # bf16 packs 16 sublanes/vreg -> offset-16 interior writes stay aligned


# ----------------------------------------------------------------------------
# In-kernel helper: 3x3 SAME conv as 3 row-shifted banded matmuls.
# ----------------------------------------------------------------------------
def _banded_conv(scr_ref, val_bf16, w_ref, n_out):
    """scr_ref: VMEM (F, H + 2*PAD, WC) bf16; rows PAD-1 and PAD+H are zero (the
    conv's H padding), interior rows are overwritten here, other rows never read.
    val_bf16: (F, H, WC) bf16 value (W and channels merged in the lane dim).
    w_ref:    (3, WC, n_out) bf16 banded weights (one band per ky tap).
    returns:  (F*H, n_out) f32."""
    F, H, WC = val_bf16.shape
    scr_ref[:, PAD:PAD + H, :] = val_bf16           # aligned dense write (offset 16)
    acc = None
    for ky in range(3):                              # 3 matmuls, K = WC, MXU-friendly
        lhs = scr_ref[:, PAD - 1 + ky:PAD - 1 + ky + H, :].reshape(F * H, WC)
        part = jnp.dot(lhs, w_ref[ky], preferred_element_type=jnp.float32)
        acc = part if acc is None else acc + part    # ky=0 seeds the accumulator
    return acc


# ----------------------------------------------------------------------------
# Pallas kernel: full ConvGRUCell + SequenceGRU conv for one batch block,
# all T timesteps at once (hidden is constant across t in the PyTorch forward).
# ----------------------------------------------------------------------------
def convgru_cell_kernel(x_ref, h_ref, wx_ref, whzr_ref, who_ref, wsq_ref,
                        bzr_ref, bo_ref, bsq_ref, out_ref,
                        scr_x, scr_h, scr_s):
    BB, T, H, WCx = x_ref.shape                     # x: (bb, T, H, W*cin) bf16
    WCh = h_ref.shape[-1]                           # h: (bb, H, W*ch) f32
    F = BB * T

    # Zero ONLY the two border rows per frame (the only pad rows ever read; the
    # interior is fully overwritten before each read).  Do NOT guard this with
    # pl.when(program_id==0): on v7x megacore the second core never executes
    # program_id 0 and its private scratch borders would be garbage.
    for scr in (scr_x, scr_h, scr_s):
        nf, _, wc = scr.shape
        zrow = jnp.zeros((nf, 1, wc), scr.dtype)
        scr[:, PAD - 1:PAD, :] = zrow
        scr[:, PAD + H:PAD + H + 1, :] = zrow

    x = x_ref[...]                                  # bf16 (cast once, in the wrapper)
    h = h_ref[...]                                  # f32 (kept f32 for the blend math)
    h_bf = h.astype(jnp.bfloat16)                   # single cast for the h-side matmul

    # x-side of update|reset|out gates, fused along N: (F*H, 3*W*ch)
    gx = _banded_conv(scr_x, x.reshape(F, H, WCx), wx_ref, 3 * WCh)
    # h-side of update|reset (shared across all timesteps): (bb*H, 2*W*ch)
    ghzr = _banded_conv(scr_h, h_bf, whzr_ref, 2 * WCh)

    ghzr_t = jnp.broadcast_to(ghzr.reshape(BB, 1, H, 2 * WCh),
                              (BB, T, H, 2 * WCh)).reshape(F * H, 2 * WCh)
    zr = jax.nn.sigmoid(gx[:, :2 * WCh] + ghzr_t + bzr_ref[...])   # f32 (v5e-safe)
    update = zr[:, :WCh]
    reset = zr[:, WCh:]

    h_t = jnp.broadcast_to(h.reshape(BB, 1, H, WCh),
                           (BB, T, H, WCh)).reshape(F * H, WCh)
    hr = (h_t * reset).astype(jnp.bfloat16)                         # cast once
    gho = _banded_conv(scr_s, hr.reshape(F, H, WCh), who_ref, WCh)
    out_in = jnp.tanh(gx[:, 2 * WCh:] + gho + bo_ref[...])

    new_state = h_t * (1.0 - update) + out_in * update              # (F*H, W*ch) f32

    # SequenceGRU: spectral-normalized 3x3 conv on the new state (+ bias).
    seq = _banded_conv(scr_s, new_state.astype(jnp.bfloat16).reshape(F, H, WCh),
                       wsq_ref, WCh) + bsq_ref[...]
    out_ref[...] = seq.reshape(BB, T * H, WCh).astype(out_ref.dtype)  # dense bf16 store


# ----------------------------------------------------------------------------
# Wrapper: one ConvGRU layer over the batch grid.
# ----------------------------------------------------------------------------
def run_convgru_layer(x_lm, h_lm, p, batch_block=None):
    """x_lm: (B, T, H, W*cin) bf16, h_lm: (B, H, W*ch) f32 -> (B, T*H, W*ch) bf16."""
    B, T, H, WCx = x_lm.shape
    WCh = h_lm.shape[-1]

    if batch_block is None:
        # Fatten matmul M toward >=128 for the 256-wide v6e/v7x MXUs, but keep the
        # parallel grid axis length >= 2 so both v7x TensorCores get work.
        batch_block = 1
        while (batch_block * T * H < 128
               and B % (batch_block * 2) == 0
               and B // (batch_block * 2) >= 2):
            batch_block *= 2
    bb = batch_block
    assert B % bb == 0
    grid = (B // bb,)

    def const_spec(arr):
        n = arr.ndim
        return pl.BlockSpec(arr.shape, lambda b, _n=n: (0,) * _n)

    in_specs = [
        pl.BlockSpec((bb, T, H, WCx), lambda b: (b, 0, 0, 0)),
        pl.BlockSpec((bb, H, WCh), lambda b: (b, 0, 0)),
        const_spec(p['wx']), const_spec(p['whzr']),
        const_spec(p['who']), const_spec(p['wsq']),
        const_spec(p['bzr']), const_spec(p['bo']), const_spec(p['bsq']),
    ]
    out_spec = pl.BlockSpec((bb, T * H, WCh), lambda b: (b, 0, 0))

    # Explicit VMEM budget: bf16 scratches + double-buffered x/out blocks + weights,
    # with margin, clamped below v7x's 64 MiB physical VMEM.
    scratch_bytes = (bb * T * (H + 2 * PAD) * WCx
                     + bb * (H + 2 * PAD) * WCh
                     + bb * T * (H + 2 * PAD) * WCh) * 2
    io_bytes = 2 * (bb * T * H * WCx + bb * T * H * WCh) * 2 + 2 * bb * H * WCh * 4
    w_bytes = sum(p[k].size * 2 for k in ('wx', 'whzr', 'who', 'wsq'))
    vmem_limit = int(min(max(32 * 1024 * 1024,
                             2 * (scratch_bytes + io_bytes + w_bytes)),
                         60 * 1024 * 1024))

    return pl.pallas_call(
        convgru_cell_kernel,
        out_shape=jax.ShapeDtypeStruct((B, T * H, WCh), jnp.bfloat16),
        grid=grid,
        in_specs=in_specs,
        out_specs=out_spec,
        scratch_shapes=[
            pltpu.VMEM((bb * T, H + 2 * PAD, WCx), jnp.bfloat16),
            pltpu.VMEM((bb, H + 2 * PAD, WCh), jnp.bfloat16),
            pltpu.VMEM((bb * T, H + 2 * PAD, WCh), jnp.bfloat16),
        ],
        compiler_params=pltpu.CompilerParams(
            dimension_semantics=("parallel",),
            vmem_limit_bytes=vmem_limit),
    )(x_lm, h_lm, p['wx'], p['whzr'], p['who'], p['wsq'],
      p['bzr'], p['bo'], p['bsq'])


def convgru_forward(x, hidden, params):
    """x: (B, T, C_in, H, W); hidden: list of (B, C_h, H, W) per layer.
    Returns ([last_layer_output (B,T,C,H,W)], [last_layer_hidden]) like PyTorch."""
    B, T, cin, H, W = x.shape
    # Layout plumbing only (NCHW -> lane-merged); cast to bf16 once for the matmuls.
    cur = jnp.transpose(x, (0, 1, 3, 4, 2)).reshape(B, T, H, W * cin).astype(jnp.bfloat16)
    last_states = []
    for i, p in enumerate(params):
        ch = p['ch']
        h_lm = jnp.transpose(hidden[i], (0, 2, 3, 1)).reshape(B, H, W * ch)  # f32
        out = run_convgru_layer(cur, h_lm, p)          # (B, T*H, W*ch) bf16
        cur = out.reshape(B, T, H, W * ch)             # fed to next layer as bf16
        last_states.append(hidden[i])                  # PyTorch appends never-updated hidden
    ch = params[-1]['ch']
    out_nchw = cur.reshape(B, T, H, W, ch).transpose(0, 1, 4, 2, 3).astype(jnp.float32)
    return [out_nchw], [last_states[-1]]


# ----------------------------------------------------------------------------
# Parameter construction (mirrors module __init__) + banded-weight packing.
# ----------------------------------------------------------------------------
def _orthogonal(key, shape):
    cout = shape[0]
    fan = shape[1] * shape[2] * shape[3]
    n = max(cout, fan)
    a = jax.random.normal(key, (n, n), jnp.float32)
    q, _ = jnp.linalg.qr(a)
    return q[:cout, :fan].reshape(shape)


def _spectral_norm(key, w, n_iter=1):
    wm = w.reshape(w.shape[0], -1)
    u = jax.random.normal(key, (wm.shape[0],), jnp.float32)
    u = u / (jnp.linalg.norm(u) + 1e-12)
    v = wm.T @ u
    for _ in range(n_iter):
        v = wm.T @ u
        v = v / (jnp.linalg.norm(v) + 1e-12)
        u = wm @ v
        u = u / (jnp.linalg.norm(u) + 1e-12)
    sigma = u @ (wm @ v)
    return w / sigma


def _make_banded(w_hwio, W):
    """(3, 3, Cin, Cout) HWIO conv weight -> (3, W*Cin, W*Cout) per-ky banded matrices.
    The kx taps and the W-border zero padding are encoded in the band structure."""
    kh, kw, cin, cout = w_hwio.shape
    w_np = np.asarray(w_hwio, np.float32)
    band = np.zeros((kh, W * cin, W * cout), np.float32)
    for ky in range(kh):
        for wo in range(W):
            for kx in range(kw):
                wi = wo + kx - 1
                if 0 <= wi < W:
                    band[ky, wi * cin:(wi + 1) * cin,
                         wo * cout:(wo + 1) * cout] = w_np[ky, kx]
    return band


def init_layer_params(key, cin, ch, gb, W):
    assert gb == ch, "SequenceGRU channel count must match the cell hidden size"
    ks = jax.random.split(key, 6)
    # ConvGRUCell gates: orthogonal weights, zero biases (OIHW)
    wz = _orthogonal(ks[0], (ch, cin + ch, 3, 3))
    wr = _orthogonal(ks[1], (ch, cin + ch, 3, 3))
    wo = _orthogonal(ks[2], (ch, cin + ch, 3, 3))
    # SequenceGRU conv: uniform init + spectral norm, uniform bias
    fan_in = gb * 9
    bound = 1.0 / math.sqrt(fan_in)
    wseq = jax.random.uniform(ks[3], (gb, gb, 3, 3), jnp.float32, -bound, bound)
    wseq = _spectral_norm(ks[4], wseq)
    bseq = jax.random.uniform(ks[5], (gb,), jnp.float32, -bound, bound)

    def hwio(w):  # OIHW -> HWIO
        return jnp.transpose(w, (2, 3, 1, 0)).astype(jnp.float32)

    wz_h, wr_h, wo_h, wsq_h = hwio(wz), hwio(wr), hwio(wo), hwio(wseq)

    def band(w):
        return _make_banded(w, W)

    # Gate-fused banded weights (fusion along the output / N dimension).
    # NOTE(v5e): the x-side K=W*cin may half-fill the MXU depth for small cin;
    # K-fusing [x, h] would fix that but costs an XLU lane concat -- measure first.
    wx = np.concatenate([band(wz_h[:, :, :cin, :]),
                         band(wr_h[:, :, :cin, :]),
                         band(wo_h[:, :, :cin, :])], axis=2)        # (3, W*cin, 3*W*ch)
    whzr = np.concatenate([band(wz_h[:, :, cin:, :]),
                           band(wr_h[:, :, cin:, :])], axis=2)       # (3, W*ch, 2*W*ch)
    who = band(wo_h[:, :, cin:, :])                                  # (3, W*ch, W*ch)
    wsq = band(wsq_h)                                                # (3, W*ch, W*ch)

    bz = np.zeros((ch,), np.float32)   # init.constant_(bias, 0.0)
    br = np.zeros((ch,), np.float32)
    bo = np.zeros((ch,), np.float32)
    bsq = np.asarray(bseq, np.float32)

    p = {
        'wx': jnp.asarray(wx, jnp.bfloat16),
        'whzr': jnp.asarray(whzr, jnp.bfloat16),
        'who': jnp.asarray(who, jnp.bfloat16),
        'wsq': jnp.asarray(wsq, jnp.bfloat16),
        'bzr': jnp.asarray(np.concatenate([np.tile(bz, W), np.tile(br, W)])[None],
                           jnp.float32),
        'bo': jnp.asarray(np.tile(bo, W)[None], jnp.float32),
        'bsq': jnp.asarray(np.tile(bsq, W)[None], jnp.float32),
        'ch': ch,
        '_ref': dict(wz=wz_h, wr=wr_h, wo=wo_h, wseq=wsq_h, bseq=bseq),
    }
    return p


# ----------------------------------------------------------------------------
# Pure-JAX reference (float32, HIGHEST precision) for the correctness check.
# ----------------------------------------------------------------------------
def _conv_nhwc(x, w_hwio):
    return jax.lax.conv_general_dilated(
        x, w_hwio, window_strides=(1, 1), padding='SAME',
        dimension_numbers=('NHWC', 'HWIO', 'NHWC'),
        precision=jax.lax.Precision.HIGHEST)


def reference_forward(x, hidden, params):
    cur = jnp.transpose(x, (0, 1, 3, 4, 2))
    for i, p in enumerate(params):
        r = p['_ref']
        h = jnp.transpose(hidden[i], (0, 2, 3, 1))
        outs = []
        for t in range(cur.shape[1]):
            xt = cur[:, t]
            comb = jnp.concatenate([xt, h], axis=-1)
            upd = jax.nn.sigmoid(_conv_nhwc(comb, r['wz']))
            rst = jax.nn.sigmoid(_conv_nhwc(comb, r['wr']))
            comb2 = jnp.concatenate([xt, h * rst], axis=-1)
            oi = jnp.tanh(_conv_nhwc(comb2, r['wo']))
            new = h * (1.0 - upd) + oi * upd
            seq = _conv_nhwc(new, r['wseq']) + r['bseq']
            outs.append(seq)
        cur = jnp.stack(outs, axis=1)
    return jnp.transpose(cur, (0, 1, 4, 2, 3))


# ----------------------------------------------------------------------------
if __name__ == "__main__":
    key = jax.random.PRNGKey(0)
    B, T, H, W = 2, 3, 16, 16
    n_layers = 2
    input_dims = [4, 8]          # ConvGRU(input_dim=list) -> self.input_dim[i]
    hidden_sizes = [8, 8]
    gb_hidden_size = [8, 8]

    k_x, k_h, k_p = jax.random.split(key, 3)
    x = jax.random.normal(k_x, (B, T, input_dims[0], H, W), jnp.float32)
    hidden = [jax.random.normal(jax.random.fold_in(k_h, i),
                                (B, hidden_sizes[i], H, W), jnp.float32)
              for i in range(n_layers)]
    params = [init_layer_params(jax.random.fold_in(k_p, i),
                                input_dims[i], hidden_sizes[i],
                                gb_hidden_size[i], W)
              for i in range(n_layers)]

    layer_output_list, last_state_list = convgru_forward(x, hidden, params)
    out = jax.block_until_ready(layer_output_list[0])

    ref = jax.block_until_ready(reference_forward(x, hidden, params))
    err = float(jnp.max(jnp.abs(out - ref)))
    # Tolerance dominated by bf16 rounding of matmul operands (outputs are O(1));
    # the bf16 inter-layer / final stores add only ~2^-9 relative error on top.
    if not (err < 5e-2):
        raise AssertionError(f"Pallas ConvGRU mismatch vs reference: max|diff|={err}")

    print("KERNEL_OK")
</pallas_src>

<mosaic_0001>
module attributes {stable_mosaic.version = 11 : i64} {
  func.func @convgru_cell_kernel(%arg0: i32, %arg1: memref<1x3x16x64xbf16, #tpu.memory_space<vmem>>, %arg2: memref<1x16x128xf32, #tpu.memory_space<vmem>>, %arg3: memref<3x64x384xbf16, #tpu.memory_space<vmem>>, %arg4: memref<3x128x256xbf16, #tpu.memory_space<vmem>>, %arg5: memref<3x128x128xbf16, #tpu.memory_space<vmem>>, %arg6: memref<3x128x128xbf16, #tpu.memory_space<vmem>>, %arg7: memref<1x256xf32, #tpu.memory_space<vmem>>, %arg8: memref<1x128xf32, #tpu.memory_space<vmem>>, %arg9: memref<1x128xf32, #tpu.memory_space<vmem>>, %arg10: memref<1x48x128xbf16, #tpu.memory_space<vmem>>, %arg11: memref<3x48x64xbf16, #tpu.memory_space<vmem>>, %arg12: memref<1x48x128xbf16, #tpu.memory_space<vmem>>, %arg13: memref<3x48x128xbf16, #tpu.memory_space<vmem>>) attributes {dimension_semantics = [#tpu.dimension_semantics<parallel>], iteration_bounds = array<i64: 2>, scalar_prefetch = 0 : i64, scratch_operands = 3 : i64, tpu.core_type = #tpu.core_type<tc>, window_params = [{transform_indices = @transform_0, window_bounds = array<i64: 1, 3, 16, 64>}, {transform_indices = @transform_1, window_bounds = array<i64: 1, 16, 128>}, {pipeline_mode = #tpu.pipeline_mode<synchronous>, transform_indices = @transform_2, window_bounds = array<i64: 3, 64, 384>}, {pipeline_mode = #tpu.pipeline_mode<synchronous>, transform_indices = @transform_3, window_bounds = array<i64: 3, 128, 256>}, {pipeline_mode = #tpu.pipeline_mode<synchronous>, transform_indices = @transform_4, window_bounds = array<i64: 3, 128, 128>}, {pipeline_mode = #tpu.pipeline_mode<synchronous>, transform_indices = @transform_5, window_bounds = array<i64: 3, 128, 128>}, {pipeline_mode = #tpu.pipeline_mode<synchronous>, transform_indices = @transform_6, window_bounds = array<i64: 1, 256>}, {pipeline_mode = #tpu.pipeline_mode<synchronous>, transform_indices = @transform_7, window_bounds = array<i64: 1, 128>}, {pipeline_mode = #tpu.pipeline_mode<synchronous>, transform_indices = @transform_8, window_bounds = array<i64: 1, 128>}, {transform_indices = @transform_9, window_bounds = array<i64: 1, 48, 128>}]} {
    %cst = arith.constant 0.000000e+00 : bf16
    %0 = vector.broadcast %cst : bf16 to vector<3x1x64xbf16>
    %c0 = arith.constant 0 : index
    %c15 = arith.constant 15 : index
    %c0_0 = arith.constant 0 : index
    %1 = vector.load %arg11[%c0, %c15, %c0_0] : memref<3x48x64xbf16, #tpu.memory_space<vmem>>, vector<3x1x64xbf16>
    tpu.vector_store %arg11[%c0, %c15, %c0_0], %0 {strides = array<i32>} : memref<3x48x64xbf16, #tpu.memory_space<vmem>>, vector<3x1x64xbf16>,
    %c0_1 = arith.constant 0 : index
    %c32 = arith.constant 32 : index
    %c0_2 = arith.constant 0 : index
    %2 = vector.load %arg11[%c0_1, %c32, %c0_2] : memref<3x48x64xbf16, #tpu.memory_space<vmem>>, vector<3x1x64xbf16>
    tpu.vector_store %arg11[%c0_1, %c32, %c0_2], %0 {strides = array<i32>} : memref<3x48x64xbf16, #tpu.memory_space<vmem>>, vector<3x1x64xbf16>,
    %cst_3 = arith.constant 0.000000e+00 : bf16
    %3 = vector.broadcast %cst_3 : bf16 to vector<1x1x128xbf16>
    %c0_4 = arith.constant 0 : index
    %c15_5 = arith.constant 15 : index
    %c0_6 = arith.constant 0 : index
    %4 = vector.load %arg12[%c0_4, %c15_5, %c0_6] : memref<1x48x128xbf16, #tpu.memory_space<vmem>>, vector<1x1x128xbf16>
    tpu.vector_store %arg12[%c0_4, %c15_5, %c0_6], %3 {strides = array<i32>} : memref<1x48x128xbf16, #tpu.memory_space<vmem>>, vector<1x1x128xbf16>,
    %c0_7 = arith.constant 0 : index
    %c32_8 = arith.constant 32 : index
    %c0_9 = arith.constant 0 : index
    %5 = vector.load %arg12[%c0_7, %c32_8, %c0_9] : memref<1x48x128xbf16, #tpu.memory_space<vmem>>, vector<1x1x128xbf16>
    tpu.vector_store %arg12[%c0_7, %c32_8, %c0_9], %3 {strides = array<i32>} : memref<1x48x128xbf16, #tpu.memory_space<vmem>>, vector<1x1x128xbf16>,
    %cst_10 = arith.constant 0.000000e+00 : bf16
    %6 = vector.broadcast %cst_10 : bf16 to vector<3x1x128xbf16>
    %c0_11 = arith.constant 0 : index
    %c15_12 = arith.constant 15 : index
    %c0_13 = arith.constant 0 : index
    %7 = vector.load %arg13[%c0_11, %c15_12, %c0_13] : memref<3x48x128xbf16, #tpu.memory_space<vmem>>, vector<3x1x128xbf16>
    tpu.vector_store %arg13[%c0_11, %c15_12, %c0_13], %6 {strides = array<i32>} : memref<3x48x128xbf16, #tpu.memory_space<vmem>>, vector<3x1x128xbf16>,
    %c0_14 = arith.constant 0 : index
    %c32_15 = arith.constant 32 : index
    %c0_16 = arith.constant 0 : index
    %8 = vector.load %arg13[%c0_14, %c32_15, %c0_16] : memref<3x48x128xbf16, #tpu.memory_space<vmem>>, vector<3x1x128xbf16>
    tpu.vector_store %arg13[%c0_14, %c32_15, %c0_16], %6 {strides = array<i32>} : memref<3x48x128xbf16, #tpu.memory_space<vmem>>, vector<3x1x128xbf16>,
    %c0_17 = arith.constant 0 : index
    %c0_18 = arith.constant 0 : index
    %c0_19 = arith.constant 0 : index
    %c0_20 = arith.constant 0 : index
    %9 = vector.load %arg1[%c0_17, %c0_18, %c0_19, %c0_20] : memref<1x3x16x64xbf16, #tpu.memory_space<vmem>>, vector<1x3x16x64xbf16>
    %c0_21 = arith.constant 0 : index
    %c0_22 = arith.constant 0 : index
    %c0_23 = arith.constant 0 : index
    %10 = vector.load %arg2[%c0_21, %c0_22, %c0_23] : memref<1x16x128xf32, #tpu.memory_space<vmem>>, vector<1x16x128xf32>
    %11 = arith.truncf %10 : vector<1x16x128xf32> to vector<1x16x128xbf16>
    %12 = vector.shape_cast %9 : vector<1x3x16x64xbf16> to vector<3x16x64xbf16>
    %c0_24 = arith.constant 0 : index
    %c16 = arith.constant 16 : index
    %c0_25 = arith.constant 0 : index
    %13 = vector.load %arg11[%c0_24, %c16, %c0_25] : memref<3x48x64xbf16, #tpu.memory_space<vmem>>, vector<3x16x64xbf16>
    tpu.vector_store %arg11[%c0_24, %c16, %c0_25], %12 {strides = array<i32>} : memref<3x48x64xbf16, #tpu.memory_space<vmem>>, vector<3x16x64xbf16>,
    %c0_26 = arith.constant 0 : index
    %c15_27 = arith.constant 15 : index
    %c0_28 = arith.constant 0 : index
    %14 = vector.load %arg11[%c0_26, %c15_27, %c0_28] : memref<3x48x64xbf16, #tpu.memory_space<vmem>>, vector<3x16x64xbf16>
    %15 = vector.shape_cast %14 : vector<3x16x64xbf16> to vector<48x64xbf16>
    %c0_29 = arith.constant 0 : index
    %c0_30 = arith.constant 0 : index
    %c0_31 = arith.constant 0 : index
    %16 = vector.load %arg3[%c0_29, %c0_30, %c0_31] : memref<3x64x384xbf16, #tpu.memory_space<vmem>>, vector<1x64x384xbf16>
    %17 = vector.shape_cast %16 : vector<1x64x384xbf16> to vector<64x384xbf16>
    %cst_32 = arith.constant dense<0.000000e+00> : vector<48x384xf32>
    %18 = tpu.matmul %15, %17, %cst_32 {dimension_numbers = #tpu.dot_dimension_numbers<[1], [0], [0], [1], [0, 0, 1, 1], [], []>} : vector<48x64xbf16>, vector<64x384xbf16>, vector<48x384xf32> -> vector<48x384xf32>
    %c0_33 = arith.constant 0 : index
    %c16_34 = arith.constant 16 : index
    %c0_35 = arith.constant 0 : index
    %19 = vector.load %arg11[%c0_33, %c16_34, %c0_35] : memref<3x48x64xbf16, #tpu.memory_space<vmem>>, vector<3x16x64xbf16>
    %20 = vector.shape_cast %19 : vector<3x16x64xbf16> to vector<48x64xbf16>
    %c1 = arith.constant 1 : index
    %c0_36 = arith.constant 0 : index
    %c0_37 = arith.constant 0 : index
    %21 = vector.load %arg3[%c1, %c0_36, %c0_37] : memref<3x64x384xbf16, #tpu.memory_space<vmem>>, vector<1x64x384xbf16>
    %22 = vector.shape_cast %21 : vector<1x64x384xbf16> to vector<64x384xbf16>
    %cst_38 = arith.constant dense<0.000000e+00> : vector<48x384xf32>
    %23 = tpu.matmul %20, %22, %cst_38 {dimension_numbers = #tpu.dot_dimension_numbers<[1], [0], [0], [1], [0, 0, 1, 1], [], []>} : vector<48x64xbf16>, vector<64x384xbf16>, vector<48x384xf32> -> vector<48x384xf32>
    %24 = arith.addf %18, %23 : vector<48x384xf32>
    %c0_39 = arith.constant 0 : index
    %c17 = arith.constant 17 : index
    %c0_40 = arith.constant 0 : index
    %25 = vector.load %arg11[%c0_39, %c17, %c0_40] : memref<3x48x64xbf16, #tpu.memory_space<vmem>>, vector<3x16x64xbf16>
    %26 = vector.shape_cast %25 : vector<3x16x64xbf16> to vector<48x64xbf16>
    %c2 = arith.constant 2 : index
    %c0_41 = arith.constant 0 : index
    %c0_42 = arith.constant 0 : index
    %27 = vector.load %arg3[%c2, %c0_41, %c0_42] : memref<3x64x384xbf16, #tpu.memory_space<vmem>>, vector<1x64x384xbf16>
    %28 = vector.shape_cast %27 : vector<1x64x384xbf16> to vector<64x384xbf16>
    %cst_43 = arith.constant dense<0.000000e+00> : vector<48x384xf32>
    %29 = tpu.matmul %26, %28, %cst_43 {dimension_numbers = #tpu.dot_dimension_numbers<[1], [0], [0], [1], [0, 0, 1, 1], [], []>} : vector<48x64xbf16>, vector<64x384xbf16>, vector<48x384xf32> -> vector<48x384xf32>
    %30 = arith.addf %24, %29 : vector<48x384xf32>
    %c0_44 = arith.constant 0 : index
    %c16_45 = arith.constant 16 : index
    %c0_46 = arith.constant 0 : index
    %31 = vector.load %arg12[%c0_44, %c16_45, %c0_46] : memref<1x48x128xbf16, #tpu.memory_space<vmem>>, vector<1x16x128xbf16>
    tpu.vector_store %arg12[%c0_44, %c16_45, %c0_46], %11 {strides = array<i32>} : memref<1x48x128xbf16, #tpu.memory_space<vmem>>, vector<1x16x128xbf16>,
    %c0_47 = arith.constant 0 : index
    %c15_48 = arith.constant 15 : index
    %c0_49 = arith.constant 0 : index
    %32 = vector.load %arg12[%c0_47, %c15_48, %c0_49] : memref<1x48x128xbf16, #tpu.memory_space<vmem>>, vector<1x16x128xbf16>
    %33 = vector.shape_cast %32 : vector<1x16x128xbf16> to vector<16x128xbf16>
    %c0_50 = arith.constant 0 : index
    %c0_51 = arith.constant 0 : index
    %c0_52 = arith.constant 0 : index
    %34 = vector.load %arg4[%c0_50, %c0_51, %c0_52] : memref<3x128x256xbf16, #tpu.memory_space<vmem>>, vector<1x128x256xbf16>
    %35 = vector.shape_cast %34 : vector<1x128x256xbf16> to vector<128x256xbf16>
    %cst_53 = arith.constant dense<0.000000e+00> : vector<16x256xf32>
    %36 = tpu.matmul %33, %35, %cst_53 {dimension_numbers = #tpu.dot_dimension_numbers<[1], [0], [0], [1], [0, 0, 1, 1], [], []>} : vector<16x128xbf16>, vector<128x256xbf16>, vector<16x256xf32> -> vector<16x256xf32>
    %c0_54 = arith.constant 0 : index
    %c16_55 = arith.constant 16 : index
    %c0_56 = arith.constant 0 : index
    %37 = vector.load %arg12[%c0_54, %c16_55, %c0_56] : memref<1x48x128xbf16, #tpu.memory_space<vmem>>, vector<1x16x128xbf16>
    %38 = vector.shape_cast %37 : vector<1x16x128xbf16> to vector<16x128xbf16>
    %c1_57 = arith.constant 1 : index
    %c0_58 = arith.constant 0 : index
    %c0_59 = arith.constant 0 : index
    %39 = vector.load %arg4[%c1_57, %c0_58, %c0_59] : memref<3x128x256xbf16, #tpu.memory_space<vmem>>, vector<1x128x256xbf16>
    %40 = vector.shape_cast %39 : vector<1x128x256xbf16> to vector<128x256xbf16>
    %cst_60 = arith.constant dense<0.000000e+00> : vector<16x256xf32>
    %41 = tpu.matmul %38, %40, %cst_60 {dimension_numbers = #tpu.dot_dimension_numbers<[1], [0], [0], [1], [0, 0, 1, 1], [], []>} : vector<16x128xbf16>, vector<128x256xbf16>, vector<16x256xf32> -> vector<16x256xf32>
    %42 = arith.addf %36, %41 : vector<16x256xf32>
    %c0_61 = arith.constant 0 : index
    %c17_62 = arith.constant 17 : index
    %c0_63 = arith.constant 0 : index
    %43 = vector.load %arg12[%c0_61, %c17_62, %c0_63] : memref<1x48x128xbf16, #tpu.memory_space<vmem>>, vector<1x16x128xbf16>
    %44 = vector.shape_cast %43 : vector<1x16x128xbf16> to vector<16x128xbf16>
    %c2_64 = arith.constant 2 : index
    %c0_65 = arith.constant 0 : index
    %c0_66 = arith.constant 0 : index
    %45 = vector.load %arg4[%c2_64, %c0_65, %c0_66] : memref<3x128x256xbf16, #tpu.memory_space<vmem>>, vector<1x128x256xbf16>
    %46 = vector.shape_cast %45 : vector<1x128x256xbf16> to vector<128x256xbf16>
    %cst_67 = arith.constant dense<0.000000e+00> : vector<16x256xf32>
    %47 = tpu.matmul %44, %46, %cst_67 {dimension_numbers = #tpu.dot_dimension_numbers<[1], [0], [0], [1], [0, 0, 1, 1], [], []>} : vector<16x128xbf16>, vector<128x256xbf16>, vector<16x256xf32> -> vector<16x256xf32>
    %48 = arith.addf %42, %47 : vector<16x256xf32>
    %49 = vector.shape_cast %48 : vector<16x256xf32> to vector<1x1x16x256xf32>
    %50 = vector.shape_cast %49 : vector<1x1x16x256xf32> to vector<1x1x16x256xf32>
    %51 = vector.broadcast %50 : vector<1x1x16x256xf32> to vector<1x3x16x256xf32>
    %52 = vector.shape_cast %51 : vector<1x3x16x256xf32> to vector<48x256xf32>
    %53 = vector.extract_strided_slice %30 {offsets = [0, 0], sizes = [48, 256], strides = [1, 1]} : vector<48x384xf32> to vector<48x256xf32>
    %54 = arith.addf %53, %52 : vector<48x256xf32>
    %c0_68 = arith.constant 0 : index
    %c0_69 = arith.constant 0 : index
    %55 = vector.load %arg7[%c0_68, %c0_69] : memref<1x256xf32, #tpu.memory_space<vmem>>, vector<1x256xf32>
    %56 = vector.broadcast %55 : vector<1x256xf32> to vector<48x256xf32>
    %57 = arith.addf %54, %56 : vector<48x256xf32>
    %58 = arith.negf %57 : vector<48x256xf32>
    %59 = math.exp %58 : vector<48x256xf32>
    %cst_70 = arith.constant 1.000000e+00 : f32
    %60 = vector.broadcast %cst_70 : f32 to vector<48x256xf32>
    %61 = arith.addf %60, %59 : vector<48x256xf32>
    %62 = arith.divf %60, %61 : vector<48x256xf32>
    %63 = vector.extract_strided_slice %62 {offsets = [0, 0], sizes = [48, 128], strides = [1, 1]} : vector<48x256xf32> to vector<48x128xf32>
    %64 = vector.extract_strided_slice %62 {offsets = [0, 128], sizes = [48, 128], strides = [1, 1]} : vector<48x256xf32> to vector<48x128xf32>
    %65 = vector.shape_cast %10 : vector<1x16x128xf32> to vector<1x1x16x128xf32>
    %66 = vector.shape_cast %65 : vector<1x1x16x128xf32> to vector<1x1x16x128xf32>
    %67 = vector.broadcast %66 : vector<1x1x16x128xf32> to vector<1x3x16x128xf32>
    %68 = vector.shape_cast %67 : vector<1x3x16x128xf32> to vector<48x128xf32>
    %69 = arith.mulf %68, %64 : vector<48x128xf32>
    %70 = arith.truncf %69 : vector<48x128xf32> to vector<48x128xbf16>
    %71 = vector.shape_cast %70 : vector<48x128xbf16> to vector<3x16x128xbf16>
    %c0_71 = arith.constant 0 : index
    %c16_72 = arith.constant 16 : index
    %c0_73 = arith.constant 0 : index
    %72 = vector.load %arg13[%c0_71, %c16_72, %c0_73] : memref<3x48x128xbf16, #tpu.memory_space<vmem>>, vector<3x16x128xbf16>
    tpu.vector_store %arg13[%c0_71, %c16_72, %c0_73], %71 {strides = array<i32>} : memref<3x48x128xbf16, #tpu.memory_space<vmem>>, vector<3x16x128xbf16>,
    %c0_74 = arith.constant 0 : index
    %c15_75 = arith.constant 15 : index
    %c0_76 = arith.constant 0 : index
    %73 = vector.load %arg13[%c0_74, %c15_75, %c0_76] : memref<3x48x128xbf16, #tpu.memory_space<vmem>>, vector<3x16x128xbf16>
    %74 = vector.shape_cast %73 : vector<3x16x128xbf16> to vector<48x128xbf16>
    %c0_77 = arith.constant 0 : index
    %c0_78 = arith.constant 0 : index
    %c0_79 = arith.constant 0 : index
    %75 = vector.load %arg5[%c0_77, %c0_78, %c0_79] : memref<3x128x128xbf16, #tpu.memory_space<vmem>>, vector<1x128x128xbf16>
    %76 = vector.shape_cast %75 : vector<1x128x128xbf16> to vector<128x128xbf16>
    %cst_80 = arith.constant dense<0.000000e+00> : vector<48x128xf32>
    %77 = tpu.matmul %74, %76, %cst_80 {dimension_numbers = #tpu.dot_dimension_numbers<[1], [0], [0], [1], [0, 0, 1, 1], [], []>} : vector<48x128xbf16>, vector<128x128xbf16>, vector<48x128xf32> -> vector<48x128xf32>
    %c0_81 = arith.constant 0 : index
    %c16_82 = arith.constant 16 : index
    %c0_83 = arith.constant 0 : index
    %78 = vector.load %arg13[%c0_81, %c16_82, %c0_83] : memref<3x48x128xbf16, #tpu.memory_space<vmem>>, vector<3x16x128xbf16>
    %79 = vector.shape_cast %78 : vector<3x16x128xbf16> to vector<48x128xbf16>
    %c1_84 = arith.constant 1 : index
    %c0_85 = arith.constant 0 : index
    %c0_86 = arith.constant 0 : index
    %80 = vector.load %arg5[%c1_84, %c0_85, %c0_86] : memref<3x128x128xbf16, #tpu.memory_space<vmem>>, vector<1x128x128xbf16>
    %81 = vector.shape_cast %80 : vector<1x128x128xbf16> to vector<128x128xbf16>
    %cst_87 = arith.constant dense<0.000000e+00> : vector<48x128xf32>
    %82 = tpu.matmul %79, %81, %cst_87 {dimension_numbers = #tpu.dot_dimension_numbers<[1], [0], [0], [1], [0, 0, 1, 1], [], []>} : vector<48x128xbf16>, vector<128x128xbf16>, vector<48x128xf32> -> vector<48x128xf32>
    %83 = arith.addf %77, %82 : vector<48x128xf32>
    %c0_88 = arith.constant 0 : index
    %c17_89 = arith.constant 17 : index
    %c0_90 = arith.constant 0 : index
    %84 = vector.load %arg13[%c0_88, %c17_89, %c0_90] : memref<3x48x128xbf16, #tpu.memory_space<vmem>>, vector<3x16x128xbf16>
    %85 = vector.shape_cast %84 : vector<3x16x128xbf16> to vector<48x128xbf16>
    %c2_91 = arith.constant 2 : index
    %c0_92 = arith.constant 0 : index
    %c0_93 = arith.constant 0 : index
    %86 = vector.load %arg5[%c2_91, %c0_92, %c0_93] : memref<3x128x128xbf16, #tpu.memory_space<vmem>>, vector<1x128x128xbf16>
    %87 = vector.shape_cast %86 : vector<1x128x128xbf16> to vector<128x128xbf16>
    %cst_94 = arith.constant dense<0.000000e+00> : vector<48x128xf32>
    %88 = tpu.matmul %85, %87, %cst_94 {dimension_numbers = #tpu.dot_dimension_numbers<[1], [0], [0], [1], [0, 0, 1, 1], [], []>} : vector<48x128xbf16>, vector<128x128xbf16>, vector<48x128xf32> -> vector<48x128xf32>
    %89 = arith.addf %83, %88 : vector<48x128xf32>
    %90 = vector.extract_strided_slice %30 {offsets = [0, 256], sizes = [48, 128], strides = [1, 1]} : vector<48x384xf32> to vector<48x128xf32>
    %91 = arith.addf %90, %89 : vector<48x128xf32>
    %c0_95 = arith.constant 0 : index
    %c0_96 = arith.constant 0 : index
    %92 = vector.load %arg8[%c0_95, %c0_96] : memref<1x128xf32, #tpu.memory_space<vmem>>, vector<1x128xf32>
    %93 = vector.broadcast %92 : vector<1x128xf32> to vector<48x128xf32>
    %94 = arith.addf %91, %93 : vector<48x128xf32>
    %95 = math.tanh %94 : vector<48x128xf32>
    %cst_97 = arith.constant 1.000000e+00 : f32
    %96 = vector.broadcast %cst_97 : f32 to vector<48x128xf32>
    %97 = arith.subf %96, %63 : vector<48x128xf32>
    %98 = arith.mulf %68, %97 : vector<48x128xf32>
    %99 = arith.mulf %95, %63 : vector<48x128xf32>
    %100 = arith.addf %98, %99 : vector<48x128xf32>
    %101 = arith.truncf %100 : vector<48x128xf32> to vector<48x128xbf16>
    %102 = vector.shape_cast %101 : vector<48x128xbf16> to vector<3x16x128xbf16>
    %c0_98 = arith.constant 0 : index
    %c16_99 = arith.constant 16 : index
    %c0_100 = arith.constant 0 : index
    %103 = vector.load %arg13[%c0_98, %c16_99, %c0_100] : memref<3x48x128xbf16, #tpu.memory_space<vmem>>, vector<3x16x128xbf16>
    tpu.vector_store %arg13[%c0_98, %c16_99, %c0_100], %102 {strides = array<i32>} : memref<3x48x128xbf16, #tpu.memory_space<vmem>>, vector<3x16x128xbf16>,
    %c0_101 = arith.constant 0 : index
    %c15_102 = arith.constant 15 : index
    %c0_103 = arith.constant 0 : index
    %104 = vector.load %arg13[%c0_101, %c15_102, %c0_103] : memref<3x48x128xbf16, #tpu.memory_space<vmem>>, vector<3x16x128xbf16>
    %105 = vector.shape_cast %104 : vector<3x16x128xbf16> to vector<48x128xbf16>
    %c0_104 = arith.constant 0 : index
    %c0_105 = arith.constant 0 : index
    %c0_106 = arith.constant 0 : index
    %106 = vector.load %arg6[%c0_104, %c0_105, %c0_106] : memref<3x128x128xbf16, #tpu.memory_space<vmem>>, vector<1x128x128xbf16>
    %107 = vector.shape_cast %106 : vector<1x128x128xbf16> to vector<128x128xbf16>
    %cst_107 = arith.constant dense<0.000000e+00> : vector<48x128xf32>
    %108 = tpu.matmul %105, %107, %cst_107 {dimension_numbers = #tpu.dot_dimension_numbers<[1], [0], [0], [1], [0, 0, 1, 1], [], []>} : vector<48x128xbf16>, vector<128x128xbf16>, vector<48x128xf32> -> vector<48x128xf32>
    %c0_108 = arith.constant 0 : index
    %c16_109 = arith.constant 16 : index
    %c0_110 = arith.constant 0 : index
    %109 = vector.load %arg13[%c0_108, %c16_109, %c0_110] : memref<3x48x128xbf16, #tpu.memory_space<vmem>>, vector<3x16x128xbf16>
    %110 = vector.shape_cast %109 : vector<3x16x128xbf16> to vector<48x128xbf16>
    %c1_111 = arith.constant 1 : index
    %c0_112 = arith.constant 0 : index
    %c0_113 = arith.constant 0 : index
    %111 = vector.load %arg6[%c1_111, %c0_112, %c0_113] : memref<3x128x128xbf16, #tpu.memory_space<vmem>>, vector<1x128x128xbf16>
    %112 = vector.shape_cast %111 : vector<1x128x128xbf16> to vector<128x128xbf16>
    %cst_114 = arith.constant dense<0.000000e+00> : vector<48x128xf32>
    %113 = tpu.matmul %110, %112, %cst_114 {dimension_numbers = #tpu.dot_dimension_numbers<[1], [0], [0], [1], [0, 0, 1, 1], [], []>} : vector<48x128xbf16>, vector<128x128xbf16>, vector<48x128xf32> -> vector<48x128xf32>
    %114 = arith.addf %108, %113 : vector<48x128xf32>
    %c0_115 = arith.constant 0 : index
    %c17_116 = arith.constant 17 : index
    %c0_117 = arith.constant 0 : index
    %115 = vector.load %arg13[%c0_115, %c17_116, %c0_117] : memref<3x48x128xbf16, #tpu.memory_space<vmem>>, vector<3x16x128xbf16>
    %116 = vector.shape_cast %115 : vector<3x16x128xbf16> to vector<48x128xbf16>
    %c2_118 = arith.constant 2 : index
    %c0_119 = arith.constant 0 : index
    %c0_120 = arith.constant 0 : index
    %117 = vector.load %arg6[%c2_118, %c0_119, %c0_120] : memref<3x128x128xbf16, #tpu.memory_space<vmem>>, vector<1x128x128xbf16>
    %118 = vector.shape_cast %117 : vector<1x128x128xbf16> to vector<128x128xbf16>
    %cst_121 = arith.constant dense<0.000000e+00> : vector<48x128xf32>
    %119 = tpu.matmul %116, %118, %cst_121 {dimension_numbers = #tpu.dot_dimension_numbers<[1], [0], [0], [1], [0, 0, 1, 1], [], []>} : vector<48x128xbf16>, vector<128x128xbf16>, vector<48x128xf32> -> vector<48x128xf32>
    %120 = arith.addf %114, %119 : vector<48x128xf32>
    %c0_122 = arith.constant 0 : index
    %c0_123 = arith.constant 0 : index
    %121 = vector.load %arg9[%c0_122, %c0_123] : memref<1x128xf32, #tpu.memory_space<vmem>>, vector<1x128xf32>
    %122 = vector.broadcast %121 : vector<1x128xf32> to vector<48x128xf32>
    %123 = arith.addf %120, %122 : vector<48x128xf32>
    %124 = vector.shape_cast %123 : vector<48x128xf32> to vector<1x48x128xf32>
    %125 = arith.truncf %124 : vector<1x48x128xf32> to vector<1x48x128xbf16>
    %c0_124 = arith.constant 0 : index
    %c0_125 = arith.constant 0 : index
    %c0_126 = arith.constant 0 : index
    %126 = vector.load %arg10[%c0_124, %c0_125, %c0_126] : memref<1x48x128xbf16, #tpu.memory_space<vmem>>, vector<1x48x128xbf16>
    tpu.vector_store %arg10[%c0_124, %c0_125, %c0_126], %125 {strides = array<i32>} : memref<1x48x128xbf16, #tpu.memory_space<vmem>>, vector<1x48x128xbf16>,
    return
  }
  func.func @transform_0(%arg0: i32) -> (i32, i32, i32, i32) {
    %c0_i32 = arith.constant 0 : i32
    %c0_i32_0 = arith.constant 0 : i32
    %c0_i32_1 = arith.constant 0 : i32
    %c0_i32_2 = arith.constant 0 : i32
    return %arg0, %c0_i32, %c0_i32_0, %c0_i32_1 : i32, i32, i32, i32
  }
  func.func @transform_1(%arg0: i32) -> (i32, i32, i32) {
    %c0_i32 = arith.constant 0 : i32
    %c0_i32_0 = arith.constant 0 : i32
    %c0_i32_1 = arith.constant 0 : i32
    return %arg0, %c0_i32, %c0_i32_0 : i32, i32, i32
  }
  func.func @transform_2(%arg0: i32) -> (i32, i32, i32) {
    %c0_i32 = arith.constant 0 : i32
    %c0_i32_0 = arith.constant 0 : i32
    %c0_i32_1 = arith.constant 0 : i32
    %c0_i32_2 = arith.constant 0 : i32
    return %c0_i32, %c0_i32_0, %c0_i32_1 : i32, i32, i32
  }
  func.func @transform_3(%arg0: i32) -> (i32, i32, i32) {
    %c0_i32 = arith.constant 0 : i32
    %c0_i32_0 = arith.constant 0 : i32
    %c0_i32_1 = arith.constant 0 : i32
    %c0_i32_2 = arith.constant 0 : i32
    return %c0_i32, %c0_i32_0, %c0_i32_1 : i32, i32, i32
  }
  func.func @transform_4(%arg0: i32) -> (i32, i32, i32) {
    %c0_i32 = arith.constant 0 : i32
    %c0_i32_0 = arith.constant 0 : i32
    %c0_i32_1 = arith.constant 0 : i32
    %c0_i32_2 = arith.constant 0 : i32
    return %c0_i32, %c0_i32_0, %c0_i32_1 : i32, i32, i32
  }
  func.func @transform_5(%arg0: i32) -> (i32, i32, i32) {
    %c0_i32 = arith.constant 0 : i32
    %c0_i32_0 = arith.constant 0 : i32
    %c0_i32_1 = arith.constant 0 : i32
    %c0_i32_2 = arith.constant 0 : i32
    return %c0_i32, %c0_i32_0, %c0_i32_1 : i32, i32, i32
  }
  func.func @transform_6(%arg0: i32) -> (i32, i32) {
    %c0_i32 = arith.constant 0 : i32
    %c0_i32_0 = arith.constant 0 : i32
    %c0_i32_1 = arith.constant 0 : i32
    return %c0_i32, %c0_i32_0 : i32, i32
  }
  func.func @transform_7(%arg0: i32) -> (i32, i32) {
    %c0_i32 = arith.constant 0 : i32
    %c0_i32_0 = arith.constant 0 : i32
    %c0_i32_1 = arith.constant 0 : i32
    return %c0_i32, %c0_i32_0 : i32, i32
  }
  func.func @transform_8(%arg0: i32) -> (i32, i32) {
    %c0_i32 = arith.constant 0 : i32
    %c0_i32_0 = arith.constant 0 : i32
    %c0_i32_1 = arith.constant 0 : i32
    return %c0_i32, %c0_i32_0 : i32, i32
  }
  func.func @transform_9(%arg0: i32) -> (i32, i32, i32) {
    %c0_i32 = arith.constant 0 : i32
    %c0_i32_0 = arith.constant 0 : i32
    %c0_i32_1 = arith.constant 0 : i32
    return %arg0, %c0_i32, %c0_i32_0 : i32, i32, i32
  }
}

</mosaic_0001>

<llo_original>
// kernel: tpu_custom_call.1
$region0: #{tpu_custom_call.1}
  #allocation0 [shape = 'u32[]', space=smem, size = 0x4, offset = 0x4, fixed_abs, tag = 'smem constant byte address 0x4 - core index']
  #allocation1 [shape = 'u32[72,128]{1,0:T(1,128)}', space=vmem, size = 0x9000, scoped, tag = 'internal scratch']
  #allocation2 [shape = 'bf16[3,48,64]{2,1,0:T(8,128)(2,1)}', space=vmem, size = 0x9000, scoped, tag = 'scratch operand']
  #allocation3 [shape = 'bf16[1,48,128]{2,1,0:T(8,128)(2,1)}', space=vmem, size = 0x3000, scoped, tag = 'scratch operand']
  #allocation4 [shape = 'bf16[3,48,128]{2,1,0:T(8,128)(2,1)}', space=vmem, size = 0x9000, scoped, tag = 'scratch operand']
  %s0 = inlined_call_operand.hbm [shape: bf16[2,3,16,64], index: 0, kind: input, shape index: {}]
  %s1 = inlined_call_operand.hbm [shape: f32[2,16,128], index: 1, kind: input, shape index: {}]
  %s2 = inlined_call_operand.hbm [shape: bf16[3,64,384], index: 2, kind: input, shape index: {}]
  %s3 = inlined_call_operand.hbm [shape: bf16[3,128,256], index: 3, kind: input, shape index: {}]
  %s4 = inlined_call_operand.hbm [shape: bf16[3,128,128], index: 4, kind: input, shape index: {}]
  %s5 = inlined_call_operand.hbm [shape: bf16[3,128,128], index: 5, kind: input, shape index: {}]
  %s6 = inlined_call_operand.vmem [shape: f32[1,256], index: 6, kind: input, shape index: {}]
  %s7 = inlined_call_operand.vmem [shape: f32[1,128], index: 7, kind: input, shape index: {}]
  %s8 = inlined_call_operand.vmem [shape: f32[1,128], index: 8, kind: input, shape index: {}]
  %s9 = inlined_call_operand.hbm [shape: bf16[2,48,128], index: 9, kind: output, shape index: {}]
  %s10 = sld [smem:[#allocation0]]
  $region93: #{tpu_custom_call.1} parent=0
    _
  %s12 = ssub.s32 1, %s10
  %s13 = scalar_select 0, %s12, %s10
  $region1: #{tpu_custom_call.1} parent=0
    #allocation5 [shape = 'u8[24576]{0}', space=vmem, size = 0x6000, scoped, tag = 'input window, operand 0']
    #allocation6 [shape = 's32[2]{0}', space=sflag, size = 0x8, scoped, tag = 'scoped memory for tpu_custom_call.1']
    #allocation7 [shape = 's32[2]{0}', space=sflag, size = 0x8, scoped, tag = 'scoped memory for tpu_custom_call.1']
    #allocation8 [shape = 'u8[16384]{0}', space=vmem, size = 0x4000, scoped, tag = 'input window, operand 1']
    #allocation9 [shape = 's32[2]{0}', space=sflag, size = 0x8, scoped, tag = 'scoped memory for tpu_custom_call.1']
    #allocation10 [shape = 'u8[147456]{0}', space=vmem, size = 0x24000, scoped, tag = 'input window, operand 2, single buffered']
    #allocation11 [shape = 'u8[196608]{0}', space=vmem, size = 0x30000, scoped, tag = 'input window, operand 3, single buffered']
    #allocation12 [shape = 's32[1]{0}', space=sflag, size = 0x4, scoped, tag = 'scoped memory for tpu_custom_call.1']
    #allocation13 [shape = 'u8[98304]{0}', space=vmem, size = 0x18000, scoped, tag = 'input window, operand 4, single buffered']
    #allocation14 [shape = 'u8[98304]{0}', space=vmem, size = 0x18000, scoped, tag = 'input window, operand 5, single buffered']
    #allocation15 [shape = 's32[1]{0}', space=sflag, size = 0x4, scoped, tag = 'scoped memory for tpu_custom_call.1']
    #allocation16 [shape = 'u8[24576]{0}', space=vmem, size = 0x6000, scoped, tag = 'output window, operand 0']
    %14 = vsyncpa [#allocation6], 0
    %s15 = scalar_lea.sflag [#allocation6], 1
    %16 = vsyncpa %s15, 0
    %17 = vsyncpa [#allocation9], 0
    %s18 = scalar_lea.sflag [#allocation9], 1
    %19 = vsyncpa %s18, 0
    %20 = vsyncpa [#allocation12], 0
    %21 = vsyncpa [#allocation15], 0
    %22 = vsyncpa [#allocation7], 0
    %s23 = scalar_lea.sflag [#allocation7], 1
    %24 = vsyncpa %s23, 0
    loop: start=0, step=1, limit=4
    $region2: #{tpu_custom_call.1} parent=1 // loop_pre_header
      _
    $region3: #{tpu_custom_call.1} parent=1 // loop_header
      %s26 = sphi 0, %s30
      %p27 = scmp.ge.s32.totalorder %s26, 4
      %s36 = sphi 0, %s38
      %s39 = sphi 0, %s36
      %s40 = sphi 0, %s39
      %s56 = sphi 0, %s40
      %s62 = sphi 0, %s64
      %s65 = sphi 0, %s62
      %s66 = sphi 0, %s65
      %s82 = sphi 0, %s66
      %s86 = sphi 0, %s86
      %s88 = sphi 0, %s86
      %s89 = sphi 0, %s88
      %s103 = sphi 0, %s89
      %s107 = sphi 0, %s107
      %s109 = sphi 0, %s107
      %s110 = sphi 0, %s109
      %s124 = sphi 0, %s110
      %s128 = sphi 0, %s128
      %s130 = sphi 0, %s128
      %s131 = sphi 0, %s130
      %s145 = sphi 0, %s131
      %s149 = sphi 0, %s149
      %s151 = sphi 0, %s149
      %s152 = sphi 0, %s151
      %s166 = sphi 0, %s152
      %s170 = sphi 0, %s170
      %s172 = sphi 0, %s170
      %s173 = sphi 0, %s172
      %s187 = sphi 0, %s173
      %s191 = sphi 0, %s191
      %s193 = sphi 0, %s191
      %s194 = sphi 0, %s193
      %s208 = sphi 0, %s194
      %s212 = sphi 0, %s212
      %s214 = sphi 0, %s212
      %s215 = sphi 0, %s214
      %s229 = sphi 0, %s215
      %s235 = sphi 0, %s237
      %s238 = sphi 0, %s235
      %s239 = sphi 0, %s238
      %s255 = sphi 0, %s239
    $region4: #{tpu_custom_call.1} parent=1 // loop_header_branch
      %29 = sbr.rel (%p27) target = $region8
    $region5: #{tpu_custom_call.1} parent=1 // loop_body
      %s31 = ssub.s32 %s26, 1
      %s32 = ssub.s32 %s26, 2
      %s33 = sadd.s32 %s26, 1
      %s34 = ssub.s32 %s26, %s33
      %p35 = scmp.eq.s32.totalorder %s34, 0
      %s37 = sadd.s32 %s36, 1
      %s38 = scalar_select %p35, %s36, %s37
      %p41 = pneg %p35
      %p42 = scmp.eq.s32.totalorder %s26, 1
      %p43 = por %p41, %p42
      %p44 = scmp.ne.s32.totalorder %s36, %s39
      %p45 = scmp.eq.s32.totalorder %s26, 0
      %p46 = por %p44, %p45
      %p47 = scmp.ne.s32.totalorder %s36, %s39
      %p48 = scmp.eq.s32.totalorder %s31, 1
      %p49 = por %p47, %p48
      %p50 = scmp.ne.s32.totalorder %s39, %s40
      %p51 = scmp.eq.s32.totalorder %s31, 0
      %p52 = por %p50, %p51
      %p53 = scmp.ne.s32.totalorder %s39, %s40
      %p54 = scmp.eq.s32.totalorder %s32, 1
      %p55 = por %p53, %p54
      %p57 = scmp.ne.s32.totalorder %s40, %s56
      %p58 = scmp.eq.s32.totalorder %s32, 0
      %p59 = por %p57, %p58
      %s60 = ssub.s32 %s26, %s33
      %p61 = scmp.eq.s32.totalorder %s60, 0
      %s63 = sadd.s32 %s62, 1
      %s64 = scalar_select %p61, %s62, %s63
      %p67 = pneg %p61
      %p68 = scmp.eq.s32.totalorder %s26, 1
      %p69 = por %p67, %p68
      %p70 = scmp.ne.s32.totalorder %s62, %s65
      %p71 = scmp.eq.s32.totalorder %s26, 0
      %p72 = por %p70, %p71
      %p73 = scmp.ne.s32.totalorder %s62, %s65
      %p74 = scmp.eq.s32.totalorder %s31, 1
      %p75 = por %p73, %p74
      %p76 = scmp.ne.s32.totalorder %s65, %s66
      %p77 = scmp.eq.s32.totalorder %s31, 0
      %p78 = por %p76, %p77
      %p79 = scmp.ne.s32.totalorder %s65, %s66
      %p80 = scmp.eq.s32.totalorder %s32, 1
      %p81 = por %p79, %p80
      %p83 = scmp.ne.s32.totalorder %s66, %s82
      %p84 = scmp.eq.s32.totalorder %s32, 0
      %p85 = por %p83, %p84
      %s87 = sadd.s32 %s86, 1
      %p90 = scmp.eq.s32.totalorder %s26, 1
      %p91 = scmp.ne.s32.totalorder %s86, %s88
      %p92 = scmp.eq.s32.totalorder %s26, 0
      %p93 = por %p91, %p92
      %p94 = scmp.ne.s32.totalorder %s86, %s88
      %p95 = scmp.eq.s32.totalorder %s31, 1
      %p96 = por %p94, %p95
      %p97 = scmp.ne.s32.totalorder %s88, %s89
      %p98 = scmp.eq.s32.totalorder %s31, 0
      %p99 = por %p97, %p98
      %p100 = scmp.ne.s32.totalorder %s88, %s89
      %p101 = scmp.eq.s32.totalorder %s32, 1
      %p102 = por %p100, %p101
      %p104 = scmp.ne.s32.totalorder %s89, %s103
      %p105 = scmp.eq.s32.totalorder %s32, 0
      %p106 = por %p104, %p105
      %s108 = sadd.s32 %s107, 1
      %p111 = scmp.eq.s32.totalorder %s26, 1
      %p112 = scmp.ne.s32.totalorder %s107, %s109
      %p113 = scmp.eq.s32.totalorder %s26, 0
      %p114 = por %p112, %p113
      %p115 = scmp.ne.s32.totalorder %s107, %s109
      %p116 = scmp.eq.s32.totalorder %s31, 1
      %p117 = por %p115, %p116
      %p118 = scmp.ne.s32.totalorder %s109, %s110
      %p119 = scmp.eq.s32.totalorder %s31, 0
      %p120 = por %p118, %p119
      %p121 = scmp.ne.s32.totalorder %s109, %s110
      %p122 = scmp.eq.s32.totalorder %s32, 1
      %p123 = por %p121, %p122
      %p125 = scmp.ne.s32.totalorder %s110, %s124
      %p126 = scmp.eq.s32.totalorder %s32, 0
      %p127 = por %p125, %p126
      %s129 = sadd.s32 %s128, 1
      %p132 = scmp.eq.s32.totalorder %s26, 1
      %p133 = scmp.ne.s32.totalorder %s128, %s130
      %p134 = scmp.eq.s32.totalorder %s26, 0
      %p135 = por %p133, %p134
      %p136 = scmp.ne.s32.totalorder %s128, %s130
      %p137 = scmp.eq.s32.totalorder %s31, 1
      %p138 = por %p136, %p137
      %p139 = scmp.ne.s32.totalorder %s130, %s131
      %p140 = scmp.eq.s32.totalorder %s31, 0
      %p141 = por %p139, %p140
      %p142 = scmp.ne.s32.totalorder %s130, %s131
      %p143 = scmp.eq.s32.totalorder %s32, 1
      %p144 = por %p142, %p143
      %p146 = scmp.ne.s32.totalorder %s131, %s145
      %p147 = scmp.eq.s32.totalorder %s32, 0
      %p148 = por %p146, %p147
      %s150 = sadd.s32 %s149, 1
      %p153 = scmp.eq.s32.totalorder %s26, 1
      %p154 = scmp.ne.s32.totalorder %s149, %s151
      %p155 = scmp.eq.s32.totalorder %s26, 0
      %p156 = por %p154, %p155
      %p157 = scmp.ne.s32.totalorder %s149, %s151
      %p158 = scmp.eq.s32.totalorder %s31, 1
      %p159 = por %p157, %p158
      %p160 = scmp.ne.s32.totalorder %s151, %s152
      %p161 = scmp.eq.s32.totalorder %s31, 0
      %p162 = por %p160, %p161
      %p163 = scmp.ne.s32.totalorder %s151, %s152
      %p164 = scmp.eq.s32.totalorder %s32, 1
      %p165 = por %p163, %p164
      %p167 = scmp.ne.s32.totalorder %s152, %s166
      %p168 = scmp.eq.s32.totalorder %s32, 0
      %p169 = por %p167, %p168
      %s171 = sadd.s32 %s170, 1
      %p174 = scmp.eq.s32.totalorder %s26, 1
      %p175 = scmp.ne.s32.totalorder %s170, %s172
      %p176 = scmp.eq.s32.totalorder %s26, 0
      %p177 = por %p175, %p176
      %p178 = scmp.ne.s32.totalorder %s170, %s172
      %p179 = scmp.eq.s32.totalorder %s31, 1
      %p180 = por %p178, %p179
      %p181 = scmp.ne.s32.totalorder %s172, %s173
      %p182 = scmp.eq.s32.totalorder %s31, 0
      %p183 = por %p181, %p182
      %p184 = scmp.ne.s32.totalorder %s172, %s173
      %p185 = scmp.eq.s32.totalorder %s32, 1
      %p186 = por %p184, %p185
      %p188 = scmp.ne.s32.totalorder %s173, %s187
      %p189 = scmp.eq.s32.totalorder %s32, 0
      %p190 = por %p188, %p189
      %s192 = sadd.s32 %s191, 1
      %p195 = scmp.eq.s32.totalorder %s26, 1
      %p196 = scmp.ne.s32.totalorder %s191, %s193
      %p197 = scmp.eq.s32.totalorder %s26, 0
      %p198 = por %p196, %p197
      %p199 = scmp.ne.s32.totalorder %s191, %s193
      %p200 = scmp.eq.s32.totalorder %s31, 1
      %p201 = por %p199, %p200
      %p202 = scmp.ne.s32.totalorder %s193, %s194
      %p203 = scmp.eq.s32.totalorder %s31, 0
      %p204 = por %p202, %p203
      %p205 = scmp.ne.s32.totalorder %s193, %s194
      %p206 = scmp.eq.s32.totalorder %s32, 1
      %p207 = por %p205, %p206
      %p209 = scmp.ne.s32.totalorder %s194, %s208
      %p210 = scmp.eq.s32.totalorder %s32, 0
      %p211 = por %p209, %p210
      %s213 = sadd.s32 %s212, 1
      %p216 = scmp.eq.s32.totalorder %s26, 1
      %p217 = scmp.ne.s32.totalorder %s212, %s214
      %p218 = scmp.eq.s32.totalorder %s26, 0
      %p219 = por %p217, %p218
      %p220 = scmp.ne.s32.totalorder %s212, %s214
      %p221 = scmp.eq.s32.totalorder %s31, 1
      %p222 = por %p220, %p221
      %p223 = scmp.ne.s32.totalorder %s214, %s215
      %p224 = scmp.eq.s32.totalorder %s31, 0
      %p225 = por %p223, %p224
      %p226 = scmp.ne.s32.totalorder %s214, %s215
      %p227 = scmp.eq.s32.totalorder %s32, 1
      %p228 = por %p226, %p227
      %p230 = scmp.ne.s32.totalorder %s215, %s229
      %p231 = scmp.eq.s32.totalorder %s32, 0
      %p232 = por %p230, %p231
      %s233 = ssub.s32 %s26, %s33
      %p234 = scmp.eq.s32.totalorder %s233, 0
      %s236 = sadd.s32 %s235, 1
      %s237 = scalar_select %p234, %s235, %s236
      %p240 = pneg %p234
      %p241 = scmp.eq.s32.totalorder %s26, 1
      %p242 = por %p240, %p241
      %p243 = scmp.ne.s32.totalorder %s235, %s238
      %p244 = scmp.eq.s32.totalorder %s26, 0
      %p245 = por %p243, %p244
      %p246 = scmp.ne.s32.totalorder %s235, %s238
      %p247 = scmp.eq.s32.totalorder %s31, 1
      %p248 = por %p246, %p247
      %p249 = scmp.ne.s32.totalorder %s238, %s239
      %p250 = scmp.eq.s32.totalorder %s31, 0
      %p251 = por %p249, %p250
      %p252 = scmp.ne.s32.totalorder %s238, %s239
      %p253 = scmp.eq.s32.totalorder %s32, 1
      %p254 = por %p252, %p253
      %p256 = scmp.ne.s32.totalorder %s239, %s255
      %p257 = scmp.eq.s32.totalorder %s32, 0
      %p258 = por %p256, %p257
      %p259 = scmp.le.s32.totalorder 1, %s26
      %p260 = scmp.lt.s32.totalorder %s26, 3
      %p261 = pnand %p259, %p260
      %p262 = pneg %p261
      // Predicated region
      $region9: #{tpu_custom_call.1} parent=5 // pred_check
        _
      $region10: #{tpu_custom_call.1} parent=5 // pred_check_branch
        %264 = sbr.rel (%p261) target = $region12
      $region11: #{tpu_custom_call.1} parent=5 // pred_region
        %s265 = ssub.s32 %s26, 1
        // Predicated region
        $region13: #{tpu_custom_call.1} parent=11 // pred_check
          %p266 = pneg %p99
        $region14: #{tpu_custom_call.1} parent=11 // pred_check_branch
          %268 = sbr.rel (%p266) target = $region16
        $region15: #{tpu_custom_call.1} parent=11 // pred_region
          %270 = vsyncadd [#allocation9], 0
          %s271 = sshll.u32 %s2, 4
          %s272 = int_to_ptr.hbm [resolvable:$true] %s271
          %s273 = sshll.u32 [#allocation10], 4
          %s274 = int_to_ptr.vmem [resolvable:$true] %s273
          %279 = dma.hbm_to_vmem [thread:$0]  %s272, 4608, %s274, [#allocation9], 192, 192, 12
        $region16: #{tpu_custom_call.1} parent=11 // pred_fallthru
          _
        // Predicated region
        $region17: #{tpu_custom_call.1} parent=11 // pred_check
          %p280 = pneg %p120
        $region18: #{tpu_custom_call.1} parent=11 // pred_check_branch
          %282 = sbr.rel (%p280) target = $region20
        $region19: #{tpu_custom_call.1} parent=11 // pred_region
          %284 = vsyncadd [#allocation12], 0
          %s285 = sshll.u32 %s3, 4
          %s286 = int_to_ptr.hbm [resolvable:$true] %s285
          %s287 = sshll.u32 [#allocation11], 4
          %s288 = int_to_ptr.vmem [resolvable:$true] %s287
          %293 = dma.hbm_to_vmem [thread:$0]  %s286, 6144, %s288, [#allocation12], 128, 128, 8
        $region20: #{tpu_custom_call.1} parent=11 // pred_fallthru
          _
        // Predicated region
        $region21: #{tpu_custom_call.1} parent=11 // pred_check
          %p294 = pneg %p141
        $region22: #{tpu_custom_call.1} parent=11 // pred_check_branch
          %296 = sbr.rel (%p294) target = $region24
        $region23: #{tpu_custom_call.1} parent=11 // pred_region
          %298 = vsyncadd [#allocation12], 0
          %s299 = sshll.u32 %s4, 4
          %s300 = int_to_ptr.hbm [resolvable:$true] %s299
          %s301 = sshll.u32 [#allocation13], 4
          %s302 = int_to_ptr.vmem [resolvable:$true] %s301
          %307 = dma.hbm_to_vmem [thread:$0]  %s300, 3072, %s302, [#allocation12], 64, 64, 4
        $region24: #{tpu_custom_call.1} parent=11 // pred_fallthru
          _
        // Predicated region
        $region25: #{tpu_custom_call.1} parent=11 // pred_check
          %p308 = pneg %p162
        $region26: #{tpu_custom_call.1} parent=11 // pred_check_branch
          %310 = sbr.rel (%p308) target = $region28
        $region27: #{tpu_custom_call.1} parent=11 // pred_region
          %312 = vsyncadd [#allocation15], 0
          %s313 = sshll.u32 %s5, 4
          %s314 = int_to_ptr.hbm [resolvable:$true] %s313
          %s315 = sshll.u32 [#allocation14], 4
          %s316 = int_to_ptr.vmem [resolvable:$true] %s315
          %321 = dma.hbm_to_vmem [thread:$0]  %s314, 3072, %s316, [#allocation15], 64, 64, 4
        $region28: #{tpu_custom_call.1} parent=11 // pred_fallthru
          _
        // Predicated region
        $region29: #{tpu_custom_call.1} parent=11 // pred_check
          %p322 = pneg %p183
        $region30: #{tpu_custom_call.1} parent=11 // pred_check_branch
          %324 = sbr.rel (%p322) target = $region32
        $region31: #{tpu_custom_call.1} parent=11 // pred_region
          _
        $region32: #{tpu_custom_call.1} parent=11 // pred_fallthru
          _
        // Predicated region
        $region33: #{tpu_custom_call.1} parent=11 // pred_check
          %p325 = pneg %p204
        $region34: #{tpu_custom_call.1} parent=11 // pred_check_branch
          %327 = sbr.rel (%p325) target = $region36
        $region35: #{tpu_custom_call.1} parent=11 // pred_region
          _
        $region36: #{tpu_custom_call.1} parent=11 // pred_fallthru
          _
        // Predicated region
        $region37: #{tpu_custom_call.1} parent=11 // pred_check
          %p328 = pneg %p225
        $region38: #{tpu_custom_call.1} parent=11 // pred_check_branch
          %330 = sbr.rel (%p328) target = $region40
        $region39: #{tpu_custom_call.1} parent=11 // pred_region
          _
        $region40: #{tpu_custom_call.1} parent=11 // pred_fallthru
          _
      $region12: #{tpu_custom_call.1} parent=5 // pred_fallthru
        _
      %p331 = scmp.lt.s32.totalorder %s26, 2
      // Predicated region
      $region41: #{tpu_custom_call.1} parent=5 // pred_check
        %p332 = pneg %p331
      $region42: #{tpu_custom_call.1} parent=5 // pred_check_branch
        %334 = sbr.rel (%p332) target = $region44
      $region43: #{tpu_custom_call.1} parent=5 // pred_region
        // Predicated region
        $region45: #{tpu_custom_call.1} parent=43 // pred_check
          %p335 = pneg %p46
        $region46: #{tpu_custom_call.1} parent=43 // pred_check_branch
          %337 = sbr.rel (%p335) target = $region48
        $region47: #{tpu_custom_call.1} parent=43 // pred_region
          %s338 = sand.u32 %s36, 1
          %s339 = scalar_lea.sflag [#allocation6], %s338
          %s340 = sand.u32 %s36, 1
          %s341 = smul.addr %s340, 24
          %s342 = scalar_lea.vmem [#allocation5], %s341
          %344 = vsyncadd %s339, 0
          %s345 = smul.addr %s26, 6
          %s346 = smul.addr %s345, 4
          %s347 = scalar_lea.hbm %s0, %s346
          %s348 = sshll.u32 %s347, 4
          %s349 = int_to_ptr.hbm [resolvable:$true] %s348
          %s350 = sshll.u32 %s342, 4
          %s351 = int_to_ptr.vmem [resolvable:$true] %s350
          %356 = dma.hbm_to_vmem [thread:$0]  %s349, 384, %s351, %s339, 64, 64, 4
        $region48: #{tpu_custom_call.1} parent=43 // pred_fallthru
          _
        // Predicated region
        $region49: #{tpu_custom_call.1} parent=43 // pred_check
          %p357 = pneg %p72
        $region50: #{tpu_custom_call.1} parent=43 // pred_check_branch
          %359 = sbr.rel (%p357) target = $region52
        $region51: #{tpu_custom_call.1} parent=43 // pred_region
          %s360 = sand.u32 %s26, 1
          %s361 = scalar_lea.sflag [#allocation9], %s360
          %s362 = sand.u32 %s62, 1
          %s363 = smul.addr %s362, 16
          %s364 = scalar_lea.vmem [#allocation8], %s363
          %366 = vsyncadd %s361, 0
          %s367 = smul.addr %s26, 2
          %s368 = smul.addr %s367, 8
          %s369 = scalar_lea.hbm %s1, %s368
          %s370 = sshll.u32 %s369, 4
          %s371 = int_to_ptr.hbm [resolvable:$true] %s370
          %s372 = sshll.u32 %s364, 4
          %s373 = int_to_ptr.vmem [resolvable:$true] %s372
          %378 = dma.hbm_to_vmem [thread:$0]  %s371, 256, %s373, %s361, 128, 128, 8
        $region52: #{tpu_custom_call.1} parent=43 // pred_fallthru
          _
      $region44: #{tpu_custom_call.1} parent=5 // pred_fallthru
        _
      %p379 = scmp.le.s32.totalorder 1, %s26
      %p380 = scmp.lt.s32.totalorder %s26, 3
      %p381 = pnand %p379, %p380
      %p382 = pneg %p381
      // Predicated region
      $region53: #{tpu_custom_call.1} parent=5 // pred_check
        _
      $region54: #{tpu_custom_call.1} parent=5 // pred_check_branch
        %384 = sbr.rel (%p381) target = $region56
      $region55: #{tpu_custom_call.1} parent=5 // pred_region
        %s385 = ssub.s32 %s26, 1
        %s386 = sand.u32 %s39, 1
        %s387 = scalar_lea.sflag [#allocation6], %s386
        %s388 = sand.u32 %s39, 1
        %s389 = smul.addr %s388, 24
        %s390 = scalar_lea.vmem [#allocation5], %s389
        // Predicated region
        $region57: #{tpu_custom_call.1} parent=55 // pred_check
          %p391 = pneg %p52
        $region58: #{tpu_custom_call.1} parent=55 // pred_check_branch
          %393 = sbr.rel (%p391) target = $region60
        $region59: #{tpu_custom_call.1} parent=55 // pred_region
          %395 = dma.done %s387, 384
        $region60: #{tpu_custom_call.1} parent=55 // pred_fallthru
          _
        %s396 = sand.u32 %s31, 1
        %s397 = scalar_lea.sflag [#allocation9], %s396
        %s398 = sand.u32 %s65, 1
        %s399 = smul.addr %s398, 16
        %s400 = scalar_lea.vmem [#allocation8], %s399
        // Predicated region
        $region61: #{tpu_custom_call.1} parent=55 // pred_check
          %p401 = pneg %p78
        $region62: #{tpu_custom_call.1} parent=55 // pred_check_branch
          %403 = sbr.rel (%p401) target = $region64
        $region63: #{tpu_custom_call.1} parent=55 // pred_region
          %405 = dma.done %s397, 256
        $region64: #{tpu_custom_call.1} parent=55 // pred_fallthru
          _
        // Predicated region
        $region65: #{tpu_custom_call.1} parent=55 // pred_check
          %p406 = pneg %p99
        $region66: #{tpu_custom_call.1} parent=55 // pred_check_branch
          %408 = sbr.rel (%p406) target = $region68
        $region67: #{tpu_custom_call.1} parent=55 // pred_region
          %410 = dma.done [#allocation9], 4608
        $region68: #{tpu_custom_call.1} parent=55 // pred_fallthru
          _
        // Predicated region
        $region69: #{tpu_custom_call.1} parent=55 // pred_check
          %p411 = pneg %p120
        $region70: #{tpu_custom_call.1} parent=55 // pred_check_branch
          %413 = sbr.rel (%p411) target = $region72
        $region71: #{tpu_custom_call.1} parent=55 // pred_region
          %415 = dma.done [#allocation12], 6144
        $region72: #{tpu_custom_call.1} parent=55 // pred_fallthru
          _
        // Predicated region
        $region73: #{tpu_custom_call.1} parent=55 // pred_check
          %p416 = pneg %p141
        $region74: #{tpu_custom_call.1} parent=55 // pred_check_branch
          %418 = sbr.rel (%p416) target = $region76
        $region75: #{tpu_custom_call.1} parent=55 // pred_region
          %420 = dma.done [#allocation12], 3072
        $region76: #{tpu_custom_call.1} parent=55 // pred_fallthru
          _
        // Predicated region
        $region77: #{tpu_custom_call.1} parent=55 // pred_check
          %p421 = pneg %p162
        $region78: #{tpu_custom_call.1} parent=55 // pred_check_branch
          %423 = sbr.rel (%p421) target = $region80
        $region79: #{tpu_custom_call.1} parent=55 // pred_region
          %425 = dma.done [#allocation15], 3072
        $region80: #{tpu_custom_call.1} parent=55 // pred_fallthru
          _
        %s426 = sand.u32 %s39, 1
        %s427 = scalar_lea.sflag [#allocation6], %s426
        %s428 = sand.u32 %s39, 1
        %s429 = smul.addr %s428, 24
        %s430 = scalar_lea.vmem [#allocation5], %s429
        %p431 = pneg %p52
        %p432 = pneg %p49
        %s433 = sand.u32 %s31, 1
        %s434 = scalar_lea.sflag [#allocation9], %s433
        %s435 = sand.u32 %s65, 1
        %s436 = smul.addr %s435, 16
        %s437 = scalar_lea.vmem [#allocation8], %s436
        %p438 = pneg %p78
        %p439 = pneg %p75
        %p440 = pneg %p99
        %p441 = pneg %p96
        %p442 = pneg %p120
        %p443 = pneg %p117
        %p444 = pneg %p141
        %p445 = pneg %p138
        %p446 = pneg %p162
        %p447 = pneg %p159
        %p448 = pneg %p183
        %p449 = pneg %p180
        %p450 = pneg %p204
        %p451 = pneg %p201
        %p452 = pneg %p225
        %p453 = pneg %p222
        %p454 = pneg %p251
        %p455 = pneg %p248
        %s456 = sand.u32 %s238, 1
        %s457 = scalar_lea.sflag [#allocation7], %s456
        %s458 = sand.u32 %s238, 1
        %s459 = smul.addr %s458, 24
        %s460 = scalar_lea.vmem [#allocation16], %s459
        %vm462 = vcmask 519171
        %vm463 = vsmask.f32 7950
        %vm464 = vmand %vm462, %vm463
        %v465 = vld [vmem:[#allocation2 + $0x4] sm:$0x8]
        %v466 = vsel %vm464, 0, %v465
        %467 = vst [vmem:[#allocation2 + $0x4] sm:$0x8] %v466
        %v468 = vld [vmem:[#allocation2 + $0x1c] sm:$0x8]
        %v469 = vsel %vm464, 0, %v468
        %470 = vst [vmem:[#allocation2 + $0x1c] sm:$0x8] %v469
        %v471 = vld [vmem:[#allocation2 + $0x34] sm:$0x8]
        %v472 = vsel %vm464, 0, %v471
        %473 = vst [vmem:[#allocation2 + $0x34] sm:$0x8] %v472
        %vm474 = vcmask 516096
        %vm475 = vsmask.f32 256
        %vm476 = vmand %vm474, %vm475
        %v477 = vld [vmem:[#allocation2 + $0x10] sm:$0x1]
        %v478 = vsel %vm476, 0, %v477
        %479 = vst [vmem:[#allocation2 + $0x10] sm:$0x1] %v478
        %v480 = vld [vmem:[#allocation2 + $0x28] sm:$0x1]
        %v481 = vsel %vm476, 0, %v480
        %482 = vst [vmem:[#allocation2 + $0x28] sm:$0x1] %v481
        %v483 = vld [vmem:[#allocation2 + $0x40] sm:$0x1]
        %v484 = vsel %vm476, 0, %v483
        %485 = vst [vmem:[#allocation2 + $0x40] sm:$0x1] %v484
        %vm486 = vcmask 1043459
        %vm487 = vmand %vm486, %vm463
        %v488 = vld [vmem:[#allocation3 + $0x4] sm:$0x8]
        %v489 = vsel %vm487, 0, %v488
        %490 = vst [vmem:[#allocation3 + $0x4] sm:$0x8] %v489
        %vm491 = vcmask 1040384
        %vm492 = vmand %vm491, %vm475
        %v493 = vld [vmem:[#allocation3 + $0x10] sm:$0x1]
        %v494 = vsel %vm492, 0, %v493
        %495 = vst [vmem:[#allocation3 + $0x10] sm:$0x1] %v494
        %v496 = vld [vmem:[#allocation4 + $0x4] sm:$0x8]
        %v497 = vsel %vm487, 0, %v496
        %498 = vst [vmem:[#allocation4 + $0x4] sm:$0x8] %v497
        %v499 = vld [vmem:[#allocation4 + $0x1c] sm:$0x8]
        %v500 = vsel %vm487, 0, %v499
        %501 = vst [vmem:[#allocation4 + $0x1c] sm:$0x8] %v500
        %v502 = vld [vmem:[#allocation4 + $0x34] sm:$0x8]
        %v503 = vsel %vm487, 0, %v502
        %504 = vst [vmem:[#allocation4 + $0x34] sm:$0x8] %v503
        %v505 = vld [vmem:[#allocation4 + $0x10] sm:$0x1]
        %v506 = vsel %vm492, 0, %v505
        %507 = vst [vmem:[#allocation4 + $0x10] sm:$0x1] %v506
        %v508 = vld [vmem:[#allocation4 + $0x28] sm:$0x1]
        %v509 = vsel %vm492, 0, %v508
        %510 = vst [vmem:[#allocation4 + $0x28] sm:$0x1] %v509
        %v511 = vld [vmem:[#allocation4 + $0x40] sm:$0x1]
        %v512 = vsel %vm492, 0, %v511
        %513 = vst [vmem:[#allocation4 + $0x40] sm:$0x1] %v512
        %v514 = vld [vmem:[%s390] sm:$0xf]
        %v515 = vld [vmem:[%s390 + $0x4] sm:$0xf]
        %v516 = vld [vmem:[%s390 + $0x8] sm:$0xf]
        %v517 = vld [vmem:[%s390 + $0xc] sm:$0xf]
        %v518 = vld [vmem:[%s390 + $0x10] sm:$0xf]
        %v519 = vld [vmem:[%s390 + $0x14] sm:$0xf]
        %v520 = vld [vmem:[%s400] sm:$0xff]
        %v521 = vld [vmem:[%s400 + $0x8] sm:$0xff]
        %v522 = vpack.c.bf16 %v520, %v520
        %v523 = vpack.c.bf16 %v521, %v521
        %vm524 = vcmask 519168
        %525 = vst.msk [vmem:[#allocation2 + $0x8] sm:$0xf] %vm524, %v514
        %526 = vst.msk [vmem:[#allocation2 + $0xc] sm:$0xf] %vm524, %v515
        %527 = vst.msk [vmem:[#allocation2 + $0x20] sm:$0xf] %vm524, %v516
        %528 = vst.msk [vmem:[#allocation2 + $0x24] sm:$0xf] %vm524, %v517
        %529 = vst.msk [vmem:[#allocation2 + $0x38] sm:$0xf] %vm524, %v518
        %530 = vst.msk [vmem:[#allocation2 + $0x3c] sm:$0xf] %vm524, %v519
        %v531 = vld [vmem:[#allocation2 + $0x4] sm:$0x8]
        %v532 = vld [vmem:[#allocation2 + $0x8] sm:$0xf]
        %v533 = vld [vmem:[#allocation2 + $0xc] sm:$0xf]
        %v534 = vld [vmem:[#allocation2 + $0x1c] sm:$0x8]
        %v535 = vld [vmem:[#allocation2 + $0x20] sm:$0xf]
        %v536 = vld [vmem:[#allocation2 + $0x24] sm:$0xf]
        %v537 = vld [vmem:[#allocation2 + $0x34] sm:$0x8]
        %v538 = vld [vmem:[#allocation2 + $0x38] sm:$0xf]
        %v539 = vld [vmem:[#allocation2 + $0x3c] sm:$0xf]
        %vm540 = vsmask.f32 4368
        %vm541 = vmor %vm475, %vm540
        %v543 = vshrl.u32 %v531, 16
        %v545 = vrot.slane %v543, 7
        %v546 = vrot.slane %v545, 4
        %v548 = vshrl.u32 %v532, 16
        %v550 = vrot.slane %v548, 7
        %v551 = vshll.u32 %v532, 16
        %v553 = vor.u32 %v550, %v551
        %v554 = vsel %vm541, %v546, %v553
        %v555 = vrot.slane %v550, 4
        %v557 = vshrl.u32 %v533, 16
        %v559 = vrot.slane %v557, 7
        %v560 = vshll.u32 %v533, 16
        %v562 = vor.u32 %v559, %v560
        %v563 = vsel %vm541, %v555, %v562
        %v565 = vshrl.u32 %v534, 16
        %v567 = vrot.slane %v565, 7
        %v568 = vrot.slane %v567, 4
        %v570 = vshrl.u32 %v535, 16
        %v572 = vrot.slane %v570, 7
        %v573 = vshll.u32 %v535, 16
        %v575 = vor.u32 %v572, %v573
        %v576 = vsel %vm541, %v568, %v575
        %v577 = vrot.slane %v572, 4
        %v579 = vshrl.u32 %v536, 16
        %v581 = vrot.slane %v579, 7
        %v582 = vshll.u32 %v536, 16
        %v584 = vor.u32 %v581, %v582
        %v585 = vsel %vm541, %v577, %v584
        %v587 = vshrl.u32 %v537, 16
        %v589 = vrot.slane %v587, 7
        %v590 = vrot.slane %v589, 4
        %v592 = vshrl.u32 %v538, 16
        %v594 = vrot.slane %v592, 7
        %v595 = vshll.u32 %v538, 16
        %v597 = vor.u32 %v594, %v595
        %v598 = vsel %vm541, %v590, %v597
        %v599 = vrot.slane %v594, 4
        %v601 = vshrl.u32 %v539, 16
        %v603 = vrot.slane %v601, 7
        %v604 = vshll.u32 %v539, 16
        %v606 = vor.u32 %v603, %v604
        %v607 = vsel %vm541, %v599, %v606
        %v608 = vld [vmem:[#allocation10] sm:$0xff]
        %v609 = vld [vmem:[#allocation10 + $0x8] sm:$0xf]
        %v610 = vld [vmem:[#allocation10 + $0xc] sm:$0xff]
        %v611 = vld [vmem:[#allocation10 + $0x14] sm:$0xf]
        %v612 = vld [vmem:[#allocation10 + $0x18] sm:$0xff]
        %v613 = vld [vmem:[#allocation10 + $0x20] sm:$0xf]
        %v614 = vld [vmem:[#allocation10 + $0x24] sm:$0xff]
        %v615 = vld [vmem:[#allocation10 + $0x2c] sm:$0xf]
        %v616 = vld [vmem:[#allocation10 + $0x30] sm:$0xff]
        %v617 = vld [vmem:[#allocation10 + $0x38] sm:$0xf]
        %v618 = vld [vmem:[#allocation10 + $0x3c] sm:$0xff]
        %v619 = vld [vmem:[#allocation10 + $0x44] sm:$0xf]
        %v620 = vld [vmem:[#allocation10 + $0x48] sm:$0xff]
        %v621 = vld [vmem:[#allocation10 + $0x50] sm:$0xf]
        %v622 = vld [vmem:[#allocation10 + $0x54] sm:$0xff]
        %v623 = vld [vmem:[#allocation10 + $0x5c] sm:$0xf]
        %s624 = scalar_lea.vmem [#allocation10], 96
        %v625 = vld [vmem:[%s624] sm:$0xff]
        %v626 = vld [vmem:[%s624 + $0x8] sm:$0xf]
        %v627 = vld [vmem:[%s624 + $0xc] sm:$0xff]
        %v628 = vld [vmem:[%s624 + $0x14] sm:$0xf]
        %v629 = vld [vmem:[%s624 + $0x18] sm:$0xff]
        %v630 = vld [vmem:[%s624 + $0x20] sm:$0xf]
        %v631 = vld [vmem:[%s624 + $0x24] sm:$0xff]
        %v632 = vld [vmem:[%s624 + $0x2c] sm:$0xf]
        %v633 = vld [vmem:[%s624 + $0x30] sm:$0xff]
        %v634 = vld [vmem:[%s624 + $0x38] sm:$0xf]
        %v635 = vld [vmem:[%s624 + $0x3c] sm:$0xff]
        %v636 = vld [vmem:[%s624 + $0x44] sm:$0xf]
        %v637 = vld [vmem:[%s624 + $0x48] sm:$0xff]
        %v638 = vld [vmem:[%s624 + $0x50] sm:$0xf]
        %v639 = vld [vmem:[%s624 + $0x54] sm:$0xff]
        %v640 = vld [vmem:[%s624 + $0x5c] sm:$0xf]
        %v647 = vunpack.c.l.b16 %v532
        %v648 = vunpack.c.l.b16 %v533
        %v649 = vunpack.c.l.b16 %v535
        %v650 = vunpack.c.l.b16 %v536
        %v651 = vunpack.c.l.b16 %v538
        %v652 = vunpack.c.l.b16 %v539
        %v653 = vpack.c.b16 %v648, %v647
        %v654 = vpack.c.b16 %v650, %v649
        %v655 = vpack.c.b16 %v652, %v651
        %v672 = vunpack.c.l.b16 %v625
        %v673 = vunpack.c.h.b16 %v625
        %v674 = vunpack.c.l.b16 %v626
        %v675 = vunpack.c.l.b16 %v627
        %v676 = vunpack.c.h.b16 %v627
        %v677 = vunpack.c.l.b16 %v628
        %v678 = vunpack.c.l.b16 %v629
        %v679 = vunpack.c.h.b16 %v629
        %v680 = vunpack.c.l.b16 %v630
        %v681 = vunpack.c.l.b16 %v631
        %v682 = vunpack.c.h.b16 %v631
        %v683 = vunpack.c.l.b16 %v632
        %v684 = vunpack.c.l.b16 %v633
        %v685 = vunpack.c.h.b16 %v633
        %v686 = vunpack.c.l.b16 %v634
        %v687 = vunpack.c.l.b16 %v635
        %v688 = vunpack.c.h.b16 %v635
        %v689 = vunpack.c.l.b16 %v636
        %v690 = vunpack.c.l.b16 %v637
        %v691 = vunpack.c.h.b16 %v637
        %v692 = vunpack.c.l.b16 %v638
        %v693 = vunpack.c.l.b16 %v639
        %v694 = vunpack.c.h.b16 %v639
        %v695 = vunpack.c.l.b16 %v640
        %v696 = vpack.c.b16 %v675, %v672
        %v697 = vpack.c.b16 %v676, %v673
        %v698 = vpack.c.b16 %v677, %v674
        %v699 = vpack.c.b16 %v681, %v678
        %v700 = vpack.c.b16 %v682, %v679
        %v701 = vpack.c.b16 %v683, %v680
        %v702 = vpack.c.b16 %v687, %v684
        %v703 = vpack.c.b16 %v688, %v685
        %v704 = vpack.c.b16 %v689, %v686
        %v705 = vpack.c.b16 %v693, %v690
        %v706 = vpack.c.b16 %v694, %v691
        %v707 = vpack.c.b16 %v695, %v692
        %vm720 = vcmask 523264
        %v722 = vsel %vm720, %v653, 0
        %v725 = vsel %vm720, %v654, 0
        %v728 = vsel %vm720, %v655, 0
        %730 = vmatpush.bf16.msra.mxu0 0
        %731 = vmatpush.bf16.msra.mxu0 0
        %732 = vmatpush.bf16.msra.mxu0 0
        %733 = vmatpush.bf16.msra.mxu0 0
        %734 = vmatpush.bf16.msra.mxu0 %v705
        %735 = vmatpush.bf16.msra.mxu0 %v702
        %736 = vmatpush.bf16.msra.mxu0 %v699
        %737 = vmatpush.bf16.msra.mxu0 %v696
        %738 = vmatmul.bf16.gmra.mxu0 %v722
        %v739 = vpop.f32.mrf.mxu0
        %v740 = vadd.f32 0.0, %v739
        %v741 = vpop.f32.mrf.mxu0
        %v742 = vadd.f32 0.0, %v741
        %743 = vmatmul.bf16.gmra.mxu0 %v725
        %v744 = vpop.f32.mrf.mxu0
        %v745 = vadd.f32 0.0, %v744
        %v746 = vpop.f32.mrf.mxu0
        %v747 = vadd.f32 0.0, %v746
        %748 = vmatmul.bf16.gmra.mxu0 %v728
        %v749 = vpop.f32.mrf.mxu0
        %v750 = vadd.f32 0.0, %v749
        %v751 = vpop.f32.mrf.mxu0
        %v752 = vadd.f32 0.0, %v751
        %753 = vdwg.mxu0
        %754 = vmatpush.bf16.msra.mxu0 0
        %755 = vmatpush.bf16.msra.mxu0 0
        %756 = vmatpush.bf16.msra.mxu0 0
        %757 = vmatpush.bf16.msra.mxu0 0
        %758 = vmatpush.bf16.msra.mxu0 %v706
        %759 = vmatpush.bf16.msra.mxu0 %v703
        %760 = vmatpush.bf16.msra.mxu0 %v700
        %761 = vmatpush.bf16.msra.mxu0 %v697
        %762 = vmatmul.bf16.gmra.mxu0 %v722
        %v763 = vpop.f32.mrf.mxu0
        %v764 = vadd.f32 0.0, %v763
        %v765 = vpop.f32.mrf.mxu0
        %v766 = vadd.f32 0.0, %v765
        %767 = vmatmul.bf16.gmra.mxu0 %v725
        %v768 = vpop.f32.mrf.mxu0
        %v769 = vadd.f32 0.0, %v768
        %v770 = vpop.f32.mrf.mxu0
        %v771 = vadd.f32 0.0, %v770
        %772 = vmatmul.bf16.gmra.mxu0 %v728
        %v773 = vpop.f32.mrf.mxu0
        %v774 = vadd.f32 0.0, %v773
        %v775 = vpop.f32.mrf.mxu0
        %v776 = vadd.f32 0.0, %v775
        %777 = vdwg.mxu0
        %778 = vmatpush.bf16.msra.mxu0 0
        %779 = vmatpush.bf16.msra.mxu0 0
        %780 = vmatpush.bf16.msra.mxu0 0
        %781 = vmatpush.bf16.msra.mxu0 0
        %782 = vmatpush.bf16.msra.mxu0 %v707
        %783 = vmatpush.bf16.msra.mxu0 %v704
        %784 = vmatpush.bf16.msra.mxu0 %v701
        %785 = vmatpush.bf16.msra.mxu0 %v698
        %786 = vmatmul.bf16.gmra.mxu0 %v722
        %v787 = vpop.f32.mrf.mxu0
        %v788 = vadd.f32 0.0, %v787
        %v789 = vpop.f32.mrf.mxu0
        %v790 = vadd.f32 0.0, %v789
        %791 = vmatmul.bf16.gmra.mxu0 %v725
        %v792 = vpop.f32.mrf.mxu0
        %v793 = vadd.f32 0.0, %v792
        %v794 = vpop.f32.mrf.mxu0
        %v795 = vadd.f32 0.0, %v794
        %796 = vmatmul.bf16.gmra.mxu0 %v728
        %v797 = vpop.f32.mrf.mxu0
        %v798 = vadd.f32 0.0, %v797
        %v799 = vpop.f32.mrf.mxu0
        %v800 = vadd.f32 0.0, %v799
        %801 = vdwg.mxu0
        %v802 = vunpack.c.l.b16 %v554
        %v803 = vunpack.c.l.b16 %v563
        %v804 = vunpack.c.l.b16 %v576
        %v805 = vunpack.c.l.b16 %v585
        %v806 = vunpack.c.l.b16 %v598
        %v807 = vunpack.c.l.b16 %v607
        %v808 = vpack.c.b16 %v803, %v802
        %v809 = vpack.c.b16 %v805, %v804
        %v810 = vpack.c.b16 %v807, %v806
        %v827 = vunpack.c.l.b16 %v608
        %v828 = vunpack.c.h.b16 %v608
        %v829 = vunpack.c.l.b16 %v609
        %v830 = vunpack.c.l.b16 %v610
        %v831 = vunpack.c.h.b16 %v610
        %v832 = vunpack.c.l.b16 %v611
        %v833 = vunpack.c.l.b16 %v612
        %v834 = vunpack.c.h.b16 %v612
        %v835 = vunpack.c.l.b16 %v613
        %v836 = vunpack.c.l.b16 %v614
        %v837 = vunpack.c.h.b16 %v614
        %v838 = vunpack.c.l.b16 %v615
        %v839 = vunpack.c.l.b16 %v616
        %v840 = vunpack.c.h.b16 %v616
        %v841 = vunpack.c.l.b16 %v617
        %v842 = vunpack.c.l.b16 %v618
        %v843 = vunpack.c.h.b16 %v618
        %v844 = vunpack.c.l.b16 %v619
        %v845 = vunpack.c.l.b16 %v620
        %v846 = vunpack.c.h.b16 %v620
        %v847 = vunpack.c.l.b16 %v621
        %v848 = vunpack.c.l.b16 %v622
        %v849 = vunpack.c.h.b16 %v622
        %v850 = vunpack.c.l.b16 %v623
        %v851 = vpack.c.b16 %v830, %v827
        %v852 = vpack.c.b16 %v831, %v828
        %v853 = vpack.c.b16 %v832, %v829
        %v854 = vpack.c.b16 %v836, %v833
        %v855 = vpack.c.b16 %v837, %v834
        %v856 = vpack.c.b16 %v838, %v835
        %v857 = vpack.c.b16 %v842, %v839
        %v858 = vpack.c.b16 %v843, %v840
        %v859 = vpack.c.b16 %v844, %v841
        %v860 = vpack.c.b16 %v848, %v845
        %v861 = vpack.c.b16 %v849, %v846
        %v862 = vpack.c.b16 %v850, %v847
        %v876 = vsel %vm720, %v808, 0
        %v879 = vsel %vm720, %v809, 0
        %v882 = vsel %vm720, %v810, 0
        %884 = vmatpush.bf16.msra.mxu0 0
        %885 = vmatpush.bf16.msra.mxu0 0
        %886 = vmatpush.bf16.msra.mxu0 0
        %887 = vmatpush.bf16.msra.mxu0 0
        %888 = vmatpush.bf16.msra.mxu0 %v860
        %889 = vmatpush.bf16.msra.mxu0 %v857
        %890 = vmatpush.bf16.msra.mxu0 %v854
        %891 = vmatpush.bf16.msra.mxu0 %v851
        %892 = vmatmul.bf16.gmra.mxu0 %v876
        %v893 = vpop.f32.mrf.mxu0
        %v894 = vadd.f32 %v740, %v893
        %v895 = vpop.f32.mrf.mxu0
        %v896 = vadd.f32 %v742, %v895
        %897 = vmatmul.bf16.gmra.mxu0 %v879
        %v898 = vpop.f32.mrf.mxu0
        %v899 = vadd.f32 %v745, %v898
        %v900 = vpop.f32.mrf.mxu0
        %v901 = vadd.f32 %v747, %v900
        %902 = vmatmul.bf16.gmra.mxu0 %v882
        %v903 = vpop.f32.mrf.mxu0
        %v904 = vadd.f32 %v750, %v903
        %v905 = vpop.f32.mrf.mxu0
        %v906 = vadd.f32 %v752, %v905
        %907 = vdwg.mxu0
        %908 = vmatpush.bf16.msra.mxu0 0
        %909 = vmatpush.bf16.msra.mxu0 0
        %910 = vmatpush.bf16.msra.mxu0 0
        %911 = vmatpush.bf16.msra.mxu0 0
        %912 = vmatpush.bf16.msra.mxu0 %v861
        %913 = vmatpush.bf16.msra.mxu0 %v858
        %914 = vmatpush.bf16.msra.mxu0 %v855
        %915 = vmatpush.bf16.msra.mxu0 %v852
        %916 = vmatmul.bf16.gmra.mxu0 %v876
        %v917 = vpop.f32.mrf.mxu0
        %v918 = vadd.f32 %v764, %v917
        %v919 = vpop.f32.mrf.mxu0
        %v920 = vadd.f32 %v766, %v919
        %921 = vmatmul.bf16.gmra.mxu0 %v879
        %v922 = vpop.f32.mrf.mxu0
        %v923 = vadd.f32 %v769, %v922
        %v924 = vpop.f32.mrf.mxu0
        %v925 = vadd.f32 %v771, %v924
        %926 = vmatmul.bf16.gmra.mxu0 %v882
        %v927 = vpop.f32.mrf.mxu0
        %v928 = vadd.f32 %v774, %v927
        %v929 = vpop.f32.mrf.mxu0
        %v930 = vadd.f32 %v776, %v929
        %931 = vdwg.mxu0
        %932 = vmatpush.bf16.msra.mxu0 0
        %933 = vmatpush.bf16.msra.mxu0 0
        %934 = vmatpush.bf16.msra.mxu0 0
        %935 = vmatpush.bf16.msra.mxu0 0
        %936 = vmatpush.bf16.msra.mxu0 %v862
        %937 = vmatpush.bf16.msra.mxu0 %v859
        %938 = vmatpush.bf16.msra.mxu0 %v856
        %939 = vmatpush.bf16.msra.mxu0 %v853
        %940 = vmatmul.bf16.gmra.mxu0 %v876
        %v941 = vpop.f32.mrf.mxu0
        %v942 = vadd.f32 %v788, %v941
        %v943 = vpop.f32.mrf.mxu0
        %v944 = vadd.f32 %v790, %v943
        %945 = vmatmul.bf16.gmra.mxu0 %v879
        %v946 = vpop.f32.mrf.mxu0
        %v947 = vadd.f32 %v793, %v946
        %v948 = vpop.f32.mrf.mxu0
        %v949 = vadd.f32 %v795, %v948
        %950 = vmatmul.bf16.gmra.mxu0 %v882
        %v951 = vpop.f32.mrf.mxu0
        %v952 = vadd.f32 %v798, %v951
        %v953 = vpop.f32.mrf.mxu0
        %v954 = vadd.f32 %v800, %v953
        %955 = vdwg.mxu0
        %v956 = vld [vmem:[#allocation2 + $0x8] sm:$0xf]
        %v957 = vld [vmem:[#allocation2 + $0xc] sm:$0xf]
        %v958 = vld [vmem:[#allocation2 + $0x10] sm:$0x1]
        %v959 = vld [vmem:[#allocation2 + $0x20] sm:$0xf]
        %v960 = vld [vmem:[#allocation2 + $0x24] sm:$0xf]
        %v961 = vld [vmem:[#allocation2 + $0x28] sm:$0x1]
        %v962 = vld [vmem:[#allocation2 + $0x38] sm:$0xf]
        %v963 = vld [vmem:[#allocation2 + $0x3c] sm:$0xf]
        %v964 = vld [vmem:[#allocation2 + $0x40] sm:$0x1]
        %vm965 = vsmask.f32 3328
        %vm966 = vsmask.f32 7440
        %vm967 = vmor %vm965, %vm966
        %v969 = vshrl.u32 %v956, 16
        %v971 = vrot.slane %v969, 4
        %v972 = vshll.u32 %v956, 16
        %v974 = vrot.slane %v972, 5
        %v975 = vor.u32 %v971, %v974
        %v976 = vrot.slane %v975, 4
        %v978 = vshll.u32 %v957, 16
        %v980 = vrot.slane %v978, 5
        %v981 = vsel %vm967, %v976, %v980
        %v982 = vshrl.u32 %v957, 16
        %v984 = vrot.slane %v982, 4
        %v985 = vor.u32 %v984, %v980
        %v986 = vrot.slane %v985, 4
        %v988 = vshll.u32 %v958, 16
        %v990 = vrot.slane %v988, 5
        %v991 = vsel %vm967, %v986, %v990
        %v993 = vshrl.u32 %v959, 16
        %v995 = vrot.slane %v993, 4
        %v996 = vshll.u32 %v959, 16
        %v998 = vrot.slane %v996, 5
        %v999 = vor.u32 %v995, %v998
        %v1000 = vrot.slane %v999, 4
        %v1002 = vshll.u32 %v960, 16
        %v1004 = vrot.slane %v1002, 5
        %v1005 = vsel %vm967, %v1000, %v1004
        %v1006 = vshrl.u32 %v960, 16
        %v1008 = vrot.slane %v1006, 4
        %v1009 = vor.u32 %v1008, %v1004
        %v1010 = vrot.slane %v1009, 4
        %v1012 = vshll.u32 %v961, 16
        %v1014 = vrot.slane %v1012, 5
        %v1015 = vsel %vm967, %v1010, %v1014
        %v1017 = vshrl.u32 %v962, 16
        %v1019 = vrot.slane %v1017, 4
        %v1020 = vshll.u32 %v962, 16
        %v1022 = vrot.slane %v1020, 5
        %v1023 = vor.u32 %v1019, %v1022
        %v1024 = vrot.slane %v1023, 4
        %v1026 = vshll.u32 %v963, 16
        %v1028 = vrot.slane %v1026, 5
        %v1029 = vsel %vm967, %v1024, %v1028
        %v1030 = vshrl.u32 %v963, 16
        %v1032 = vrot.slane %v1030, 4
        %v1033 = vor.u32 %v1032, %v1028
        %v1034 = vrot.slane %v1033, 4
        %v1036 = vshll.u32 %v964, 16
        %v1038 = vrot.slane %v1036, 5
        %v1039 = vsel %vm967, %v1034, %v1038
        %s1040 = scalar_lea.vmem [#allocation10], 192
        %v1041 = vld [vmem:[%s1040] sm:$0xff]
        %v1042 = vld [vmem:[%s1040 + $0x8] sm:$0xf]
        %v1043 = vld [vmem:[%s1040 + $0xc] sm:$0xff]
        %v1044 = vld [vmem:[%s1040 + $0x14] sm:$0xf]
        %v1045 = vld [vmem:[%s1040 + $0x18] sm:$0xff]
        %v1046 = vld [vmem:[%s1040 + $0x20] sm:$0xf]
        %v1047 = vld [vmem:[%s1040 + $0x24] sm:$0xff]
        %v1048 = vld [vmem:[%s1040 + $0x2c] sm:$0xf]
        %v1049 = vld [vmem:[%s1040 + $0x30] sm:$0xff]
        %v1050 = vld [vmem:[%s1040 + $0x38] sm:$0xf]
        %v1051 = vld [vmem:[%s1040 + $0x3c] sm:$0xff]
        %v1052 = vld [vmem:[%s1040 + $0x44] sm:$0xf]
        %v1053 = vld [vmem:[%s1040 + $0x48] sm:$0xff]
        %v1054 = vld [vmem:[%s1040 + $0x50] sm:$0xf]
        %v1055 = vld [vmem:[%s1040 + $0x54] sm:$0xff]
        %v1056 = vld [vmem:[%s1040 + $0x5c] sm:$0xf]
        %v1057 = vunpack.c.l.b16 %v981
        %v1058 = vunpack.c.l.b16 %v991
        %v1059 = vunpack.c.l.b16 %v1005
        %v1060 = vunpack.c.l.b16 %v1015
        %v1061 = vunpack.c.l.b16 %v1029
        %v1062 = vunpack.c.l.b16 %v1039
        %v1063 = vpack.c.b16 %v1058, %v1057
        %v1064 = vpack.c.b16 %v1060, %v1059
        %v1065 = vpack.c.b16 %v1062, %v1061
        %v1082 = vunpack.c.l.b16 %v1041
        %v1083 = vunpack.c.h.b16 %v1041
        %v1084 = vunpack.c.l.b16 %v1042
        %v1085 = vunpack.c.l.b16 %v1043
        %v1086 = vunpack.c.h.b16 %v1043
        %v1087 = vunpack.c.l.b16 %v1044
        %v1088 = vunpack.c.l.b16 %v1045
        %v1089 = vunpack.c.h.b16 %v1045
        %v1090 = vunpack.c.l.b16 %v1046
        %v1091 = vunpack.c.l.b16 %v1047
        %v1092 = vunpack.c.h.b16 %v1047
        %v1093 = vunpack.c.l.b16 %v1048
        %v1094 = vunpack.c.l.b16 %v1049
        %v1095 = vunpack.c.h.b16 %v1049
        %v1096 = vunpack.c.l.b16 %v1050
        %v1097 = vunpack.c.l.b16 %v1051
        %v1098 = vunpack.c.h.b16 %v1051
        %v1099 = vunpack.c.l.b16 %v1052
        %v1100 = vunpack.c.l.b16 %v1053
        %v1101 = vunpack.c.h.b16 %v1053
        %v1102 = vunpack.c.l.b16 %v1054
        %v1103 = vunpack.c.l.b16 %v1055
        %v1104 = vunpack.c.h.b16 %v1055
        %v1105 = vunpack.c.l.b16 %v1056
        %v1106 = vpack.c.b16 %v1085, %v1082
        %v1107 = vpack.c.b16 %v1086, %v1083
        %v1108 = vpack.c.b16 %v1087, %v1084
        %v1109 = vpack.c.b16 %v1091, %v1088
        %v1110 = vpack.c.b16 %v1092, %v1089
        %v1111 = vpack.c.b16 %v1093, %v1090
        %v1112 = vpack.c.b16 %v1097, %v1094
        %v1113 = vpack.c.b16 %v1098, %v1095
        %v1114 = vpack.c.b16 %v1099, %v1096
        %v1115 = vpack.c.b16 %v1103, %v1100
        %v1116 = vpack.c.b16 %v1104, %v1101
        %v1117 = vpack.c.b16 %v1105, %v1102
        %v1131 = vsel %vm720, %v1063, 0
        %v1134 = vsel %vm720, %v1064, 0
        %v1137 = vsel %vm720, %v1065, 0
        %1139 = vmatpush.bf16.msra.mxu0 0
        %1140 = vmatpush.bf16.msra.mxu0 0
        %1141 = vmatpush.bf16.msra.mxu0 0
        %1142 = vmatpush.bf16.msra.mxu0 0
        %1143 = vmatpush.bf16.msra.mxu0 %v1115
        %1144 = vmatpush.bf16.msra.mxu0 %v1112
        %1145 = vmatpush.bf16.msra.mxu0 %v1109
        %1146 = vmatpush.bf16.msra.mxu0 %v1106
        %1147 = vmatmul.bf16.gmra.mxu0 %v1131
        %v1148 = vpop.f32.mrf.mxu0
        %v1149 = vadd.f32 0.0, %v1148
        %v1150 = vpop.f32.mrf.mxu0
        %v1151 = vadd.f32 0.0, %v1150
        %1152 = vmatmul.bf16.gmra.mxu0 %v1134
        %v1153 = vpop.f32.mrf.mxu0
        %v1154 = vadd.f32 0.0, %v1153
        %v1155 = vpop.f32.mrf.mxu0
        %v1156 = vadd.f32 0.0, %v1155
        %1157 = vmatmul.bf16.gmra.mxu0 %v1137
        %v1158 = vpop.f32.mrf.mxu0
        %v1159 = vadd.f32 0.0, %v1158
        %v1160 = vpop.f32.mrf.mxu0
        %v1161 = vadd.f32 0.0, %v1160
        %1162 = vdwg.mxu0
        %1163 = vmatpush.bf16.msra.mxu0 0
        %1164 = vmatpush.bf16.msra.mxu0 0
        %1165 = vmatpush.bf16.msra.mxu0 0
        %1166 = vmatpush.bf16.msra.mxu0 0
        %1167 = vmatpush.bf16.msra.mxu0 %v1116
        %1168 = vmatpush.bf16.msra.mxu0 %v1113
        %1169 = vmatpush.bf16.msra.mxu0 %v1110
        %1170 = vmatpush.bf16.msra.mxu0 %v1107
        %1171 = vmatmul.bf16.gmra.mxu0 %v1131
        %v1172 = vpop.f32.mrf.mxu0
        %v1173 = vadd.f32 0.0, %v1172
        %v1174 = vpop.f32.mrf.mxu0
        %v1175 = vadd.f32 0.0, %v1174
        %1176 = vmatmul.bf16.gmra.mxu0 %v1134
        %v1177 = vpop.f32.mrf.mxu0
        %v1178 = vadd.f32 0.0, %v1177
        %v1179 = vpop.f32.mrf.mxu0
        %v1180 = vadd.f32 0.0, %v1179
        %1181 = vmatmul.bf16.gmra.mxu0 %v1137
        %v1182 = vpop.f32.mrf.mxu0
        %v1183 = vadd.f32 0.0, %v1182
        %v1184 = vpop.f32.mrf.mxu0
        %v1185 = vadd.f32 0.0, %v1184
        %1186 = vdwg.mxu0
        %1187 = vmatpush.bf16.msra.mxu0 0
        %1188 = vmatpush.bf16.msra.mxu0 0
        %1189 = vmatpush.bf16.msra.mxu0 0
        %1190 = vmatpush.bf16.msra.mxu0 0
        %1191 = vmatpush.bf16.msra.mxu0 %v1117
        %1192 = vmatpush.bf16.msra.mxu0 %v1114
        %1193 = vmatpush.bf16.msra.mxu0 %v1111
        %1194 = vmatpush.bf16.msra.mxu0 %v1108
        %1195 = vmatmul.bf16.gmra.mxu0 %v1131
        %v1196 = vpop.f32.mrf.mxu0
        %v1197 = vadd.f32 0.0, %v1196
        %v1198 = vpop.f32.mrf.mxu0
        %v1199 = vadd.f32 0.0, %v1198
        %1200 = vmatmul.bf16.gmra.mxu0 %v1134
        %v1201 = vpop.f32.mrf.mxu0
        %v1202 = vadd.f32 0.0, %v1201
        %v1203 = vpop.f32.mrf.mxu0
        %v1204 = vadd.f32 0.0, %v1203
        %1205 = vmatmul.bf16.gmra.mxu0 %v1137
        %v1206 = vpop.f32.mrf.mxu0
        %v1207 = vadd.f32 0.0, %v1206
        %v1208 = vpop.f32.mrf.mxu0
        %v1209 = vadd.f32 0.0, %v1208
        %1210 = vdwg.mxu0
        %v1211 = vadd.f32 %v894, %v1149
        %v1212 = vadd.f32 %v918, %v1173
        %v1213 = vadd.f32 %v942, %v1197
        %v1214 = vadd.f32 %v896, %v1151
        %v1215 = vadd.f32 %v920, %v1175
        %v1216 = vadd.f32 %v944, %v1199
        %v1217 = vadd.f32 %v899, %v1154
        %v1218 = vadd.f32 %v923, %v1178
        %v1219 = vadd.f32 %v947, %v1202
        %v1220 = vadd.f32 %v901, %v1156
        %v1221 = vadd.f32 %v925, %v1180
        %v1222 = vadd.f32 %v949, %v1204
        %v1223 = vadd.f32 %v904, %v1159
        %v1224 = vadd.f32 %v928, %v1183
        %v1225 = vadd.f32 %v952, %v1207
        %v1226 = vadd.f32 %v906, %v1161
        %v1227 = vadd.f32 %v930, %v1185
        %v1228 = vadd.f32 %v954, %v1209
        %1229 = vst [vmem:[#allocation3 + $0x8] sm:$0xf] %v522
        %1230 = vst [vmem:[#allocation3 + $0xc] sm:$0xf] %v523
        %v1231 = vld [vmem:[#allocation3 + $0x4] sm:$0x8]
        %v1232 = vld [vmem:[#allocation3 + $0x8] sm:$0xf]
        %v1233 = vld [vmem:[#allocation3 + $0xc] sm:$0xf]
        %v1234 = vld [vmem:[#allocation11] sm:$0xff]
        %v1235 = vld [vmem:[#allocation11 + $0x8] sm:$0xff]
        %v1236 = vld [vmem:[#allocation11 + $0x10] sm:$0xff]
        %v1237 = vld [vmem:[#allocation11 + $0x18] sm:$0xff]
        %v1238 = vld [vmem:[#allocation11 + $0x20] sm:$0xff]
        %v1239 = vld [vmem:[#allocation11 + $0x28] sm:$0xff]
        %v1240 = vld [vmem:[#allocation11 + $0x30] sm:$0xff]
        %v1241 = vld [vmem:[#allocation11 + $0x38] sm:$0xff]
        %v1242 = vld [vmem:[#allocation11 + $0x40] sm:$0xff]
        %v1243 = vld [vmem:[#allocation11 + $0x48] sm:$0xff]
        %v1244 = vld [vmem:[#allocation11 + $0x50] sm:$0xff]
        %v1245 = vld [vmem:[#allocation11 + $0x58] sm:$0xff]
        %v1246 = vld [vmem:[#allocation11 + $0x60] sm:$0xff]
        %v1247 = vld [vmem:[#allocation11 + $0x68] sm:$0xff]
        %v1248 = vld [vmem:[#allocation11 + $0x70] sm:$0xff]
        %v1249 = vld [vmem:[#allocation11 + $0x78] sm:$0xff]
        %s1250 = scalar_lea.vmem [#allocation11], 128
        %v1251 = vld [vmem:[%s1250] sm:$0xff]
        %v1252 = vld [vmem:[%s1250 + $0x8] sm:$0xff]
        %v1253 = vld [vmem:[%s1250 + $0x10] sm:$0xff]
        %v1254 = vld [vmem:[%s1250 + $0x18] sm:$0xff]
        %v1255 = vld [vmem:[%s1250 + $0x20] sm:$0xff]
        %v1256 = vld [vmem:[%s1250 + $0x28] sm:$0xff]
        %v1257 = vld [vmem:[%s1250 + $0x30] sm:$0xff]
        %v1258 = vld [vmem:[%s1250 + $0x38] sm:$0xff]
        %v1259 = vld [vmem:[%s1250 + $0x40] sm:$0xff]
        %v1260 = vld [vmem:[%s1250 + $0x48] sm:$0xff]
        %v1261 = vld [vmem:[%s1250 + $0x50] sm:$0xff]
        %v1262 = vld [vmem:[%s1250 + $0x58] sm:$0xff]
        %v1263 = vld [vmem:[%s1250 + $0x60] sm:$0xff]
        %v1264 = vld [vmem:[%s1250 + $0x68] sm:$0xff]
        %v1265 = vld [vmem:[%s1250 + $0x70] sm:$0xff]
        %v1266 = vld [vmem:[%s1250 + $0x78] sm:$0xff]
        %v1269 = vunpack.c.l.b16 %v1232
        %v1270 = vunpack.c.l.b16 %v1233
        %v1271 = vpack.c.b16 %v1270, %v1269
        %v1289 = vunpack.c.l.b16 %v1251
        %v1290 = vunpack.c.h.b16 %v1251
        %v1291 = vunpack.c.l.b16 %v1252
        %v1292 = vunpack.c.h.b16 %v1252
        %v1293 = vunpack.c.l.b16 %v1253
        %v1294 = vunpack.c.h.b16 %v1253
        %v1295 = vunpack.c.l.b16 %v1254
        %v1296 = vunpack.c.h.b16 %v1254
        %v1297 = vunpack.c.l.b16 %v1255
        %v1298 = vunpack.c.h.b16 %v1255
        %v1299 = vunpack.c.l.b16 %v1256
        %v1300 = vunpack.c.h.b16 %v1256
        %v1301 = vunpack.c.l.b16 %v1257
        %v1302 = vunpack.c.h.b16 %v1257
        %v1303 = vunpack.c.l.b16 %v1258
        %v1304 = vunpack.c.h.b16 %v1258
        %v1305 = vunpack.c.l.b16 %v1259
        %v1306 = vunpack.c.h.b16 %v1259
        %v1307 = vunpack.c.l.b16 %v1260
        %v1308 = vunpack.c.h.b16 %v1260
        %v1309 = vunpack.c.l.b16 %v1261
        %v1310 = vunpack.c.h.b16 %v1261
        %v1311 = vunpack.c.l.b16 %v1262
        %v1312 = vunpack.c.h.b16 %v1262
        %v1313 = vunpack.c.l.b16 %v1263
        %v1314 = vunpack.c.h.b16 %v1263
        %v1315 = vunpack.c.l.b16 %v1264
        %v1316 = vunpack.c.h.b16 %v1264
        %v1317 = vunpack.c.l.b16 %v1265
        %v1318 = vunpack.c.h.b16 %v1265
        %v1319 = vunpack.c.l.b16 %v1266
        %v1320 = vunpack.c.h.b16 %v1266
        %v1321 = vpack.c.b16 %v1291, %v1289
        %v1322 = vpack.c.b16 %v1292, %v1290
        %v1323 = vpack.c.b16 %v1295, %v1293
        %v1324 = vpack.c.b16 %v1296, %v1294
        %v1325 = vpack.c.b16 %v1299, %v1297
        %v1326 = vpack.c.b16 %v1300, %v1298
        %v1327 = vpack.c.b16 %v1303, %v1301
        %v1328 = vpack.c.b16 %v1304, %v1302
        %v1329 = vpack.c.b16 %v1307, %v1305
        %v1330 = vpack.c.b16 %v1308, %v1306
        %v1331 = vpack.c.b16 %v1311, %v1309
        %v1332 = vpack.c.b16 %v1312, %v1310
        %v1333 = vpack.c.b16 %v1315, %v1313
        %v1334 = vpack.c.b16 %v1316, %v1314
        %v1335 = vpack.c.b16 %v1319, %v1317
        %v1336 = vpack.c.b16 %v1320, %v1318
        %1353 = vmatpush.bf16.msra.mxu0 %v1335
        %1354 = vmatpush.bf16.msra.mxu0 %v1333
        %1355 = vmatpush.bf16.msra.mxu0 %v1331
        %1356 = vmatpush.bf16.msra.mxu0 %v1329
        %1357 = vmatpush.bf16.msra.mxu0 %v1327
        %1358 = vmatpush.bf16.msra.mxu0 %v1325
        %1359 = vmatpush.bf16.msra.mxu0 %v1323
        %1360 = vmatpush.bf16.msra.mxu0 %v1321
        %1361 = vmatmul.bf16.gmra.mxu0 %v1271
        %v1362 = vpop.f32.mrf.mxu0
        %v1363 = vadd.f32 0.0, %v1362
        %v1364 = vpop.f32.mrf.mxu0
        %v1365 = vadd.f32 0.0, %v1364
        %1366 = vdwg.mxu0
        %1367 = vmatpush.bf16.msra.mxu0 %v1336
        %1368 = vmatpush.bf16.msra.mxu0 %v1334
        %1369 = vmatpush.bf16.msra.mxu0 %v1332
        %1370 = vmatpush.bf16.msra.mxu0 %v1330
        %1371 = vmatpush.bf16.msra.mxu0 %v1328
        %1372 = vmatpush.bf16.msra.mxu0 %v1326
        %1373 = vmatpush.bf16.msra.mxu0 %v1324
        %1374 = vmatpush.bf16.msra.mxu0 %v1322
        %1375 = vmatmul.bf16.gmra.mxu0 %v1271
        %v1376 = vpop.f32.mrf.mxu0
        %v1377 = vadd.f32 0.0, %v1376
        %v1378 = vpop.f32.mrf.mxu0
        %v1379 = vadd.f32 0.0, %v1378
        %1380 = vdwg.mxu0
        %v1382 = vunpack.c.l.b16 %v1231
        %v1383 = vpack.c.b16 %v1269, %v1382
        %v1384 = vpack.c.b16 %v1270, %v1270
        %vm1385 = vsmask.f32 4352
        %v1387 = vshrl.u32 %v1383, 16
        %v1389 = vrot.slane %v1387, 3
        %v1390 = vshll.u32 %v1383, 16
        %v1392 = vrot.slane %v1390, 4
        %v1393 = vor.u32 %v1389, %v1392
        %v1395 = vshrl.u32 %v1384, 16
        %v1397 = vrot.slane %v1395, 3
        %v1398 = vshll.u32 %v1384, 16
        %v1400 = vrot.slane %v1398, 4
        %v1401 = vor.u32 %v1397, %v1400
        %v1402 = vsel %vm1385, %v1393, %v1401
        %v1420 = vunpack.c.l.b16 %v1234
        %v1421 = vunpack.c.h.b16 %v1234
        %v1422 = vunpack.c.l.b16 %v1235
        %v1423 = vunpack.c.h.b16 %v1235
        %v1424 = vunpack.c.l.b16 %v1236
        %v1425 = vunpack.c.h.b16 %v1236
        %v1426 = vunpack.c.l.b16 %v1237
        %v1427 = vunpack.c.h.b16 %v1237
        %v1428 = vunpack.c.l.b16 %v1238
        %v1429 = vunpack.c.h.b16 %v1238
        %v1430 = vunpack.c.l.b16 %v1239
        %v1431 = vunpack.c.h.b16 %v1239
        %v1432 = vunpack.c.l.b16 %v1240
        %v1433 = vunpack.c.h.b16 %v1240
        %v1434 = vunpack.c.l.b16 %v1241
        %v1435 = vunpack.c.h.b16 %v1241
        %v1436 = vunpack.c.l.b16 %v1242
        %v1437 = vunpack.c.h.b16 %v1242
        %v1438 = vunpack.c.l.b16 %v1243
        %v1439 = vunpack.c.h.b16 %v1243
        %v1440 = vunpack.c.l.b16 %v1244
        %v1441 = vunpack.c.h.b16 %v1244
        %v1442 = vunpack.c.l.b16 %v1245
        %v1443 = vunpack.c.h.b16 %v1245
        %v1444 = vunpack.c.l.b16 %v1246
        %v1445 = vunpack.c.h.b16 %v1246
        %v1446 = vunpack.c.l.b16 %v1247
        %v1447 = vunpack.c.h.b16 %v1247
        %v1448 = vunpack.c.l.b16 %v1248
        %v1449 = vunpack.c.h.b16 %v1248
        %v1450 = vunpack.c.l.b16 %v1249
        %v1451 = vunpack.c.h.b16 %v1249
        %v1452 = vpack.c.b16 %v1422, %v1420
        %v1453 = vpack.c.b16 %v1423, %v1421
        %v1454 = vpack.c.b16 %v1426, %v1424
        %v1455 = vpack.c.b16 %v1427, %v1425
        %v1456 = vpack.c.b16 %v1430, %v1428
        %v1457 = vpack.c.b16 %v1431, %v1429
        %v1458 = vpack.c.b16 %v1434, %v1432
        %v1459 = vpack.c.b16 %v1435, %v1433
        %v1460 = vpack.c.b16 %v1438, %v1436
        %v1461 = vpack.c.b16 %v1439, %v1437
        %v1462 = vpack.c.b16 %v1442, %v1440
        %v1463 = vpack.c.b16 %v1443, %v1441
        %v1464 = vpack.c.b16 %v1446, %v1444
        %v1465 = vpack.c.b16 %v1447, %v1445
        %v1466 = vpack.c.b16 %v1450, %v1448
        %v1467 = vpack.c.b16 %v1451, %v1449
        %1484 = vmatpush.bf16.msra.mxu0 %v1466
        %1485 = vmatpush.bf16.msra.mxu0 %v1464
        %1486 = vmatpush.bf16.msra.mxu0 %v1462
        %1487 = vmatpush.bf16.msra.mxu0 %v1460
        %1488 = vmatpush.bf16.msra.mxu0 %v1458
        %1489 = vmatpush.bf16.msra.mxu0 %v1456
        %1490 = vmatpush.bf16.msra.mxu0 %v1454
        %1491 = vmatpush.bf16.msra.mxu0 %v1452
        %1492 = vmatmul.bf16.gmra.mxu0 %v1402
        %v1493 = vpop.f32.mrf.mxu0
        %v1494 = vadd.f32 %v1363, %v1493
        %v1495 = vpop.f32.mrf.mxu0
        %v1496 = vadd.f32 %v1365, %v1495
        %1497 = vdwg.mxu0
        %1498 = vmatpush.bf16.msra.mxu0 %v1467
        %1499 = vmatpush.bf16.msra.mxu0 %v1465
        %1500 = vmatpush.bf16.msra.mxu0 %v1463
        %1501 = vmatpush.bf16.msra.mxu0 %v1461
        %1502 = vmatpush.bf16.msra.mxu0 %v1459
        %1503 = vmatpush.bf16.msra.mxu0 %v1457
        %1504 = vmatpush.bf16.msra.mxu0 %v1455
        %1505 = vmatpush.bf16.msra.mxu0 %v1453
        %1506 = vmatmul.bf16.gmra.mxu0 %v1402
        %v1507 = vpop.f32.mrf.mxu0
        %v1508 = vadd.f32 %v1377, %v1507
        %v1509 = vpop.f32.mrf.mxu0
        %v1510 = vadd.f32 %v1379, %v1509
        %1511 = vdwg.mxu0
        %v1512 = vld [vmem:[#allocation3 + $0x8] sm:$0xf]
        %v1513 = vld [vmem:[#allocation3 + $0xc] sm:$0xf]
        %v1514 = vld [vmem:[#allocation3 + $0x10] sm:$0x1]
        %s1515 = scalar_lea.vmem [#allocation11], 256
        %v1516 = vld [vmem:[%s1515] sm:$0xff]
        %v1517 = vld [vmem:[%s1515 + $0x8] sm:$0xff]
        %v1518 = vld [vmem:[%s1515 + $0x10] sm:$0xff]
        %v1519 = vld [vmem:[%s1515 + $0x18] sm:$0xff]
        %v1520 = vld [vmem:[%s1515 + $0x20] sm:$0xff]
        %v1521 = vld [vmem:[%s1515 + $0x28] sm:$0xff]
        %v1522 = vld [vmem:[%s1515 + $0x30] sm:$0xff]
        %v1523 = vld [vmem:[%s1515 + $0x38] sm:$0xff]
        %v1524 = vld [vmem:[%s1515 + $0x40] sm:$0xff]
        %v1525 = vld [vmem:[%s1515 + $0x48] sm:$0xff]
        %v1526 = vld [vmem:[%s1515 + $0x50] sm:$0xff]
        %v1527 = vld [vmem:[%s1515 + $0x58] sm:$0xff]
        %v1528 = vld [vmem:[%s1515 + $0x60] sm:$0xff]
        %v1529 = vld [vmem:[%s1515 + $0x68] sm:$0xff]
        %v1530 = vld [vmem:[%s1515 + $0x70] sm:$0xff]
        %v1531 = vld [vmem:[%s1515 + $0x78] sm:$0xff]
        %v1535 = vunpack.c.l.b16 %v1512
        %v1536 = vunpack.c.l.b16 %v1513
        %v1537 = vunpack.c.l.b16 %v1514
        %v1538 = vpack.c.b16 %v1536, %v1535
        %v1539 = vpack.c.b16 %v1537, %v1537
        %vm1540 = vsmask.f32 7424
        %v1542 = vshrl.u32 %v1538, 16
        %v1544 = vshll.u32 %v1538, 16
        %v1546 = vrot.slane %v1544, 1
        %v1547 = vor.u32 %v1542, %v1546
        %v1549 = vshll.u32 %v1539, 16
        %v1551 = vrot.slane %v1549, 1
        %v1552 = vsel %vm1540, %v1547, %v1551
        %v1570 = vunpack.c.l.b16 %v1516
        %v1571 = vunpack.c.h.b16 %v1516
        %v1572 = vunpack.c.l.b16 %v1517
        %v1573 = vunpack.c.h.b16 %v1517
        %v1574 = vunpack.c.l.b16 %v1518
        %v1575 = vunpack.c.h.b16 %v1518
        %v1576 = vunpack.c.l.b16 %v1519
        %v1577 = vunpack.c.h.b16 %v1519
        %v1578 = vunpack.c.l.b16 %v1520
        %v1579 = vunpack.c.h.b16 %v1520
        %v1580 = vunpack.c.l.b16 %v1521
        %v1581 = vunpack.c.h.b16 %v1521
        %v1582 = vunpack.c.l.b16 %v1522
        %v1583 = vunpack.c.h.b16 %v1522
        %v1584 = vunpack.c.l.b16 %v1523
        %v1585 = vunpack.c.h.b16 %v1523
        %v1586 = vunpack.c.l.b16 %v1524
        %v1587 = vunpack.c.h.b16 %v1524
        %v1588 = vunpack.c.l.b16 %v1525
        %v1589 = vunpack.c.h.b16 %v1525
        %v1590 = vunpack.c.l.b16 %v1526
        %v1591 = vunpack.c.h.b16 %v1526
        %v1592 = vunpack.c.l.b16 %v1527
        %v1593 = vunpack.c.h.b16 %v1527
        %v1594 = vunpack.c.l.b16 %v1528
        %v1595 = vunpack.c.h.b16 %v1528
        %v1596 = vunpack.c.l.b16 %v1529
        %v1597 = vunpack.c.h.b16 %v1529
        %v1598 = vunpack.c.l.b16 %v1530
        %v1599 = vunpack.c.h.b16 %v1530
        %v1600 = vunpack.c.l.b16 %v1531
        %v1601 = vunpack.c.h.b16 %v1531
        %v1602 = vpack.c.b16 %v1572, %v1570
        %v1603 = vpack.c.b16 %v1573, %v1571
        %v1604 = vpack.c.b16 %v1576, %v1574
        %v1605 = vpack.c.b16 %v1577, %v1575
        %v1606 = vpack.c.b16 %v1580, %v1578
        %v1607 = vpack.c.b16 %v1581, %v1579
        %v1608 = vpack.c.b16 %v1584, %v1582
        %v1609 = vpack.c.b16 %v1585, %v1583
        %v1610 = vpack.c.b16 %v1588, %v1586
        %v1611 = vpack.c.b16 %v1589, %v1587
        %v1612 = vpack.c.b16 %v1592, %v1590
        %v1613 = vpack.c.b16 %v1593, %v1591
        %v1614 = vpack.c.b16 %v1596, %v1594
        %v1615 = vpack.c.b16 %v1597, %v1595
        %v1616 = vpack.c.b16 %v1600, %v1598
        %v1617 = vpack.c.b16 %v1601, %v1599
        %1634 = vmatpush.bf16.msra.mxu0 %v1616
        %1635 = vmatpush.bf16.msra.mxu0 %v1614
        %1636 = vmatpush.bf16.msra.mxu0 %v1612
        %1637 = vmatpush.bf16.msra.mxu0 %v1610
        %1638 = vmatpush.bf16.msra.mxu0 %v1608
        %1639 = vmatpush.bf16.msra.mxu0 %v1606
        %1640 = vmatpush.bf16.msra.mxu0 %v1604
        %1641 = vmatpush.bf16.msra.mxu0 %v1602
        %1642 = vmatmul.bf16.gmra.mxu0 %v1552
        %v1643 = vpop.f32.mrf.mxu0
        %v1644 = vadd.f32 0.0, %v1643
        %v1645 = vpop.f32.mrf.mxu0
        %v1646 = vadd.f32 0.0, %v1645
        %1647 = vdwg.mxu0
        %1648 = vmatpush.bf16.msra.mxu0 %v1617
        %1649 = vmatpush.bf16.msra.mxu0 %v1615
        %1650 = vmatpush.bf16.msra.mxu0 %v1613
        %1651 = vmatpush.bf16.msra.mxu0 %v1611
        %1652 = vmatpush.bf16.msra.mxu0 %v1609
        %1653 = vmatpush.bf16.msra.mxu0 %v1607
        %1654 = vmatpush.bf16.msra.mxu0 %v1605
        %1655 = vmatpush.bf16.msra.mxu0 %v1603
        %1656 = vmatmul.bf16.gmra.mxu0 %v1552
        %v1657 = vpop.f32.mrf.mxu0
        %v1658 = vadd.f32 0.0, %v1657
        %v1659 = vpop.f32.mrf.mxu0
        %v1660 = vadd.f32 0.0, %v1659
        %1661 = vdwg.mxu0
        %v1662 = vadd.f32 %v1494, %v1644
        %v1663 = vadd.f32 %v1508, %v1658
        %v1664 = vadd.f32 %v1496, %v1646
        %v1665 = vadd.f32 %v1510, %v1660
        %v1666 = vadd.f32 %v1211, %v1662
        %v1667 = vadd.f32 %v1212, %v1663
        %v1668 = vadd.f32 %v1214, %v1664
        %v1669 = vadd.f32 %v1215, %v1665
        %v1670 = vadd.f32 %v1217, %v1662
        %v1671 = vadd.f32 %v1218, %v1663
        %v1672 = vadd.f32 %v1220, %v1664
        %v1673 = vadd.f32 %v1221, %v1665
        %v1674 = vadd.f32 %v1223, %v1662
        %v1675 = vadd.f32 %v1224, %v1663
        %v1676 = vadd.f32 %v1226, %v1664
        %v1677 = vadd.f32 %v1227, %v1665
        %v1678 = vld [vmem:[%s6] sm:$0x3]
        %v1680 = vperm.slane %v1678, 0
        %v1681 = vperm.slane %v1678, 1
        %v1684 = vadd.f32 %v1666, %v1680
        %v1685 = vadd.f32 %v1667, %v1681
        %v1686 = vadd.f32 %v1668, %v1680
        %v1687 = vadd.f32 %v1669, %v1681
        %v1688 = vadd.f32 %v1670, %v1680
        %v1689 = vadd.f32 %v1671, %v1681
        %v1690 = vadd.f32 %v1672, %v1680
        %v1691 = vadd.f32 %v1673, %v1681
        %v1692 = vadd.f32 %v1674, %v1680
        %v1693 = vadd.f32 %v1675, %v1681
        %v1694 = vadd.f32 %v1676, %v1680
        %v1695 = vadd.f32 %v1677, %v1681
        %v1696 = vxor.u32 %v1684, 2147483648
        %v1697 = vxor.u32 %v1685, 2147483648
        %v1698 = vxor.u32 %v1686, 2147483648
        %v1699 = vxor.u32 %v1687, 2147483648
        %v1700 = vxor.u32 %v1688, 2147483648
        %v1701 = vxor.u32 %v1689, 2147483648
        %v1702 = vxor.u32 %v1690, 2147483648
        %v1703 = vxor.u32 %v1691, 2147483648
        %v1704 = vxor.u32 %v1692, 2147483648
        %v1705 = vxor.u32 %v1693, 2147483648
        %v1706 = vxor.u32 %v1694, 2147483648
        %v1707 = vxor.u32 %v1695, 2147483648
        %v1708 = vmul.f32 %v1696, 1.442695
        %v1709 = vpow.pop %v1708
        %v1710 = vmul.f32 %v1697, 1.442695
        %v1711 = vpow.pop %v1710
        %v1712 = vmul.f32 %v1698, 1.442695
        %v1713 = vpow.pop %v1712
        %v1714 = vmul.f32 %v1699, 1.442695
        %v1715 = vpow.pop %v1714
        %v1716 = vmul.f32 %v1700, 1.442695
        %v1717 = vpow.pop %v1716
        %v1718 = vmul.f32 %v1701, 1.442695
        %v1719 = vpow.pop %v1718
        %v1720 = vmul.f32 %v1702, 1.442695
        %v1721 = vpow.pop %v1720
        %v1722 = vmul.f32 %v1703, 1.442695
        %v1723 = vpow.pop %v1722
        %v1724 = vmul.f32 %v1704, 1.442695
        %v1725 = vpow.pop %v1724
        %v1726 = vmul.f32 %v1705, 1.442695
        %v1727 = vpow.pop %v1726
        %v1728 = vmul.f32 %v1706, 1.442695
        %v1729 = vpow.pop %v1728
        %v1730 = vmul.f32 %v1707, 1.442695
        %v1731 = vpow.pop %v1730
        %v1732 = vadd.f32 %v1709, 1.0
        %v1733 = vadd.f32 %v1711, 1.0
        %v1734 = vadd.f32 %v1713, 1.0
        %v1735 = vadd.f32 %v1715, 1.0
        %v1736 = vadd.f32 %v1717, 1.0
        %v1737 = vadd.f32 %v1719, 1.0
        %v1738 = vadd.f32 %v1721, 1.0
        %v1739 = vadd.f32 %v1723, 1.0
        %v1740 = vadd.f32 %v1725, 1.0
        %v1741 = vadd.f32 %v1727, 1.0
        %v1742 = vadd.f32 %v1729, 1.0
        %v1743 = vadd.f32 %v1731, 1.0
        %v1744 = vrcp.pop %v1732
        %v1745 = vmul.f32 %v1732, %v1744
        %v1746 = vsub.f32 1.0, %v1745
        %v1747 = vmul.f32 %v1744, %v1746
        %v1748 = vadd.f32 %v1744, %v1747
        %vm1749 = vweird.f32 %v1732
        %vm1750 = vweird.f32 %v1744
        %vm1751 = vmor %vm1749, %vm1750
        %v1752 = vsel %vm1751, %v1744, %v1748
        %v1753 = vand.u32 2147483647, %v1732
        %vm1754 = vcmp.eq.f32.partialorder %v1753, 8.507059e+37
        %v1755 = vand.u32 %v1732, 2147483648
        %v1756 = vor.u32 1.1754944e-38, %v1755
        %v1757 = vsel %vm1754, %v1756, %v1752
        %v1758 = vmul.f32 1.0, %v1757
        %v1759 = vrcp.pop %v1733
        %v1760 = vmul.f32 %v1733, %v1759
        %v1761 = vsub.f32 1.0, %v1760
        %v1762 = vmul.f32 %v1759, %v1761
        %v1763 = vadd.f32 %v1759, %v1762
        %vm1764 = vweird.f32 %v1733
        %vm1765 = vweird.f32 %v1759
        %vm1766 = vmor %vm1764, %vm1765
        %v1767 = vsel %vm1766, %v1759, %v1763
        %v1768 = vand.u32 2147483647, %v1733
        %vm1769 = vcmp.eq.f32.partialorder %v1768, 8.507059e+37
        %v1770 = vand.u32 %v1733, 2147483648
        %v1771 = vor.u32 1.1754944e-38, %v1770
        %v1772 = vsel %vm1769, %v1771, %v1767
        %v1773 = vmul.f32 1.0, %v1772
        %v1774 = vrcp.pop %v1734
        %v1775 = vmul.f32 %v1734, %v1774
        %v1776 = vsub.f32 1.0, %v1775
        %v1777 = vmul.f32 %v1774, %v1776
        %v1778 = vadd.f32 %v1774, %v1777
        %vm1779 = vweird.f32 %v1734
        %vm1780 = vweird.f32 %v1774
        %vm1781 = vmor %vm1779, %vm1780
        %v1782 = vsel %vm1781, %v1774, %v1778
        %v1783 = vand.u32 2147483647, %v1734
        %vm1784 = vcmp.eq.f32.partialorder %v1783, 8.507059e+37
        %v1785 = vand.u32 %v1734, 2147483648
        %v1786 = vor.u32 1.1754944e-38, %v1785
        %v1787 = vsel %vm1784, %v1786, %v1782
        %v1788 = vmul.f32 1.0, %v1787
        %v1789 = vrcp.pop %v1735
        %v1790 = vmul.f32 %v1735, %v1789
        %v1791 = vsub.f32 1.0, %v1790
        %v1792 = vmul.f32 %v1789, %v1791
        %v1793 = vadd.f32 %v1789, %v1792
        %vm1794 = vweird.f32 %v1735
        %vm1795 = vweird.f32 %v1789
        %vm1796 = vmor %vm1794, %vm1795
        %v1797 = vsel %vm1796, %v1789, %v1793
        %v1798 = vand.u32 2147483647, %v1735
        %vm1799 = vcmp.eq.f32.partialorder %v1798, 8.507059e+37
        %v1800 = vand.u32 %v1735, 2147483648
        %v1801 = vor.u32 1.1754944e-38, %v1800
        %v1802 = vsel %vm1799, %v1801, %v1797
        %v1803 = vmul.f32 1.0, %v1802
        %v1804 = vrcp.pop %v1736
        %v1805 = vmul.f32 %v1736, %v1804
        %v1806 = vsub.f32 1.0, %v1805
        %v1807 = vmul.f32 %v1804, %v1806
        %v1808 = vadd.f32 %v1804, %v1807
        %vm1809 = vweird.f32 %v1736
        %vm1810 = vweird.f32 %v1804
        %vm1811 = vmor %vm1809, %vm1810
        %v1812 = vsel %vm1811, %v1804, %v1808
        %v1813 = vand.u32 2147483647, %v1736
        %vm1814 = vcmp.eq.f32.partialorder %v1813, 8.507059e+37
        %v1815 = vand.u32 %v1736, 2147483648
        %v1816 = vor.u32 1.1754944e-38, %v1815
        %v1817 = vsel %vm1814, %v1816, %v1812
        %v1818 = vmul.f32 1.0, %v1817
        %v1819 = vrcp.pop %v1737
        %v1820 = vmul.f32 %v1737, %v1819
        %v1821 = vsub.f32 1.0, %v1820
        %v1822 = vmul.f32 %v1819, %v1821
        %v1823 = vadd.f32 %v1819, %v1822
        %vm1824 = vweird.f32 %v1737
        %vm1825 = vweird.f32 %v1819
        %vm1826 = vmor %vm1824, %vm1825
        %v1827 = vsel %vm1826, %v1819, %v1823
        %v1828 = vand.u32 2147483647, %v1737
        %vm1829 = vcmp.eq.f32.partialorder %v1828, 8.507059e+37
        %v1830 = vand.u32 %v1737, 2147483648
        %v1831 = vor.u32 1.1754944e-38, %v1830
        %v1832 = vsel %vm1829, %v1831, %v1827
        %v1833 = vmul.f32 1.0, %v1832
        %v1834 = vrcp.pop %v1738
        %v1835 = vmul.f32 %v1738, %v1834
        %v1836 = vsub.f32 1.0, %v1835
        %v1837 = vmul.f32 %v1834, %v1836
        %v1838 = vadd.f32 %v1834, %v1837
        %vm1839 = vweird.f32 %v1738
        %vm1840 = vweird.f32 %v1834
        %vm1841 = vmor %vm1839, %vm1840
        %v1842 = vsel %vm1841, %v1834, %v1838
        %v1843 = vand.u32 2147483647, %v1738
        %vm1844 = vcmp.eq.f32.partialorder %v1843, 8.507059e+37
        %v1845 = vand.u32 %v1738, 2147483648
        %v1846 = vor.u32 1.1754944e-38, %v1845
        %v1847 = vsel %vm1844, %v1846, %v1842
        %v1848 = vmul.f32 1.0, %v1847
        %v1849 = vrcp.pop %v1739
        %v1850 = vmul.f32 %v1739, %v1849
        %v1851 = vsub.f32 1.0, %v1850
        %v1852 = vmul.f32 %v1849, %v1851
        %v1853 = vadd.f32 %v1849, %v1852
        %vm1854 = vweird.f32 %v1739
        %vm1855 = vweird.f32 %v1849
        %vm1856 = vmor %vm1854, %vm1855
        %v1857 = vsel %vm1856, %v1849, %v1853
        %v1858 = vand.u32 2147483647, %v1739
        %vm1859 = vcmp.eq.f32.partialorder %v1858, 8.507059e+37
        %v1860 = vand.u32 %v1739, 2147483648
        %v1861 = vor.u32 1.1754944e-38, %v1860
        %v1862 = vsel %vm1859, %v1861, %v1857
        %v1863 = vmul.f32 1.0, %v1862
        %v1864 = vrcp.pop %v1740
        %v1865 = vmul.f32 %v1740, %v1864
        %v1866 = vsub.f32 1.0, %v1865
        %v1867 = vmul.f32 %v1864, %v1866
        %v1868 = vadd.f32 %v1864, %v1867
        %vm1869 = vweird.f32 %v1740
        %vm1870 = vweird.f32 %v1864
        %vm1871 = vmor %vm1869, %vm1870
        %v1872 = vsel %vm1871, %v1864, %v1868
        %v1873 = vand.u32 2147483647, %v1740
        %vm1874 = vcmp.eq.f32.partialorder %v1873, 8.507059e+37
        %v1875 = vand.u32 %v1740, 2147483648
        %v1876 = vor.u32 1.1754944e-38, %v1875
        %v1877 = vsel %vm1874, %v1876, %v1872
        %v1878 = vmul.f32 1.0, %v1877
        %v1879 = vrcp.pop %v1741
        %v1880 = vmul.f32 %v1741, %v1879
        %v1881 = vsub.f32 1.0, %v1880
        %v1882 = vmul.f32 %v1879, %v1881
        %v1883 = vadd.f32 %v1879, %v1882
        %vm1884 = vweird.f32 %v1741
        %vm1885 = vweird.f32 %v1879
        %vm1886 = vmor %vm1884, %vm1885
        %v1887 = vsel %vm1886, %v1879, %v1883
        %v1888 = vand.u32 2147483647, %v1741
        %vm1889 = vcmp.eq.f32.partialorder %v1888, 8.507059e+37
        %v1890 = vand.u32 %v1741, 2147483648
        %v1891 = vor.u32 1.1754944e-38, %v1890
        %v1892 = vsel %vm1889, %v1891, %v1887
        %v1893 = vmul.f32 1.0, %v1892
        %v1894 = vrcp.pop %v1742
        %v1895 = vmul.f32 %v1742, %v1894
        %v1896 = vsub.f32 1.0, %v1895
        %v1897 = vmul.f32 %v1894, %v1896
        %v1898 = vadd.f32 %v1894, %v1897
        %vm1899 = vweird.f32 %v1742
        %vm1900 = vweird.f32 %v1894
        %vm1901 = vmor %vm1899, %vm1900
        %v1902 = vsel %vm1901, %v1894, %v1898
        %v1903 = vand.u32 2147483647, %v1742
        %vm1904 = vcmp.eq.f32.partialorder %v1903, 8.507059e+37
        %v1905 = vand.u32 %v1742, 2147483648
        %v1906 = vor.u32 1.1754944e-38, %v1905
        %v1907 = vsel %vm1904, %v1906, %v1902
        %v1908 = vmul.f32 1.0, %v1907
        %v1909 = vrcp.pop %v1743
        %v1910 = vmul.f32 %v1743, %v1909
        %v1911 = vsub.f32 1.0, %v1910
        %v1912 = vmul.f32 %v1909, %v1911
        %v1913 = vadd.f32 %v1909, %v1912
        %vm1914 = vweird.f32 %v1743
        %vm1915 = vweird.f32 %v1909
        %vm1916 = vmor %vm1914, %vm1915
        %v1917 = vsel %vm1916, %v1909, %v1913
        %v1918 = vand.u32 2147483647, %v1743
        %vm1919 = vcmp.eq.f32.partialorder %v1918, 8.507059e+37
        %v1920 = vand.u32 %v1743, 2147483648
        %v1921 = vor.u32 1.1754944e-38, %v1920
        %v1922 = vsel %vm1919, %v1921, %v1917
        %v1923 = vmul.f32 1.0, %v1922
        %v1924 = vmul.f32 %v520, %v1773
        %v1925 = vmul.f32 %v521, %v1803
        %v1926 = vmul.f32 %v520, %v1833
        %v1927 = vmul.f32 %v521, %v1863
        %v1928 = vmul.f32 %v520, %v1893
        %v1929 = vmul.f32 %v521, %v1923
        %v1930 = vpack.c.bf16 %v1924, %v1924
        %v1931 = vpack.c.bf16 %v1925, %v1925
        %v1932 = vpack.c.bf16 %v1926, %v1926
        %v1933 = vpack.c.bf16 %v1927, %v1927
        %v1934 = vpack.c.bf16 %v1928, %v1928
        %v1935 = vpack.c.bf16 %v1929, %v1929
        %1936 = vst [vmem:[#allocation4 + $0x8] sm:$0xf] %v1930
        %1937 = vst [vmem:[#allocation4 + $0xc] sm:$0xf] %v1931
        %1938 = vst [vmem:[#allocation4 + $0x20] sm:$0xf] %v1932
        %1939 = vst [vmem:[#allocation4 + $0x24] sm:$0xf] %v1933
        %1940 = vst [vmem:[#allocation4 + $0x38] sm:$0xf] %v1934
        %1941 = vst [vmem:[#allocation4 + $0x3c] sm:$0xf] %v1935
        %v1942 = vld [vmem:[#allocation4 + $0x4] sm:$0x8]
        %v1943 = vld [vmem:[#allocation4 + $0x8] sm:$0xf]
        %v1944 = vld [vmem:[#allocation4 + $0xc] sm:$0xf]
        %v1945 = vld [vmem:[#allocation4 + $0x1c] sm:$0x8]
        %v1946 = vld [vmem:[#allocation4 + $0x20] sm:$0xf]
        %v1947 = vld [vmem:[#allocation4 + $0x24] sm:$0xf]
        %v1948 = vld [vmem:[#allocation4 + $0x34] sm:$0x8]
        %v1949 = vld [vmem:[#allocation4 + $0x38] sm:$0xf]
        %v1950 = vld [vmem:[#allocation4 + $0x3c] sm:$0xf]
        %v1952 = vshrl.u32 %v1942, 16
        %v1954 = vrot.slane %v1952, 7
        %v1955 = vrot.slane %v1954, 4
        %v1957 = vshrl.u32 %v1943, 16
        %v1959 = vrot.slane %v1957, 7
        %v1960 = vshll.u32 %v1943, 16
        %v1962 = vor.u32 %v1959, %v1960
        %v1963 = vsel %vm541, %v1955, %v1962
        %v1964 = vrot.slane %v1959, 4
        %v1966 = vshrl.u32 %v1944, 16
        %v1968 = vrot.slane %v1966, 7
        %v1969 = vshll.u32 %v1944, 16
        %v1971 = vor.u32 %v1968, %v1969
        %v1972 = vsel %vm541, %v1964, %v1971
        %v1974 = vshrl.u32 %v1945, 16
        %v1976 = vrot.slane %v1974, 7
        %v1977 = vrot.slane %v1976, 4
        %v1979 = vshrl.u32 %v1946, 16
        %v1981 = vrot.slane %v1979, 7
        %v1982 = vshll.u32 %v1946, 16
        %v1984 = vor.u32 %v1981, %v1982
        %v1985 = vsel %vm541, %v1977, %v1984
        %v1986 = vrot.slane %v1981, 4
        %v1988 = vshrl.u32 %v1947, 16
        %v1990 = vrot.slane %v1988, 7
        %v1991 = vshll.u32 %v1947, 16
        %v1993 = vor.u32 %v1990, %v1991
        %v1994 = vsel %vm541, %v1986, %v1993
        %v1996 = vshrl.u32 %v1948, 16
        %v1998 = vrot.slane %v1996, 7
        %v1999 = vrot.slane %v1998, 4
        %v2001 = vshrl.u32 %v1949, 16
        %v2003 = vrot.slane %v2001, 7
        %v2004 = vshll.u32 %v1949, 16
        %v2006 = vor.u32 %v2003, %v2004
        %v2007 = vsel %vm541, %v1999, %v2006
        %v2008 = vrot.slane %v2003, 4
        %v2010 = vshrl.u32 %v1950, 16
        %v2012 = vrot.slane %v2010, 7
        %v2013 = vshll.u32 %v1950, 16
        %v2015 = vor.u32 %v2012, %v2013
        %v2016 = vsel %vm541, %v2008, %v2015
        %v2017 = vld [vmem:[#allocation13] sm:$0xf]
        %v2018 = vld [vmem:[#allocation13 + $0x4] sm:$0xf]
        %v2019 = vld [vmem:[#allocation13 + $0x8] sm:$0xf]
        %v2020 = vld [vmem:[#allocation13 + $0xc] sm:$0xf]
        %v2021 = vld [vmem:[#allocation13 + $0x10] sm:$0xf]
        %v2022 = vld [vmem:[#allocation13 + $0x14] sm:$0xf]
        %v2023 = vld [vmem:[#allocation13 + $0x18] sm:$0xf]
        %v2024 = vld [vmem:[#allocation13 + $0x1c] sm:$0xf]
        %v2025 = vld [vmem:[#allocation13 + $0x20] sm:$0xf]
        %v2026 = vld [vmem:[#allocation13 + $0x24] sm:$0xf]
        %v2027 = vld [vmem:[#allocation13 + $0x28] sm:$0xf]
        %v2028 = vld [vmem:[#allocation13 + $0x2c] sm:$0xf]
        %v2029 = vld [vmem:[#allocation13 + $0x30] sm:$0xf]
        %v2030 = vld [vmem:[#allocation13 + $0x34] sm:$0xf]
        %v2031 = vld [vmem:[#allocation13 + $0x38] sm:$0xf]
        %v2032 = vld [vmem:[#allocation13 + $0x3c] sm:$0xf]
        %s2033 = scalar_lea.vmem [#allocation13], 64
        %v2034 = vld [vmem:[%s2033] sm:$0xf]
        %v2035 = vld [vmem:[%s2033 + $0x4] sm:$0xf]
        %v2036 = vld [vmem:[%s2033 + $0x8] sm:$0xf]
        %v2037 = vld [vmem:[%s2033 + $0xc] sm:$0xf]
        %v2038 = vld [vmem:[%s2033 + $0x10] sm:$0xf]
        %v2039 = vld [vmem:[%s2033 + $0x14] sm:$0xf]
        %v2040 = vld [vmem:[%s2033 + $0x18] sm:$0xf]
        %v2041 = vld [vmem:[%s2033 + $0x1c] sm:$0xf]
        %v2042 = vld [vmem:[%s2033 + $0x20] sm:$0xf]
        %v2043 = vld [vmem:[%s2033 + $0x24] sm:$0xf]
        %v2044 = vld [vmem:[%s2033 + $0x28] sm:$0xf]
        %v2045 = vld [vmem:[%s2033 + $0x2c] sm:$0xf]
        %v2046 = vld [vmem:[%s2033 + $0x30] sm:$0xf]
        %v2047 = vld [vmem:[%s2033 + $0x34] sm:$0xf]
        %v2048 = vld [vmem:[%s2033 + $0x38] sm:$0xf]
        %v2049 = vld [vmem:[%s2033 + $0x3c] sm:$0xf]
        %v2056 = vunpack.c.l.b16 %v1943
        %v2057 = vunpack.c.l.b16 %v1944
        %v2058 = vunpack.c.l.b16 %v1946
        %v2059 = vunpack.c.l.b16 %v1947
        %v2060 = vunpack.c.l.b16 %v1949
        %v2061 = vunpack.c.l.b16 %v1950
        %v2062 = vpack.c.b16 %v2057, %v2056
        %v2063 = vpack.c.b16 %v2059, %v2058
        %v2064 = vpack.c.b16 %v2061, %v2060
        %v2084 = vunpack.c.l.b16 %v2034
        %v2085 = vunpack.c.l.b16 %v2035
        %v2086 = vunpack.c.l.b16 %v2036
        %v2087 = vunpack.c.l.b16 %v2037
        %v2088 = vunpack.c.l.b16 %v2038
        %v2089 = vunpack.c.l.b16 %v2039
        %v2090 = vunpack.c.l.b16 %v2040
        %v2091 = vunpack.c.l.b16 %v2041
        %v2092 = vunpack.c.l.b16 %v2042
        %v2093 = vunpack.c.l.b16 %v2043
        %v2094 = vunpack.c.l.b16 %v2044
        %v2095 = vunpack.c.l.b16 %v2045
        %v2096 = vunpack.c.l.b16 %v2046
        %v2097 = vunpack.c.l.b16 %v2047
        %v2098 = vunpack.c.l.b16 %v2048
        %v2099 = vunpack.c.l.b16 %v2049
        %v2100 = vpack.c.b16 %v2085, %v2084
        %v2101 = vpack.c.b16 %v2087, %v2086
        %v2102 = vpack.c.b16 %v2089, %v2088
        %v2103 = vpack.c.b16 %v2091, %v2090
        %v2104 = vpack.c.b16 %v2093, %v2092
        %v2105 = vpack.c.b16 %v2095, %v2094
        %v2106 = vpack.c.b16 %v2097, %v2096
        %v2107 = vpack.c.b16 %v2099, %v2098
        %2116 = vmatpush.bf16.msra.mxu0 %v2107
        %2117 = vmatpush.bf16.msra.mxu0 %v2106
        %2118 = vmatpush.bf16.msra.mxu0 %v2105
        %2119 = vmatpush.bf16.msra.mxu0 %v2104
        %2120 = vmatpush.bf16.msra.mxu0 %v2103
        %2121 = vmatpush.bf16.msra.mxu0 %v2102
        %2122 = vmatpush.bf16.msra.mxu0 %v2101
        %2123 = vmatpush.bf16.msra.mxu0 %v2100
        %2124 = vmatmul.bf16.gmra.mxu0 %v2062
        %v2125 = vpop.f32.mrf.mxu0
        %v2126 = vadd.f32 0.0, %v2125
        %v2127 = vpop.f32.mrf.mxu0
        %v2128 = vadd.f32 0.0, %v2127
        %2129 = vmatmul.bf16.gmra.mxu0 %v2063
        %v2130 = vpop.f32.mrf.mxu0
        %v2131 = vadd.f32 0.0, %v2130
        %v2132 = vpop.f32.mrf.mxu0
        %v2133 = vadd.f32 0.0, %v2132
        %2134 = vmatmul.bf16.gmra.mxu0 %v2064
        %v2135 = vpop.f32.mrf.mxu0
        %v2136 = vadd.f32 0.0, %v2135
        %v2137 = vpop.f32.mrf.mxu0
        %v2138 = vadd.f32 0.0, %v2137
        %2139 = vdwg.mxu0
        %v2140 = vunpack.c.l.b16 %v1963
        %v2141 = vunpack.c.l.b16 %v1972
        %v2142 = vunpack.c.l.b16 %v1985
        %v2143 = vunpack.c.l.b16 %v1994
        %v2144 = vunpack.c.l.b16 %v2007
        %v2145 = vunpack.c.l.b16 %v2016
        %v2146 = vpack.c.b16 %v2141, %v2140
        %v2147 = vpack.c.b16 %v2143, %v2142
        %v2148 = vpack.c.b16 %v2145, %v2144
        %v2168 = vunpack.c.l.b16 %v2017
        %v2169 = vunpack.c.l.b16 %v2018
        %v2170 = vunpack.c.l.b16 %v2019
        %v2171 = vunpack.c.l.b16 %v2020
        %v2172 = vunpack.c.l.b16 %v2021
        %v2173 = vunpack.c.l.b16 %v2022
        %v2174 = vunpack.c.l.b16 %v2023
        %v2175 = vunpack.c.l.b16 %v2024
        %v2176 = vunpack.c.l.b16 %v2025
        %v2177 = vunpack.c.l.b16 %v2026
        %v2178 = vunpack.c.l.b16 %v2027
        %v2179 = vunpack.c.l.b16 %v2028
        %v2180 = vunpack.c.l.b16 %v2029
        %v2181 = vunpack.c.l.b16 %v2030
        %v2182 = vunpack.c.l.b16 %v2031
        %v2183 = vunpack.c.l.b16 %v2032
        %v2184 = vpack.c.b16 %v2169, %v2168
        %v2185 = vpack.c.b16 %v2171, %v2170
        %v2186 = vpack.c.b16 %v2173, %v2172
        %v2187 = vpack.c.b16 %v2175, %v2174
        %v2188 = vpack.c.b16 %v2177, %v2176
        %v2189 = vpack.c.b16 %v2179, %v2178
        %v2190 = vpack.c.b16 %v2181, %v2180
        %v2191 = vpack.c.b16 %v2183, %v2182
        %2200 = vmatpush.bf16.msra.mxu0 %v2191
        %2201 = vmatpush.bf16.msra.mxu0 %v2190
        %2202 = vmatpush.bf16.msra.mxu0 %v2189
        %2203 = vmatpush.bf16.msra.mxu0 %v2188
        %2204 = vmatpush.bf16.msra.mxu0 %v2187
        %2205 = vmatpush.bf16.msra.mxu0 %v2186
        %2206 = vmatpush.bf16.msra.mxu0 %v2185
        %2207 = vmatpush.bf16.msra.mxu0 %v2184
        %2208 = vmatmul.bf16.gmra.mxu0 %v2146
        %v2209 = vpop.f32.mrf.mxu0
        %v2210 = vadd.f32 %v2126, %v2209
        %v2211 = vpop.f32.mrf.mxu0
        %v2212 = vadd.f32 %v2128, %v2211
        %2213 = vmatmul.bf16.gmra.mxu0 %v2147
        %v2214 = vpop.f32.mrf.mxu0
        %v2215 = vadd.f32 %v2131, %v2214
        %v2216 = vpop.f32.mrf.mxu0
        %v2217 = vadd.f32 %v2133, %v2216
        %2218 = vmatmul.bf16.gmra.mxu0 %v2148
        %v2219 = vpop.f32.mrf.mxu0
        %v2220 = vadd.f32 %v2136, %v2219
        %v2221 = vpop.f32.mrf.mxu0
        %v2222 = vadd.f32 %v2138, %v2221
        %2223 = vdwg.mxu0
        %v2224 = vld [vmem:[#allocation4 + $0x8] sm:$0xf]
        %v2225 = vld [vmem:[#allocation4 + $0xc] sm:$0xf]
        %v2226 = vld [vmem:[#allocation4 + $0x10] sm:$0x1]
        %v2227 = vld [vmem:[#allocation4 + $0x20] sm:$0xf]
        %v2228 = vld [vmem:[#allocation4 + $0x24] sm:$0xf]
        %v2229 = vld [vmem:[#allocation4 + $0x28] sm:$0x1]
        %v2230 = vld [vmem:[#allocation4 + $0x38] sm:$0xf]
        %v2231 = vld [vmem:[#allocation4 + $0x3c] sm:$0xf]
        %v2232 = vld [vmem:[#allocation4 + $0x40] sm:$0x1]
        %v2234 = vshrl.u32 %v2224, 16
        %v2236 = vrot.slane %v2234, 4
        %v2237 = vshll.u32 %v2224, 16
        %v2239 = vrot.slane %v2237, 5
        %v2240 = vor.u32 %v2236, %v2239
        %v2241 = vrot.slane %v2240, 4
        %v2243 = vshll.u32 %v2225, 16
        %v2245 = vrot.slane %v2243, 5
        %v2246 = vsel %vm967, %v2241, %v2245
        %v2247 = vshrl.u32 %v2225, 16
        %v2249 = vrot.slane %v2247, 4
        %v2250 = vor.u32 %v2249, %v2245
        %v2251 = vrot.slane %v2250, 4
        %v2253 = vshll.u32 %v2226, 16
        %v2255 = vrot.slane %v2253, 5
        %v2256 = vsel %vm967, %v2251, %v2255
        %v2258 = vshrl.u32 %v2227, 16
        %v2260 = vrot.slane %v2258, 4
        %v2261 = vshll.u32 %v2227, 16
        %v2263 = vrot.slane %v2261, 5
        %v2264 = vor.u32 %v2260, %v2263
        %v2265 = vrot.slane %v2264, 4
        %v2267 = vshll.u32 %v2228, 16
        %v2269 = vrot.slane %v2267, 5
        %v2270 = vsel %vm967, %v2265, %v2269
        %v2271 = vshrl.u32 %v2228, 16
        %v2273 = vrot.slane %v2271, 4
        %v2274 = vor.u32 %v2273, %v2269
        %v2275 = vrot.slane %v2274, 4
        %v2277 = vshll.u32 %v2229, 16
        %v2279 = vrot.slane %v2277, 5
        %v2280 = vsel %vm967, %v2275, %v2279
        %v2282 = vshrl.u32 %v2230, 16
        %v2284 = vrot.slane %v2282, 4
        %v2285 = vshll.u32 %v2230, 16
        %v2287 = vrot.slane %v2285, 5
        %v2288 = vor.u32 %v2284, %v2287
        %v2289 = vrot.slane %v2288, 4
        %v2291 = vshll.u32 %v2231, 16
        %v2293 = vrot.slane %v2291, 5
        %v2294 = vsel %vm967, %v2289, %v2293
        %v2295 = vshrl.u32 %v2231, 16
        %v2297 = vrot.slane %v2295, 4
        %v2298 = vor.u32 %v2297, %v2293
        %v2299 = vrot.slane %v2298, 4
        %v2301 = vshll.u32 %v2232, 16
        %v2303 = vrot.slane %v2301, 5
        %v2304 = vsel %vm967, %v2299, %v2303
        %s2305 = scalar_lea.vmem [#allocation13], 128
        %v2306 = vld [vmem:[%s2305] sm:$0xf]
        %v2307 = vld [vmem:[%s2305 + $0x4] sm:$0xf]
        %v2308 = vld [vmem:[%s2305 + $0x8] sm:$0xf]
        %v2309 = vld [vmem:[%s2305 + $0xc] sm:$0xf]
        %v2310 = vld [vmem:[%s2305 + $0x10] sm:$0xf]
        %v2311 = vld [vmem:[%s2305 + $0x14] sm:$0xf]
        %v2312 = vld [vmem:[%s2305 + $0x18] sm:$0xf]
        %v2313 = vld [vmem:[%s2305 + $0x1c] sm:$0xf]
        %v2314 = vld [vmem:[%s2305 + $0x20] sm:$0xf]
        %v2315 = vld [vmem:[%s2305 + $0x24] sm:$0xf]
        %v2316 = vld [vmem:[%s2305 + $0x28] sm:$0xf]
        %v2317 = vld [vmem:[%s2305 + $0x2c] sm:$0xf]
        %v2318 = vld [vmem:[%s2305 + $0x30] sm:$0xf]
        %v2319 = vld [vmem:[%s2305 + $0x34] sm:$0xf]
        %v2320 = vld [vmem:[%s2305 + $0x38] sm:$0xf]
        %v2321 = vld [vmem:[%s2305 + $0x3c] sm:$0xf]
        %v2322 = vunpack.c.l.b16 %v2246
        %v2323 = vunpack.c.l.b16 %v2256
        %v2324 = vunpack.c.l.b16 %v2270
        %v2325 = vunpack.c.l.b16 %v2280
        %v2326 = vunpack.c.l.b16 %v2294
        %v2327 = vunpack.c.l.b16 %v2304
        %v2328 = vpack.c.b16 %v2323, %v2322
        %v2329 = vpack.c.b16 %v2325, %v2324
        %v2330 = vpack.c.b16 %v2327, %v2326
        %v2350 = vunpack.c.l.b16 %v2306
        %v2351 = vunpack.c.l.b16 %v2307
        %v2352 = vunpack.c.l.b16 %v2308
        %v2353 = vunpack.c.l.b16 %v2309
        %v2354 = vunpack.c.l.b16 %v2310
        %v2355 = vunpack.c.l.b16 %v2311
        %v2356 = vunpack.c.l.b16 %v2312
        %v2357 = vunpack.c.l.b16 %v2313
        %v2358 = vunpack.c.l.b16 %v2314
        %v2359 = vunpack.c.l.b16 %v2315
        %v2360 = vunpack.c.l.b16 %v2316
        %v2361 = vunpack.c.l.b16 %v2317
        %v2362 = vunpack.c.l.b16 %v2318
        %v2363 = vunpack.c.l.b16 %v2319
        %v2364 = vunpack.c.l.b16 %v2320
        %v2365 = vunpack.c.l.b16 %v2321
        %v2366 = vpack.c.b16 %v2351, %v2350
        %v2367 = vpack.c.b16 %v2353, %v2352
        %v2368 = vpack.c.b16 %v2355, %v2354
        %v2369 = vpack.c.b16 %v2357, %v2356
        %v2370 = vpack.c.b16 %v2359, %v2358
        %v2371 = vpack.c.b16 %v2361, %v2360
        %v2372 = vpack.c.b16 %v2363, %v2362
        %v2373 = vpack.c.b16 %v2365, %v2364
        %2382 = vmatpush.bf16.msra.mxu0 %v2373
        %2383 = vmatpush.bf16.msra.mxu0 %v2372
        %2384 = vmatpush.bf16.msra.mxu0 %v2371
        %2385 = vmatpush.bf16.msra.mxu0 %v2370
        %2386 = vmatpush.bf16.msra.mxu0 %v2369
        %2387 = vmatpush.bf16.msra.mxu0 %v2368
        %2388 = vmatpush.bf16.msra.mxu0 %v2367
        %2389 = vmatpush.bf16.msra.mxu0 %v2366
        %2390 = vmatmul.bf16.gmra.mxu0 %v2328
        %v2391 = vpop.f32.mrf.mxu0
        %v2392 = vadd.f32 0.0, %v2391
        %v2393 = vpop.f32.mrf.mxu0
        %v2394 = vadd.f32 0.0, %v2393
        %2395 = vmatmul.bf16.gmra.mxu0 %v2329
        %v2396 = vpop.f32.mrf.mxu0
        %v2397 = vadd.f32 0.0, %v2396
        %v2398 = vpop.f32.mrf.mxu0
        %v2399 = vadd.f32 0.0, %v2398
        %2400 = vmatmul.bf16.gmra.mxu0 %v2330
        %v2401 = vpop.f32.mrf.mxu0
        %v2402 = vadd.f32 0.0, %v2401
        %v2403 = vpop.f32.mrf.mxu0
        %v2404 = vadd.f32 0.0, %v2403
        %2405 = vdwg.mxu0
        %v2406 = vadd.f32 %v2210, %v2392
        %v2407 = vadd.f32 %v2212, %v2394
        %v2408 = vadd.f32 %v2215, %v2397
        %v2409 = vadd.f32 %v2217, %v2399
        %v2410 = vadd.f32 %v2220, %v2402
        %v2411 = vadd.f32 %v2222, %v2404
        %v2412 = vadd.f32 %v1213, %v2406
        %v2413 = vadd.f32 %v1216, %v2407
        %v2414 = vadd.f32 %v1219, %v2408
        %v2415 = vadd.f32 %v1222, %v2409
        %v2416 = vadd.f32 %v1225, %v2410
        %v2417 = vadd.f32 %v1228, %v2411
        %v2418 = vld [vmem:[%s7] sm:$0x1]
        %v2420 = vperm.slane %v2418, 0
        %v2422 = vadd.f32 %v2412, %v2420
        %v2423 = vadd.f32 %v2413, %v2420
        %v2424 = vadd.f32 %v2414, %v2420
        %v2425 = vadd.f32 %v2415, %v2420
        %v2426 = vadd.f32 %v2416, %v2420
        %v2427 = vadd.f32 %v2417, %v2420
        %v2428 = vtanh.pop %v2422
        %v2429 = vtanh.pop %v2423
        %v2430 = vtanh.pop %v2424
        %v2431 = vtanh.pop %v2425
        %v2432 = vtanh.pop %v2426
        %v2433 = vtanh.pop %v2427
        %v2434 = vsub.f32 1.0, %v1758
        %v2435 = vsub.f32 1.0, %v1788
        %v2436 = vsub.f32 1.0, %v1818
        %v2437 = vsub.f32 1.0, %v1848
        %v2438 = vsub.f32 1.0, %v1878
        %v2439 = vsub.f32 1.0, %v1908
        %v2440 = vmul.f32 %v520, %v2434
        %v2441 = vmul.f32 %v521, %v2435
        %v2442 = vmul.f32 %v520, %v2436
        %v2443 = vmul.f32 %v521, %v2437
        %v2444 = vmul.f32 %v520, %v2438
        %v2445 = vmul.f32 %v521, %v2439
        %v2446 = vmul.f32 %v2428, %v1758
        %v2447 = vmul.f32 %v2429, %v1788
        %v2448 = vmul.f32 %v2430, %v1818
        %v2449 = vmul.f32 %v2431, %v1848
        %v2450 = vmul.f32 %v2432, %v1878
        %v2451 = vmul.f32 %v2433, %v1908
        %v2452 = vadd.f32 %v2440, %v2446
        %v2453 = vadd.f32 %v2441, %v2447
        %v2454 = vadd.f32 %v2442, %v2448
        %v2455 = vadd.f32 %v2443, %v2449
        %v2456 = vadd.f32 %v2444, %v2450
        %v2457 = vadd.f32 %v2445, %v2451
        %v2458 = vpack.c.bf16 %v2452, %v2452
        %v2459 = vpack.c.bf16 %v2453, %v2453
        %v2460 = vpack.c.bf16 %v2454, %v2454
        %v2461 = vpack.c.bf16 %v2455, %v2455
        %v2462 = vpack.c.bf16 %v2456, %v2456
        %v2463 = vpack.c.bf16 %v2457, %v2457
        %2464 = vst [vmem:[#allocation4 + $0x8] sm:$0xf] %v2458
        %2465 = vst [vmem:[#allocation4 + $0xc] sm:$0xf] %v2459
        %2466 = vst [vmem:[#allocation4 + $0x20] sm:$0xf] %v2460
        %2467 = vst [vmem:[#allocation4 + $0x24] sm:$0xf] %v2461
        %2468 = vst [vmem:[#allocation4 + $0x38] sm:$0xf] %v2462
        %2469 = vst [vmem:[#allocation4 + $0x3c] sm:$0xf] %v2463
        %v2470 = vld [vmem:[#allocation4 + $0x4] sm:$0x8]
        %v2471 = vld [vmem:[#allocation4 + $0x8] sm:$0xf]
        %v2472 = vld [vmem:[#allocation4 + $0xc] sm:$0xf]
        %v2473 = vld [vmem:[#allocation4 + $0x1c] sm:$0x8]
        %v2474 = vld [vmem:[#allocation4 + $0x20] sm:$0xf]
        %v2475 = vld [vmem:[#allocation4 + $0x24] sm:$0xf]
        %v2476 = vld [vmem:[#allocation4 + $0x34] sm:$0x8]
        %v2477 = vld [vmem:[#allocation4 + $0x38] sm:$0xf]
        %v2478 = vld [vmem:[#allocation4 + $0x3c] sm:$0xf]
        %v2480 = vshrl.u32 %v2470, 16
        %v2482 = vrot.slane %v2480, 7
        %v2483 = vrot.slane %v2482, 4
        %v2485 = vshrl.u32 %v2471, 16
        %v2487 = vrot.slane %v2485, 7
        %v2488 = vshll.u32 %v2471, 16
        %v2490 = vor.u32 %v2487, %v2488
        %v2491 = vsel %vm541, %v2483, %v2490
        %v2492 = vrot.slane %v2487, 4
        %v2494 = vshrl.u32 %v2472, 16
        %v2496 = vrot.slane %v2494, 7
        %v2497 = vshll.u32 %v2472, 16
        %v2499 = vor.u32 %v2496, %v2497
        %v2500 = vsel %vm541, %v2492, %v2499
        %v2502 = vshrl.u32 %v2473, 16
        %v2504 = vrot.slane %v2502, 7
        %v2505 = vrot.slane %v2504, 4
        %v2507 = vshrl.u32 %v2474, 16
        %v2509 = vrot.slane %v2507, 7
        %v2510 = vshll.u32 %v2474, 16
        %v2512 = vor.u32 %v2509, %v2510
        %v2513 = vsel %vm541, %v2505, %v2512
        %v2514 = vrot.slane %v2509, 4
        %v2516 = vshrl.u32 %v2475, 16
        %v2518 = vrot.slane %v2516, 7
        %v2519 = vshll.u32 %v2475, 16
        %v2521 = vor.u32 %v2518, %v2519
        %v2522 = vsel %vm541, %v2514, %v2521
        %v2524 = vshrl.u32 %v2476, 16
        %v2526 = vrot.slane %v2524, 7
        %v2527 = vrot.slane %v2526, 4
        %v2529 = vshrl.u32 %v2477, 16
        %v2531 = vrot.slane %v2529, 7
        %v2532 = vshll.u32 %v2477, 16
        %v2534 = vor.u32 %v2531, %v2532
        %v2535 = vsel %vm541, %v2527, %v2534
        %v2536 = vrot.slane %v2531, 4
        %v2538 = vshrl.u32 %v2478, 16
        %v2540 = vrot.slane %v2538, 7
        %v2541 = vshll.u32 %v2478, 16
        %v2543 = vor.u32 %v2540, %v2541
        %v2544 = vsel %vm541, %v2536, %v2543
        %v2545 = vld [vmem:[#allocation14] sm:$0xf]
        %v2546 = vld [vmem:[#allocation14 + $0x4] sm:$0xf]
        %v2547 = vld [vmem:[#allocation14 + $0x8] sm:$0xf]
        %v2548 = vld [vmem:[#allocation14 + $0xc] sm:$0xf]
        %v2549 = vld [vmem:[#allocation14 + $0x10] sm:$0xf]
        %v2550 = vld [vmem:[#allocation14 + $0x14] sm:$0xf]
        %v2551 = vld [vmem:[#allocation14 + $0x18] sm:$0xf]
        %v2552 = vld [vmem:[#allocation14 + $0x1c] sm:$0xf]
        %v2553 = vld [vmem:[#allocation14 + $0x20] sm:$0xf]
        %v2554 = vld [vmem:[#allocation14 + $0x24] sm:$0xf]
        %v2555 = vld [vmem:[#allocation14 + $0x28] sm:$0xf]
        %v2556 = vld [vmem:[#allocation14 + $0x2c] sm:$0xf]
        %v2557 = vld [vmem:[#allocation14 + $0x30] sm:$0xf]
        %v2558 = vld [vmem:[#allocation14 + $0x34] sm:$0xf]
        %v2559 = vld [vmem:[#allocation14 + $0x38] sm:$0xf]
        %v2560 = vld [vmem:[#allocation14 + $0x3c] sm:$0xf]
        %s2561 = scalar_lea.vmem [#allocation14], 64
        %v2562 = vld [vmem:[%s2561] sm:$0xf]
        %v2563 = vld [vmem:[%s2561 + $0x4] sm:$0xf]
        %v2564 = vld [vmem:[%s2561 + $0x8] sm:$0xf]
        %v2565 = vld [vmem:[%s2561 + $0xc] sm:$0xf]
        %v2566 = vld [vmem:[%s2561 + $0x10] sm:$0xf]
        %v2567 = vld [vmem:[%s2561 + $0x14] sm:$0xf]
        %v2568 = vld [vmem:[%s2561 + $0x18] sm:$0xf]
        %v2569 = vld [vmem:[%s2561 + $0x1c] sm:$0xf]
        %v2570 = vld [vmem:[%s2561 + $0x20] sm:$0xf]
        %v2571 = vld [vmem:[%s2561 + $0x24] sm:$0xf]
        %v2572 = vld [vmem:[%s2561 + $0x28] sm:$0xf]
        %v2573 = vld [vmem:[%s2561 + $0x2c] sm:$0xf]
        %v2574 = vld [vmem:[%s2561 + $0x30] sm:$0xf]
        %v2575 = vld [vmem:[%s2561 + $0x34] sm:$0xf]
        %v2576 = vld [vmem:[%s2561 + $0x38] sm:$0xf]
        %v2577 = vld [vmem:[%s2561 + $0x3c] sm:$0xf]
        %v2584 = vunpack.c.l.b16 %v2471
        %v2585 = vunpack.c.l.b16 %v2472
        %v2586 = vunpack.c.l.b16 %v2474
        %v2587 = vunpack.c.l.b16 %v2475
        %v2588 = vunpack.c.l.b16 %v2477
        %v2589 = vunpack.c.l.b16 %v2478
        %v2590 = vpack.c.b16 %v2585, %v2584
        %v2591 = vpack.c.b16 %v2587, %v2586
        %v2592 = vpack.c.b16 %v2589, %v2588
        %v2612 = vunpack.c.l.b16 %v2562
        %v2613 = vunpack.c.l.b16 %v2563
        %v2614 = vunpack.c.l.b16 %v2564
        %v2615 = vunpack.c.l.b16 %v2565
        %v2616 = vunpack.c.l.b16 %v2566
        %v2617 = vunpack.c.l.b16 %v2567
        %v2618 = vunpack.c.l.b16 %v2568
        %v2619 = vunpack.c.l.b16 %v2569
        %v2620 = vunpack.c.l.b16 %v2570
        %v2621 = vunpack.c.l.b16 %v2571
        %v2622 = vunpack.c.l.b16 %v2572
        %v2623 = vunpack.c.l.b16 %v2573
        %v2624 = vunpack.c.l.b16 %v2574
        %v2625 = vunpack.c.l.b16 %v2575
        %v2626 = vunpack.c.l.b16 %v2576
        %v2627 = vunpack.c.l.b16 %v2577
        %v2628 = vpack.c.b16 %v2613, %v2612
        %v2629 = vpack.c.b16 %v2615, %v2614
        %v2630 = vpack.c.b16 %v2617, %v2616
        %v2631 = vpack.c.b16 %v2619, %v2618
        %v2632 = vpack.c.b16 %v2621, %v2620
        %v2633 = vpack.c.b16 %v2623, %v2622
        %v2634 = vpack.c.b16 %v2625, %v2624
        %v2635 = vpack.c.b16 %v2627, %v2626
        %2644 = vmatpush.bf16.msra.mxu0 %v2635
        %2645 = vmatpush.bf16.msra.mxu0 %v2634
        %2646 = vmatpush.bf16.msra.mxu0 %v2633
        %2647 = vmatpush.bf16.msra.mxu0 %v2632
        %2648 = vmatpush.bf16.msra.mxu0 %v2631
        %2649 = vmatpush.bf16.msra.mxu0 %v2630
        %2650 = vmatpush.bf16.msra.mxu0 %v2629
        %2651 = vmatpush.bf16.msra.mxu0 %v2628
        %2652 = vmatmul.bf16.gmra.mxu0 %v2590
        %v2653 = vpop.f32.mrf.mxu0
        %v2654 = vadd.f32 0.0, %v2653
        %v2655 = vpop.f32.mrf.mxu0
        %v2656 = vadd.f32 0.0, %v2655
        %2657 = vmatmul.bf16.gmra.mxu0 %v2591
        %v2658 = vpop.f32.mrf.mxu0
        %v2659 = vadd.f32 0.0, %v2658
        %v2660 = vpop.f32.mrf.mxu0
        %v2661 = vadd.f32 0.0, %v2660
        %2662 = vmatmul.bf16.gmra.mxu0 %v2592
        %v2663 = vpop.f32.mrf.mxu0
        %v2664 = vadd.f32 0.0, %v2663
        %v2665 = vpop.f32.mrf.mxu0
        %v2666 = vadd.f32 0.0, %v2665
        %2667 = vdwg.mxu0
        %v2668 = vunpack.c.l.b16 %v2491
        %v2669 = vunpack.c.l.b16 %v2500
        %v2670 = vunpack.c.l.b16 %v2513
        %v2671 = vunpack.c.l.b16 %v2522
        %v2672 = vunpack.c.l.b16 %v2535
        %v2673 = vunpack.c.l.b16 %v2544
        %v2674 = vpack.c.b16 %v2669, %v2668
        %v2675 = vpack.c.b16 %v2671, %v2670
        %v2676 = vpack.c.b16 %v2673, %v2672
        %v2696 = vunpack.c.l.b16 %v2545
        %v2697 = vunpack.c.l.b16 %v2546
        %v2698 = vunpack.c.l.b16 %v2547
        %v2699 = vunpack.c.l.b16 %v2548
        %v2700 = vunpack.c.l.b16 %v2549
        %v2701 = vunpack.c.l.b16 %v2550
        %v2702 = vunpack.c.l.b16 %v2551
        %v2703 = vunpack.c.l.b16 %v2552
        %v2704 = vunpack.c.l.b16 %v2553
        %v2705 = vunpack.c.l.b16 %v2554
        %v2706 = vunpack.c.l.b16 %v2555
        %v2707 = vunpack.c.l.b16 %v2556
        %v2708 = vunpack.c.l.b16 %v2557
        %v2709 = vunpack.c.l.b16 %v2558
        %v2710 = vunpack.c.l.b16 %v2559
        %v2711 = vunpack.c.l.b16 %v2560
        %v2712 = vpack.c.b16 %v2697, %v2696
        %v2713 = vpack.c.b16 %v2699, %v2698
        %v2714 = vpack.c.b16 %v2701, %v2700
        %v2715 = vpack.c.b16 %v2703, %v2702
        %v2716 = vpack.c.b16 %v2705, %v2704
        %v2717 = vpack.c.b16 %v2707, %v2706
        %v2718 = vpack.c.b16 %v2709, %v2708
        %v2719 = vpack.c.b16 %v2711, %v2710
        %2728 = vmatpush.bf16.msra.mxu0 %v2719
        %2729 = vmatpush.bf16.msra.mxu0 %v2718
        %2730 = vmatpush.bf16.msra.mxu0 %v2717
        %2731 = vmatpush.bf16.msra.mxu0 %v2716
        %2732 = vmatpush.bf16.msra.mxu0 %v2715
        %2733 = vmatpush.bf16.msra.mxu0 %v2714
        %2734 = vmatpush.bf16.msra.mxu0 %v2713
        %2735 = vmatpush.bf16.msra.mxu0 %v2712
        %2736 = vmatmul.bf16.gmra.mxu0 %v2674
        %v2737 = vpop.f32.mrf.mxu0
        %v2738 = vadd.f32 %v2654, %v2737
        %v2739 = vpop.f32.mrf.mxu0
        %v2740 = vadd.f32 %v2656, %v2739
        %2741 = vmatmul.bf16.gmra.mxu0 %v2675
        %v2742 = vpop.f32.mrf.mxu0
        %v2743 = vadd.f32 %v2659, %v2742
        %v2744 = vpop.f32.mrf.mxu0
        %v2745 = vadd.f32 %v2661, %v2744
        %2746 = vmatmul.bf16.gmra.mxu0 %v2676
        %v2747 = vpop.f32.mrf.mxu0
        %v2748 = vadd.f32 %v2664, %v2747
        %v2749 = vpop.f32.mrf.mxu0
        %v2750 = vadd.f32 %v2666, %v2749
        %2751 = vdwg.mxu0
        %v2752 = vld [vmem:[#allocation4 + $0x8] sm:$0xf]
        %v2753 = vld [vmem:[#allocation4 + $0xc] sm:$0xf]
        %v2754 = vld [vmem:[#allocation4 + $0x10] sm:$0x1]
        %v2755 = vld [vmem:[#allocation4 + $0x20] sm:$0xf]
        %v2756 = vld [vmem:[#allocation4 + $0x24] sm:$0xf]
        %v2757 = vld [vmem:[#allocation4 + $0x28] sm:$0x1]
        %v2758 = vld [vmem:[#allocation4 + $0x38] sm:$0xf]
        %v2759 = vld [vmem:[#allocation4 + $0x3c] sm:$0xf]
        %v2760 = vld [vmem:[#allocation4 + $0x40] sm:$0x1]
        %v2762 = vshrl.u32 %v2752, 16
        %v2764 = vrot.slane %v2762, 4
        %v2765 = vshll.u32 %v2752, 16
        %v2767 = vrot.slane %v2765, 5
        %v2768 = vor.u32 %v2764, %v2767
        %v2769 = vrot.slane %v2768, 4
        %v2771 = vshll.u32 %v2753, 16
        %v2773 = vrot.slane %v2771, 5
        %v2774 = vsel %vm967, %v2769, %v2773
        %v2775 = vshrl.u32 %v2753, 16
        %v2777 = vrot.slane %v2775, 4
        %v2778 = vor.u32 %v2777, %v2773
        %v2779 = vrot.slane %v2778, 4
        %v2781 = vshll.u32 %v2754, 16
        %v2783 = vrot.slane %v2781, 5
        %v2784 = vsel %vm967, %v2779, %v2783
        %v2786 = vshrl.u32 %v2755, 16
        %v2788 = vrot.slane %v2786, 4
        %v2789 = vshll.u32 %v2755, 16
        %v2791 = vrot.slane %v2789, 5
        %v2792 = vor.u32 %v2788, %v2791
        %v2793 = vrot.slane %v2792, 4
        %v2795 = vshll.u32 %v2756, 16
        %v2797 = vrot.slane %v2795, 5
        %v2798 = vsel %vm967, %v2793, %v2797
        %v2799 = vshrl.u32 %v2756, 16
        %v2801 = vrot.slane %v2799, 4
        %v2802 = vor.u32 %v2801, %v2797
        %v2803 = vrot.slane %v2802, 4
        %v2805 = vshll.u32 %v2757, 16
        %v2807 = vrot.slane %v2805, 5
        %v2808 = vsel %vm967, %v2803, %v2807
        %v2810 = vshrl.u32 %v2758, 16
        %v2812 = vrot.slane %v2810, 4
        %v2813 = vshll.u32 %v2758, 16
        %v2815 = vrot.slane %v2813, 5
        %v2816 = vor.u32 %v2812, %v2815
        %v2817 = vrot.slane %v2816, 4
        %v2819 = vshll.u32 %v2759, 16
        %v2821 = vrot.slane %v2819, 5
        %v2822 = vsel %vm967, %v2817, %v2821
        %v2823 = vshrl.u32 %v2759, 16
        %v2825 = vrot.slane %v2823, 4
        %v2826 = vor.u32 %v2825, %v2821
        %v2827 = vrot.slane %v2826, 4
        %v2829 = vshll.u32 %v2760, 16
        %v2831 = vrot.slane %v2829, 5
        %v2832 = vsel %vm967, %v2827, %v2831
        %s2833 = scalar_lea.vmem [#allocation14], 128
        %v2834 = vld [vmem:[%s2833] sm:$0xf]
        %v2835 = vld [vmem:[%s2833 + $0x4] sm:$0xf]
        %v2836 = vld [vmem:[%s2833 + $0x8] sm:$0xf]
        %v2837 = vld [vmem:[%s2833 + $0xc] sm:$0xf]
        %v2838 = vld [vmem:[%s2833 + $0x10] sm:$0xf]
        %v2839 = vld [vmem:[%s2833 + $0x14] sm:$0xf]
        %v2840 = vld [vmem:[%s2833 + $0x18] sm:$0xf]
        %v2841 = vld [vmem:[%s2833 + $0x1c] sm:$0xf]
        %v2842 = vld [vmem:[%s2833 + $0x20] sm:$0xf]
        %v2843 = vld [vmem:[%s2833 + $0x24] sm:$0xf]
        %v2844 = vld [vmem:[%s2833 + $0x28] sm:$0xf]
        %v2845 = vld [vmem:[%s2833 + $0x2c] sm:$0xf]
        %v2846 = vld [vmem:[%s2833 + $0x30] sm:$0xf]
        %v2847 = vld [vmem:[%s2833 + $0x34] sm:$0xf]
        %v2848 = vld [vmem:[%s2833 + $0x38] sm:$0xf]
        %v2849 = vld [vmem:[%s2833 + $0x3c] sm:$0xf]
        %v2850 = vunpack.c.l.b16 %v2774
        %v2851 = vunpack.c.l.b16 %v2784
        %v2852 = vunpack.c.l.b16 %v2798
        %v2853 = vunpack.c.l.b16 %v2808
        %v2854 = vunpack.c.l.b16 %v2822
        %v2855 = vunpack.c.l.b16 %v2832
        %v2856 = vpack.c.b16 %v2851, %v2850
        %v2857 = vpack.c.b16 %v2853, %v2852
        %v2858 = vpack.c.b16 %v2855, %v2854
        %v2878 = vunpack.c.l.b16 %v2834
        %v2879 = vunpack.c.l.b16 %v2835
        %v2880 = vunpack.c.l.b16 %v2836
        %v2881 = vunpack.c.l.b16 %v2837
        %v2882 = vunpack.c.l.b16 %v2838
        %v2883 = vunpack.c.l.b16 %v2839
        %v2884 = vunpack.c.l.b16 %v2840
        %v2885 = vunpack.c.l.b16 %v2841
        %v2886 = vunpack.c.l.b16 %v2842
        %v2887 = vunpack.c.l.b16 %v2843
        %v2888 = vunpack.c.l.b16 %v2844
        %v2889 = vunpack.c.l.b16 %v2845
        %v2890 = vunpack.c.l.b16 %v2846
        %v2891 = vunpack.c.l.b16 %v2847
        %v2892 = vunpack.c.l.b16 %v2848
        %v2893 = vunpack.c.l.b16 %v2849
        %v2894 = vpack.c.b16 %v2879, %v2878
        %v2895 = vpack.c.b16 %v2881, %v2880
        %v2896 = vpack.c.b16 %v2883, %v2882
        %v2897 = vpack.c.b16 %v2885, %v2884
        %v2898 = vpack.c.b16 %v2887, %v2886
        %v2899 = vpack.c.b16 %v2889, %v2888
        %v2900 = vpack.c.b16 %v2891, %v2890
        %v2901 = vpack.c.b16 %v2893, %v2892
        %2910 = vmatpush.bf16.msra.mxu0 %v2901
        %2911 = vmatpush.bf16.msra.mxu0 %v2900
        %2912 = vmatpush.bf16.msra.mxu0 %v2899
        %2913 = vmatpush.bf16.msra.mxu0 %v2898
        %2914 = vmatpush.bf16.msra.mxu0 %v2897
        %2915 = vmatpush.bf16.msra.mxu0 %v2896
        %2916 = vmatpush.bf16.msra.mxu0 %v2895
        %2917 = vmatpush.bf16.msra.mxu0 %v2894
        %2918 = vmatmul.bf16.gmra.mxu0 %v2856
        %v2919 = vpop.f32.mrf.mxu0
        %v2920 = vadd.f32 0.0, %v2919
        %v2921 = vpop.f32.mrf.mxu0
        %v2922 = vadd.f32 0.0, %v2921
        %2923 = vmatmul.bf16.gmra.mxu0 %v2857
        %v2924 = vpop.f32.mrf.mxu0
        %v2925 = vadd.f32 0.0, %v2924
        %v2926 = vpop.f32.mrf.mxu0
        %v2927 = vadd.f32 0.0, %v2926
        %2928 = vmatmul.bf16.gmra.mxu0 %v2858
        %v2929 = vpop.f32.mrf.mxu0
        %v2930 = vadd.f32 0.0, %v2929
        %v2931 = vpop.f32.mrf.mxu0
        %v2932 = vadd.f32 0.0, %v2931
        %2933 = vdwg.mxu0
        %v2934 = vadd.f32 %v2738, %v2920
        %v2935 = vadd.f32 %v2740, %v2922
        %v2936 = vadd.f32 %v2743, %v2925
        %v2937 = vadd.f32 %v2745, %v2927
        %v2938 = vadd.f32 %v2748, %v2930
        %v2939 = vadd.f32 %v2750, %v2932
        %v2940 = vld [vmem:[%s8] sm:$0x1]
        %v2942 = vperm.slane %v2940, 0
        %v2944 = vadd.f32 %v2934, %v2942
        %v2945 = vadd.f32 %v2935, %v2942
        %v2946 = vadd.f32 %v2936, %v2942
        %v2947 = vadd.f32 %v2937, %v2942
        %v2948 = vadd.f32 %v2938, %v2942
        %v2949 = vadd.f32 %v2939, %v2942
        %v2950 = vpack.c.bf16 %v2944, %v2944
        %v2951 = vpack.c.bf16 %v2945, %v2945
        %v2952 = vpack.c.bf16 %v2946, %v2946
        %v2953 = vpack.c.bf16 %v2947, %v2947
        %v2954 = vpack.c.bf16 %v2948, %v2948
        %v2955 = vpack.c.bf16 %v2949, %v2949
        %2956 = vst [vmem:[%s460] sm:$0xf] %v2950
        %2957 = vst [vmem:[%s460 + $0x4] sm:$0xf] %v2951
        %2958 = vst [vmem:[%s460 + $0x8] sm:$0xf] %v2952
        %2959 = vst [vmem:[%s460 + $0xc] sm:$0xf] %v2953
        %2960 = vst [vmem:[%s460 + $0x10] sm:$0xf] %v2954
        %2961 = vst [vmem:[%s460 + $0x14] sm:$0xf] %v2955
        %s2962 = sand.u32 %s238, 1
        %s2963 = scalar_lea.sflag [#allocation7], %s2962
        %s2964 = sand.u32 %s238, 1
        %s2965 = smul.addr %s2964, 24
        %s2966 = scalar_lea.vmem [#allocation16], %s2965
        // Predicated region
        $region81: #{tpu_custom_call.1} parent=55 // pred_check
          %p2967 = pneg %p248
        $region82: #{tpu_custom_call.1} parent=55 // pred_check_branch
          %2969 = sbr.rel (%p2967) target = $region84
        $region83: #{tpu_custom_call.1} parent=55 // pred_region
          %2971 = vsyncadd %s2963, 0
          %s2972 = smul.addr %s31, 6
          %s2973 = smul.addr %s2972, 4
          %s2974 = scalar_lea.hbm %s9, %s2973
          %s2975 = sshll.u32 %s2966, 4
          %s2976 = int_to_ptr.vmem [resolvable:$true] %s2975
          %s2977 = sshll.u32 %s2974, 4
          %s2978 = int_to_ptr.hbm [resolvable:$true] %s2977
          %2983 = dma.vmem_to_hbm [thread:$0]  %s2976, 384, %s2978, %s2963, 64, 64, 4
        $region84: #{tpu_custom_call.1} parent=55 // pred_fallthru
          _
      $region56: #{tpu_custom_call.1} parent=5 // pred_fallthru
        _
      %p2984 = scmp.le.s32.totalorder 2, %s26
      // Predicated region
      $region85: #{tpu_custom_call.1} parent=5 // pred_check
        %p2985 = pneg %p2984
      $region86: #{tpu_custom_call.1} parent=5 // pred_check_branch
        %2987 = sbr.rel (%p2985) target = $region88
      $region87: #{tpu_custom_call.1} parent=5 // pred_region
        %s2988 = ssub.s32 %s26, 2
        // Predicated region
        $region89: #{tpu_custom_call.1} parent=87 // pred_check
          %p2989 = pneg %p254
        $region90: #{tpu_custom_call.1} parent=87 // pred_check_branch
          %2991 = sbr.rel (%p2989) target = $region92
        $region91: #{tpu_custom_call.1} parent=87 // pred_region
          %s2992 = sand.u32 %s239, 1
          %s2993 = scalar_lea.sflag [#allocation7], %s2992
          %s2994 = sand.u32 %s239, 1
          %s2995 = smul.addr %s2994, 24
          %s2996 = scalar_lea.vmem [#allocation16], %s2995
          %2998 = dma.done %s2993, 384
        $region92: #{tpu_custom_call.1} parent=87 // pred_fallthru
          _
      $region88: #{tpu_custom_call.1} parent=5 // pred_fallthru
        _
    $region6: #{tpu_custom_call.1} parent=1 // loop_footer
      %s30 = sadd.s32 1, %s26
    $region7: #{tpu_custom_call.1} parent=1 // loop_footer_branch
      %25 = sbr.rel target = $region3
    $region8: #{tpu_custom_call.1} parent=1 // loop_exit
      _
    %2999 = vsyncpa [#allocation6], 1
    %s3000 = scalar_lea.sflag [#allocation6], 1
    %3001 = vsyncpa %s3000, 1
    %3002 = vsyncpa [#allocation9], 1
    %s3003 = scalar_lea.sflag [#allocation9], 1
    %3004 = vsyncpa %s3003, 1
    %3005 = vsyncpa [#allocation12], 1
    %3006 = vsyncpa [#allocation15], 1
    %3007 = vsyncpa [#allocation7], 1
    %s3008 = scalar_lea.sflag [#allocation7], 1
    %3009 = vsyncpa %s3008, 1

</llo_original>
